<compile_context>
chip_gen: v6e
topology: v6e:2x2x1
jax: 0.10.0
libtpu: 0.0.40
codegen_flags: <defaults>
</compile_context>

<pallas_src>
import math

import jax
import jax.numpy as jnp
from jax import lax
from jax.experimental import pallas as pl
from jax.experimental.pallas import tpu as pltpu

HEADS = 4
EMBED = 32
EXPANSION = 4
HEAD_SIZE = EMBED // HEADS
SQRT_HS = math.sqrt(EMBED / HEADS)      # matches (embedding_size / heads) ** 0.5
INV_SQRT_HS = 1.0 / SQRT_HS
LN_EPS = 1e-5                           # PyTorch nn.LayerNorm default
UNROLL_MAX_NB = 8                       # fully unroll per-batch loop up to this


# ---------------------------------------------------------------------------
# in-kernel building blocks (traced inside the Pallas kernel body)
# ---------------------------------------------------------------------------
def _layernorm(x, g, b):
    # two-pass (x - mu)^2 form: matches nn.LayerNorm numerics (no cancellation).
    mu = jnp.mean(x, axis=-1, keepdims=True)
    d = x - mu
    var = jnp.mean(d * d, axis=-1, keepdims=True)
    return d * lax.rsqrt(var + LN_EPS) * g + b


def _make_kernel(nb, S, Sk):
    """Build the kernel for a batch block of `nb` elements (static shapes)."""

    def kernel(tgt_ref, enc_ref, wqk_ref, battn_ref, wvo_ref, ln_ref,
               ff_w1_ref, ff_b1_ref, ff_w2_ref, ff_b2_ref, out_ref,
               q_scr, k_scr, vo_scr, attn_scr):
        tgt = tgt_ref[...]                      # (nb*S,  E)  -- pre-flattened
        enc = enc_ref[...]                      # (nb*Sk, E)
        ln = ln_ref[...]                        # (6, E): n1_g,n1_b,n2_g,n2_b,n3_g,n3_b

        # causal mask as an additive bias, built once per grid step.  The
        # 1/sqrt(hd) scale is folded into Wq host-side, so the bias is
        # -1e9/sqrt(hd); masked probabilities are exactly 0 either way.
        qi = lax.broadcasted_iota(jnp.int32, (S, S), 0)
        ki = lax.broadcasted_iota(jnp.int32, (S, S), 1)
        mask_bias = jnp.where(qi > ki, -1.0e9 * INV_SQRT_HS, 0.0).astype(jnp.float32)

        def mha(x_q, x_kv, ai, sk, bias):
            """Attention `ai` (0=self, 1=cross): queries = x_q, keys/vals = x_kv."""
            rows_k = nb * sk
            w_qk = wqk_ref[ai]                  # (2E, E): [Wq*inv_sqrt ; Wk]
            b3 = battn_ref[ai]                  # (3, E): [bq*inv_sqrt, bk, bv@Wo+bo]
            wvo = wvo_ref[ai]                   # (E, HEADS*E): per-head Wv@Wo, lane-packed

            # projections over all rows of the batch block at once
            q_scr[...] = jnp.dot(x_q, w_qk[0:EMBED],
                                 preferred_element_type=jnp.float32) + b3[0]
            k_scr[0:rows_k, :] = jnp.dot(x_kv, w_qk[EMBED:2 * EMBED],
                                         preferred_element_type=jnp.float32) + b3[1]
            # one full-lane-width matmul gives EVERY head's V@Wo contribution at
            # lane slice [h*E:(h+1)*E] (output projection hoisted out of the loop).
            vo_scr[0:rows_k, :] = jnp.dot(x_kv, wvo,
                                          preferred_element_type=jnp.float32)

            def batch_body(bi):
                q0, k0 = bi * S, bi * sk
                if not isinstance(bi, int):     # dynamic index: help Mosaic align
                    if S % 8 == 0:
                        q0 = pl.multiple_of(q0, 8)
                    if sk % 8 == 0:
                        k0 = pl.multiple_of(k0, 8)
                qb = q_scr[pl.ds(q0, S), :]     # (S,  E), already softmax-scaled
                kb = k_scr[pl.ds(k0, sk), :]    # (sk, E)
                acc = None
                for h in range(HEADS):          # static loop over heads
                    hs = slice(h * HEAD_SIZE, (h + 1) * HEAD_SIZE)
                    ls = slice(h * EMBED, (h + 1) * EMBED)
                    # contract last dims of both operands ("trans_b"): no K transpose
                    s = lax.dot_general(qb[:, hs], kb[:, hs],
                                        (((1,), (1,)), ((), ())),
                                        preferred_element_type=jnp.float32)  # (S, sk)
                    if bias is not None:
                        s = s + bias
                    s = s - jnp.max(s, axis=-1, keepdims=True)
                    p = jnp.exp(s)
                    p = p / jnp.sum(p, axis=-1, keepdims=True)      # exact division
                    ho = jnp.dot(p, vo_scr[pl.ds(k0, sk), ls],
                                 preferred_element_type=jnp.float32)  # (S, E)
                    acc = ho if acc is None else acc + ho
                attn_scr[pl.ds(q0, S), :] = acc + b3[2]

            if nb <= UNROLL_MAX_NB:
                for bi in range(nb):            # small block: full static unroll
                    batch_body(bi)
            else:
                @pl.loop(0, nb)                 # large block: bounded live ranges
                def _(bi):
                    batch_body(bi)

            return attn_scr[...]

        # masked self-attention + residual + LayerNorm
        # TODO(synk): nn.Dropout is treated as identity (inference mode).
        v = _layernorm(tgt + mha(tgt, tgt, 0, S, mask_bias), ln[0], ln[1])

        # cross-attention over encoder output (no mask); query is the raw target
        b = _layernorm(v + mha(tgt, enc, 1, Sk, None), ln[2], ln[3])

        # position-wise feed-forward: Linear -> ReLU -> Linear
        h1 = jnp.maximum(
            jnp.dot(b, ff_w1_ref[...], preferred_element_type=jnp.float32)
            + ff_b1_ref[...], 0.0)
        n = jnp.dot(h1, ff_w2_ref[...], preferred_element_type=jnp.float32) + ff_b2_ref[...]
        out_ref[...] = _layernorm(b + n, ln[4], ln[5]).astype(out_ref.dtype)

    return kernel


# ---------------------------------------------------------------------------
# host-side wrapper: parameter folding/packing, batch-block choice, pallas_call
# ---------------------------------------------------------------------------
def _pick_batch_block(B, S, Sk):
    # Single grid step unless every step still gets >= 256 rows of position-wise
    # work: v5e/v6e have one TensorCore (extra steps = pure ~0.35us overhead),
    # and v7x megacore only wins when each core has enough work per step.
    if B <= 1:
        return 1
    target_rows, min_rows = 512, 256
    bb = max(1, target_rows // max(S, 1))
    if bb >= B:
        return B
    while bb > 1 and B % bb != 0:
        bb -= 1
    if bb >= B:
        return B
    if bb * S < min_rows or (bb * S) % 8 != 0 or (bb * Sk) % 8 != 0:
        return B
    return bb


def _fold_attn(wq, bq, wk, bk, wv, bv, wo, bo):
    # fold the 1/sqrt(head_size) softmax scale into the Q projection,
    # fold Wv@Wo per head (lane-packed), and fold bv through Wo into bo.
    w_qk = jnp.concatenate([wq * INV_SQRT_HS, wk], axis=0)               # (2E, E)
    b3 = jnp.concatenate([bq * INV_SQRT_HS, bk, bv @ wo + bo], axis=0)   # (3, E)
    w_vo = jnp.concatenate(
        [wv[:, h * HEAD_SIZE:(h + 1) * HEAD_SIZE]
         @ wo[h * HEAD_SIZE:(h + 1) * HEAD_SIZE, :] for h in range(HEADS)],
        axis=1)                                                          # (E, HEADS*E)
    return w_qk, b3, w_vo


def _pack_params(params):
    (sa_wq, sa_bq, sa_wk, sa_bk, sa_wv, sa_bv, sa_wo, sa_bo,
     ca_wq, ca_bq, ca_wk, ca_bk, ca_wv, ca_bv, ca_wo, ca_bo,
     n1_g, n1_b, n2_g, n2_b, n3_g, n3_b,
     ff_w1, ff_b1, ff_w2, ff_b2) = params
    sa = _fold_attn(sa_wq, sa_bq, sa_wk, sa_bk, sa_wv, sa_bv, sa_wo, sa_bo)
    ca = _fold_attn(ca_wq, ca_bq, ca_wk, ca_bk, ca_wv, ca_bv, ca_wo, ca_bo)
    w_qk = jnp.stack([sa[0], ca[0]])          # (2, 2E, E)
    b_attn = jnp.stack([sa[1], ca[1]])        # (2, 3, E)
    w_vo = jnp.stack([sa[2], ca[2]])          # (2, E, HEADS*E)
    ln = jnp.concatenate([n1_g, n1_b, n2_g, n2_b, n3_g, n3_b], axis=0)   # (6, E)
    return w_qk, b_attn, w_vo, ln, ff_w1, ff_b1, ff_w2, ff_b2


def decoder_block(target, enc_src, params):
    B, S, E = target.shape
    _, Sk, _ = enc_src.shape
    assert E == EMBED
    bb = _pick_batch_block(B, S, Sk)
    grid = (B // bb,)
    Smax = max(S, Sk)

    w_qk, b_attn, w_vo, ln, ff_w1, ff_b1, ff_w2, ff_b2 = _pack_params(params)

    # host-side flatten is a free metadata reshape of contiguous HBM; the kernel
    # then works on plain 2-D (rows, E) blocks with no in-kernel reshape.
    tgt2d = target.reshape(B * S, E)
    enc2d = enc_src.reshape(B * Sk, E)

    def const_spec(arr):
        nd = arr.ndim
        return pl.BlockSpec(arr.shape, lambda i, _nd=nd: (0,) * _nd)

    in_specs = [
        pl.BlockSpec((bb * S, E), lambda i: (i, 0)),
        pl.BlockSpec((bb * Sk, E), lambda i: (i, 0)),
        const_spec(w_qk), const_spec(b_attn), const_spec(w_vo), const_spec(ln),
        const_spec(ff_w1), const_spec(ff_b1), const_spec(ff_w2), const_spec(ff_b2),
    ]
    scratch_shapes = [
        pltpu.VMEM((bb * S, E), jnp.float32),              # q  (softmax scale folded in)
        pltpu.VMEM((bb * Smax, E), jnp.float32),           # k
        pltpu.VMEM((bb * Smax, HEADS * E), jnp.float32),   # per-head V @ Wo, lane-packed
        pltpu.VMEM((bb * S, E), jnp.float32),              # attention output staging
    ]

    out2d = pl.pallas_call(
        _make_kernel(bb, S, Sk),
        out_shape=jax.ShapeDtypeStruct((B * S, E), target.dtype),
        grid_spec=pltpu.PrefetchScalarGridSpec(
            num_scalar_prefetch=0,
            grid=grid,
            in_specs=in_specs,
            out_specs=pl.BlockSpec((bb * S, E), lambda i: (i, 0)),
            scratch_shapes=scratch_shapes,
        ),
        compiler_params=pltpu.CompilerParams(
            dimension_semantics=("parallel",)),
    )(tgt2d, enc2d, w_qk, b_attn, w_vo, ln, ff_w1, ff_b1, ff_w2, ff_b2)
    return out2d.reshape(B, S, E)


# ---------------------------------------------------------------------------
# deterministic synthetic parameters (shapes follow the module's __init__)
# ---------------------------------------------------------------------------
def init_params(key):
    keys = iter(jax.random.split(key, 32))

    def lin(in_f, out_f):
        w = jax.random.normal(next(keys), (in_f, out_f), jnp.float32) / math.sqrt(in_f)
        b = jax.random.normal(next(keys), (1, out_f), jnp.float32) * 0.02
        return [w, b]

    params = []
    for _ in range(2):                 # selfAttention, then attention (cross)
        for _ in range(4):             # query / key / value / out projections
            params += lin(EMBED, EMBED)
    for _ in range(3):                 # norm1, norm2, norm3 (gamma, beta)
        g = 1.0 + 0.1 * jax.random.normal(next(keys), (1, EMBED), jnp.float32)
        b = 0.1 * jax.random.normal(next(keys), (1, EMBED), jnp.float32)
        params += [g, b]
    params += lin(EMBED, EXPANSION * EMBED)   # fcff[0]
    params += lin(EXPANSION * EMBED, EMBED)   # fcff[2]
    return params


# ---------------------------------------------------------------------------
# pure-JAX reference (mirrors the PyTorch forward) for validation
# ---------------------------------------------------------------------------
def _mha_ref(q_in, k_in, v_in, wq, bq, wk, bk, wv, bv, wo, bo, mask):
    B, Sq, E = q_in.shape
    Sk = k_in.shape[1]
    q = (q_in @ wq + bq).reshape(B, Sq, HEADS, HEAD_SIZE)
    k = (k_in @ wk + bk).reshape(B, Sk, HEADS, HEAD_SIZE)
    v = (v_in @ wv + bv).reshape(B, Sk, HEADS, HEAD_SIZE)
    coff = jnp.einsum('bqhl,bkhl->bhqk', q, k)
    if mask is not None:
        coff = jnp.where(mask, -1.0e9, coff)
    attn = jax.nn.softmax(coff / SQRT_HS, axis=3)
    ans = jnp.einsum('bhqk,bkhl->bqhl', attn, v).reshape(B, Sq, E)
    return ans @ wo + bo


def _ln_ref(x, g, b):
    mu = x.mean(-1, keepdims=True)
    var = ((x - mu) ** 2).mean(-1, keepdims=True)
    return (x - mu) / jnp.sqrt(var + LN_EPS) * g + b


def decoder_block_ref(target, enc_src, params):
    (sa_wq, sa_bq, sa_wk, sa_bk, sa_wv, sa_bv, sa_wo, sa_bo,
     ca_wq, ca_bq, ca_wk, ca_bk, ca_wv, ca_bv, ca_wo, ca_bo,
     n1_g, n1_b, n2_g, n2_b, n3_g, n3_b,
     ff_w1, ff_b1, ff_w2, ff_b2) = params
    S = target.shape[1]
    qi = jnp.arange(S)[:, None]
    ki = jnp.arange(S)[None, :]
    mask = qi > ki                    # True strictly below diagonal
    v = _mha_ref(target, target, target,
                 sa_wq, sa_bq, sa_wk, sa_bk, sa_wv, sa_bv, sa_wo, sa_bo, mask)
    v = _ln_ref(target + v, n1_g, n1_b)
    b = _mha_ref(target, enc_src, enc_src,
                 ca_wq, ca_bq, ca_wk, ca_bk, ca_wv, ca_bv, ca_wo, ca_bo, None)
    b = _ln_ref(v + b, n2_g, n2_b)
    h1 = jnp.maximum(b @ ff_w1 + ff_b1, 0.0)
    n = h1 @ ff_w2 + ff_b2
    return _ln_ref(b + n, n3_g, n3_b)


if __name__ == "__main__":
    key = jax.random.PRNGKey(0)
    kp, kt, ke = jax.random.split(key, 3)
    params = init_params(kp)

    B, S, SK = 2, 8, 8
    target = jax.random.normal(kt, (B, S, EMBED), jnp.float32)
    enc_src = jax.random.normal(ke, (B, SK, EMBED), jnp.float32)

    out = decoder_block(target, enc_src, params)
    jax.block_until_ready(out)

    ref = decoder_block_ref(target, enc_src, params)
    err = float(jnp.max(jnp.abs(out - ref)))
    assert jnp.allclose(out, ref, rtol=2e-3, atol=2e-3), f"max abs err {err}"

    print("KERNEL_OK")
</pallas_src>

<mosaic_0001>
module attributes {stable_mosaic.version = 11 : i64} {
  func.func @kernel(%arg0: i32, %arg1: memref<16x32xf32, #tpu.memory_space<vmem>>, %arg2: memref<16x32xf32, #tpu.memory_space<vmem>>, %arg3: memref<2x64x32xf32, #tpu.memory_space<vmem>>, %arg4: memref<2x3x32xf32, #tpu.memory_space<vmem>>, %arg5: memref<2x32x128xf32, #tpu.memory_space<vmem>>, %arg6: memref<6x32xf32, #tpu.memory_space<vmem>>, %arg7: memref<32x128xf32, #tpu.memory_space<vmem>>, %arg8: memref<1x128xf32, #tpu.memory_space<vmem>>, %arg9: memref<128x32xf32, #tpu.memory_space<vmem>>, %arg10: memref<1x32xf32, #tpu.memory_space<vmem>>, %arg11: memref<16x32xf32, #tpu.memory_space<vmem>>, %arg12: memref<16x32xf32, #tpu.memory_space<vmem>>, %arg13: memref<16x32xf32, #tpu.memory_space<vmem>>, %arg14: memref<16x128xf32, #tpu.memory_space<vmem>>, %arg15: memref<16x32xf32, #tpu.memory_space<vmem>>) attributes {dimension_semantics = [#tpu.dimension_semantics<parallel>], iteration_bounds = array<i64: 1>, scalar_prefetch = 0 : i64, scratch_operands = 4 : i64, tpu.core_type = #tpu.core_type<tc>, window_params = [{transform_indices = @transform_0, window_bounds = array<i64: 16, 32>}, {transform_indices = @transform_1, window_bounds = array<i64: 16, 32>}, {pipeline_mode = #tpu.pipeline_mode<synchronous>, transform_indices = @transform_2, window_bounds = array<i64: 2, 64, 32>}, {pipeline_mode = #tpu.pipeline_mode<synchronous>, transform_indices = @transform_3, window_bounds = array<i64: 2, 3, 32>}, {pipeline_mode = #tpu.pipeline_mode<synchronous>, transform_indices = @transform_4, window_bounds = array<i64: 2, 32, 128>}, {pipeline_mode = #tpu.pipeline_mode<synchronous>, transform_indices = @transform_5, window_bounds = array<i64: 6, 32>}, {pipeline_mode = #tpu.pipeline_mode<synchronous>, transform_indices = @transform_6, window_bounds = array<i64: 32, 128>}, {pipeline_mode = #tpu.pipeline_mode<synchronous>, transform_indices = @transform_7, window_bounds = array<i64: 1, 128>}, {pipeline_mode = #tpu.pipeline_mode<synchronous>, transform_indices = @transform_8, window_bounds = array<i64: 128, 32>}, {pipeline_mode = #tpu.pipeline_mode<synchronous>, transform_indices = @transform_9, window_bounds = array<i64: 1, 32>}, {transform_indices = @transform_10, window_bounds = array<i64: 16, 32>}]} {
    %c0 = arith.constant 0 : index
    %c0_0 = arith.constant 0 : index
    %0 = vector.load %arg1[%c0, %c0_0] : memref<16x32xf32, #tpu.memory_space<vmem>>, vector<16x32xf32>
    %c0_1 = arith.constant 0 : index
    %c0_2 = arith.constant 0 : index
    %1 = vector.load %arg2[%c0_1, %c0_2] : memref<16x32xf32, #tpu.memory_space<vmem>>, vector<16x32xf32>
    %c0_3 = arith.constant 0 : index
    %c0_4 = arith.constant 0 : index
    %2 = vector.load %arg6[%c0_3, %c0_4] : memref<6x32xf32, #tpu.memory_space<vmem>>, vector<6x32xf32>
    %3 = tpu.iota {dimensions = array<i32: 0>} : vector<8x8xi32>
    %4 = tpu.iota {dimensions = array<i32: 1>} : vector<8x8xi32>
    %5 = arith.cmpi sgt, %3, %4 : vector<8x8xi32>
    %cst = arith.constant 0xCDA8965F : f32
    %cst_5 = arith.constant 0.000000e+00 : f32
    %6 = vector.broadcast %cst : f32 to vector<8x8xf32>
    %7 = vector.broadcast %cst_5 : f32 to vector<8x8xf32>
    %8 = arith.select %5, %6, %7 : vector<8x8xi1>, vector<8x8xf32>
    %c0_6 = arith.constant 0 : index
    %c0_7 = arith.constant 0 : index
    %c0_8 = arith.constant 0 : index
    %9 = vector.load %arg3[%c0_6, %c0_7, %c0_8] : memref<2x64x32xf32, #tpu.memory_space<vmem>>, vector<1x64x32xf32>
    %10 = vector.shape_cast %9 : vector<1x64x32xf32> to vector<64x32xf32>
    %c0_9 = arith.constant 0 : index
    %c0_10 = arith.constant 0 : index
    %c0_11 = arith.constant 0 : index
    %11 = vector.load %arg4[%c0_9, %c0_10, %c0_11] : memref<2x3x32xf32, #tpu.memory_space<vmem>>, vector<1x3x32xf32>
    %12 = vector.shape_cast %11 : vector<1x3x32xf32> to vector<3x32xf32>
    %c0_12 = arith.constant 0 : index
    %c0_13 = arith.constant 0 : index
    %c0_14 = arith.constant 0 : index
    %13 = vector.load %arg5[%c0_12, %c0_13, %c0_14] : memref<2x32x128xf32, #tpu.memory_space<vmem>>, vector<1x32x128xf32>
    %14 = vector.shape_cast %13 : vector<1x32x128xf32> to vector<32x128xf32>
    %15 = vector.extract_strided_slice %10 {offsets = [0, 0], sizes = [32, 32], strides = [1, 1]} : vector<64x32xf32> to vector<32x32xf32>
    %cst_15 = arith.constant dense<0.000000e+00> : vector<16x32xf32>
    %16 = tpu.matmul %0, %15, %cst_15 {dimension_numbers = #tpu.dot_dimension_numbers<[1], [0], [0], [1], [0, 0, 1, 1], [], []>} : vector<16x32xf32>, vector<32x32xf32>, vector<16x32xf32> -> vector<16x32xf32>
    %17 = vector.extract_strided_slice %12 {offsets = [0, 0], sizes = [1, 32], strides = [1, 1]} : vector<3x32xf32> to vector<1x32xf32>
    %18 = vector.shape_cast %17 : vector<1x32xf32> to vector<32xf32>
    %19 = vector.shape_cast %18 : vector<32xf32> to vector<1x32xf32>
    %20 = vector.broadcast %19 : vector<1x32xf32> to vector<16x32xf32>
    %21 = arith.addf %16, %20 : vector<16x32xf32>
    %c0_16 = arith.constant 0 : index
    %c0_17 = arith.constant 0 : index
    %22 = vector.load %arg12[%c0_16, %c0_17] : memref<16x32xf32, #tpu.memory_space<vmem>>, vector<16x32xf32>
    tpu.vector_store %arg12[%c0_16, %c0_17], %21 {strides = array<i32>} : memref<16x32xf32, #tpu.memory_space<vmem>>, vector<16x32xf32>,
    %23 = vector.extract_strided_slice %10 {offsets = [32, 0], sizes = [32, 32], strides = [1, 1]} : vector<64x32xf32> to vector<32x32xf32>
    %cst_18 = arith.constant dense<0.000000e+00> : vector<16x32xf32>
    %24 = tpu.matmul %0, %23, %cst_18 {dimension_numbers = #tpu.dot_dimension_numbers<[1], [0], [0], [1], [0, 0, 1, 1], [], []>} : vector<16x32xf32>, vector<32x32xf32>, vector<16x32xf32> -> vector<16x32xf32>
    %25 = vector.extract_strided_slice %12 {offsets = [1, 0], sizes = [1, 32], strides = [1, 1]} : vector<3x32xf32> to vector<1x32xf32>
    %26 = vector.shape_cast %25 : vector<1x32xf32> to vector<32xf32>
    %27 = vector.shape_cast %26 : vector<32xf32> to vector<1x32xf32>
    %28 = vector.broadcast %27 : vector<1x32xf32> to vector<16x32xf32>
    %29 = arith.addf %24, %28 : vector<16x32xf32>
    %c0_19 = arith.constant 0 : index
    %c0_20 = arith.constant 0 : index
    %30 = vector.load %arg13[%c0_19, %c0_20] : memref<16x32xf32, #tpu.memory_space<vmem>>, vector<16x32xf32>
    tpu.vector_store %arg13[%c0_19, %c0_20], %29 {strides = array<i32>} : memref<16x32xf32, #tpu.memory_space<vmem>>, vector<16x32xf32>,
    %cst_21 = arith.constant dense<0.000000e+00> : vector<16x128xf32>
    %31 = tpu.matmul %0, %14, %cst_21 {dimension_numbers = #tpu.dot_dimension_numbers<[1], [0], [0], [1], [0, 0, 1, 1], [], []>} : vector<16x32xf32>, vector<32x128xf32>, vector<16x128xf32> -> vector<16x128xf32>
    %c0_22 = arith.constant 0 : index
    %c0_23 = arith.constant 0 : index
    %32 = vector.load %arg14[%c0_22, %c0_23] : memref<16x128xf32, #tpu.memory_space<vmem>>, vector<16x128xf32>
    tpu.vector_store %arg14[%c0_22, %c0_23], %31 {strides = array<i32>} : memref<16x128xf32, #tpu.memory_space<vmem>>, vector<16x128xf32>,
    %c0_24 = arith.constant 0 : index
    %c0_25 = arith.constant 0 : index
    %33 = vector.load %arg12[%c0_24, %c0_25] : memref<16x32xf32, #tpu.memory_space<vmem>>, vector<8x32xf32>
    %c0_26 = arith.constant 0 : index
    %c0_27 = arith.constant 0 : index
    %34 = vector.load %arg13[%c0_26, %c0_27] : memref<16x32xf32, #tpu.memory_space<vmem>>, vector<8x32xf32>
    %35 = vector.extract_strided_slice %33 {offsets = [0, 0], sizes = [8, 8], strides = [1, 1]} : vector<8x32xf32> to vector<8x8xf32>
    %36 = vector.extract_strided_slice %34 {offsets = [0, 0], sizes = [8, 8], strides = [1, 1]} : vector<8x32xf32> to vector<8x8xf32>
    %cst_28 = arith.constant dense<0.000000e+00> : vector<8x8xf32>
    %37 = tpu.matmul %35, %36, %cst_28 {dimension_numbers = #tpu.dot_dimension_numbers<[1], [1], [0], [0], [0, 0, 1, 0], [], []>} : vector<8x8xf32>, vector<8x8xf32>, vector<8x8xf32> -> vector<8x8xf32>
    %38 = arith.addf %37, %8 : vector<8x8xf32>
    %cst_29 = arith.constant dense<0xFF800000> : vector<8xf32>
    %39 = vector.multi_reduction <maximumf>, %38, %cst_29 [1] : vector<8x8xf32> to vector<8xf32>
    %40 = vector.shape_cast %39 : vector<8xf32> to vector<8x1xf32>
    %41 = vector.broadcast %40 : vector<8x1xf32> to vector<8x8xf32>
    %42 = arith.subf %38, %41 : vector<8x8xf32>
    %43 = math.exp %42 : vector<8x8xf32>
    %cst_30 = arith.constant dense<0.000000e+00> : vector<8xf32>
    %44 = vector.multi_reduction <add>, %43, %cst_30 [1] : vector<8x8xf32> to vector<8xf32>
    %45 = vector.shape_cast %44 : vector<8xf32> to vector<8x1xf32>
    %46 = vector.broadcast %45 : vector<8x1xf32> to vector<8x8xf32>
    %47 = arith.divf %43, %46 : vector<8x8xf32>
    %c0_31 = arith.constant 0 : index
    %c0_32 = arith.constant 0 : index
    %48 = vector.load %arg14[%c0_31, %c0_32] : memref<16x128xf32, #tpu.memory_space<vmem>>, vector<8x32xf32>
    %cst_33 = arith.constant dense<0.000000e+00> : vector<8x32xf32>
    %49 = tpu.matmul %47, %48, %cst_33 {dimension_numbers = #tpu.dot_dimension_numbers<[1], [0], [0], [1], [0, 0, 1, 1], [], []>} : vector<8x8xf32>, vector<8x32xf32>, vector<8x32xf32> -> vector<8x32xf32>
    %50 = vector.extract_strided_slice %33 {offsets = [0, 8], sizes = [8, 8], strides = [1, 1]} : vector<8x32xf32> to vector<8x8xf32>
    %51 = vector.extract_strided_slice %34 {offsets = [0, 8], sizes = [8, 8], strides = [1, 1]} : vector<8x32xf32> to vector<8x8xf32>
    %cst_34 = arith.constant dense<0.000000e+00> : vector<8x8xf32>
    %52 = tpu.matmul %50, %51, %cst_34 {dimension_numbers = #tpu.dot_dimension_numbers<[1], [1], [0], [0], [0, 0, 1, 0], [], []>} : vector<8x8xf32>, vector<8x8xf32>, vector<8x8xf32> -> vector<8x8xf32>
    %53 = arith.addf %52, %8 : vector<8x8xf32>
    %cst_35 = arith.constant dense<0xFF800000> : vector<8xf32>
    %54 = vector.multi_reduction <maximumf>, %53, %cst_35 [1] : vector<8x8xf32> to vector<8xf32>
    %55 = vector.shape_cast %54 : vector<8xf32> to vector<8x1xf32>
    %56 = vector.broadcast %55 : vector<8x1xf32> to vector<8x8xf32>
    %57 = arith.subf %53, %56 : vector<8x8xf32>
    %58 = math.exp %57 : vector<8x8xf32>
    %cst_36 = arith.constant dense<0.000000e+00> : vector<8xf32>
    %59 = vector.multi_reduction <add>, %58, %cst_36 [1] : vector<8x8xf32> to vector<8xf32>
    %60 = vector.shape_cast %59 : vector<8xf32> to vector<8x1xf32>
    %61 = vector.broadcast %60 : vector<8x1xf32> to vector<8x8xf32>
    %62 = arith.divf %58, %61 : vector<8x8xf32>
    %c0_37 = arith.constant 0 : index
    %c32 = arith.constant 32 : index
    %63 = vector.load %arg14[%c0_37, %c32] : memref<16x128xf32, #tpu.memory_space<vmem>>, vector<8x32xf32>
    %cst_38 = arith.constant dense<0.000000e+00> : vector<8x32xf32>
    %64 = tpu.matmul %62, %63, %cst_38 {dimension_numbers = #tpu.dot_dimension_numbers<[1], [0], [0], [1], [0, 0, 1, 1], [], []>} : vector<8x8xf32>, vector<8x32xf32>, vector<8x32xf32> -> vector<8x32xf32>
    %65 = arith.addf %49, %64 : vector<8x32xf32>
    %66 = vector.extract_strided_slice %33 {offsets = [0, 16], sizes = [8, 8], strides = [1, 1]} : vector<8x32xf32> to vector<8x8xf32>
    %67 = vector.extract_strided_slice %34 {offsets = [0, 16], sizes = [8, 8], strides = [1, 1]} : vector<8x32xf32> to vector<8x8xf32>
    %cst_39 = arith.constant dense<0.000000e+00> : vector<8x8xf32>
    %68 = tpu.matmul %66, %67, %cst_39 {dimension_numbers = #tpu.dot_dimension_numbers<[1], [1], [0], [0], [0, 0, 1, 0], [], []>} : vector<8x8xf32>, vector<8x8xf32>, vector<8x8xf32> -> vector<8x8xf32>
    %69 = arith.addf %68, %8 : vector<8x8xf32>
    %cst_40 = arith.constant dense<0xFF800000> : vector<8xf32>
    %70 = vector.multi_reduction <maximumf>, %69, %cst_40 [1] : vector<8x8xf32> to vector<8xf32>
    %71 = vector.shape_cast %70 : vector<8xf32> to vector<8x1xf32>
    %72 = vector.broadcast %71 : vector<8x1xf32> to vector<8x8xf32>
    %73 = arith.subf %69, %72 : vector<8x8xf32>
    %74 = math.exp %73 : vector<8x8xf32>
    %cst_41 = arith.constant dense<0.000000e+00> : vector<8xf32>
    %75 = vector.multi_reduction <add>, %74, %cst_41 [1] : vector<8x8xf32> to vector<8xf32>
    %76 = vector.shape_cast %75 : vector<8xf32> to vector<8x1xf32>
    %77 = vector.broadcast %76 : vector<8x1xf32> to vector<8x8xf32>
    %78 = arith.divf %74, %77 : vector<8x8xf32>
    %c0_42 = arith.constant 0 : index
    %c64 = arith.constant 64 : index
    %79 = vector.load %arg14[%c0_42, %c64] : memref<16x128xf32, #tpu.memory_space<vmem>>, vector<8x32xf32>
    %cst_43 = arith.constant dense<0.000000e+00> : vector<8x32xf32>
    %80 = tpu.matmul %78, %79, %cst_43 {dimension_numbers = #tpu.dot_dimension_numbers<[1], [0], [0], [1], [0, 0, 1, 1], [], []>} : vector<8x8xf32>, vector<8x32xf32>, vector<8x32xf32> -> vector<8x32xf32>
    %81 = arith.addf %65, %80 : vector<8x32xf32>
    %82 = vector.extract_strided_slice %33 {offsets = [0, 24], sizes = [8, 8], strides = [1, 1]} : vector<8x32xf32> to vector<8x8xf32>
    %83 = vector.extract_strided_slice %34 {offsets = [0, 24], sizes = [8, 8], strides = [1, 1]} : vector<8x32xf32> to vector<8x8xf32>
    %cst_44 = arith.constant dense<0.000000e+00> : vector<8x8xf32>
    %84 = tpu.matmul %82, %83, %cst_44 {dimension_numbers = #tpu.dot_dimension_numbers<[1], [1], [0], [0], [0, 0, 1, 0], [], []>} : vector<8x8xf32>, vector<8x8xf32>, vector<8x8xf32> -> vector<8x8xf32>
    %85 = arith.addf %84, %8 : vector<8x8xf32>
    %cst_45 = arith.constant dense<0xFF800000> : vector<8xf32>
    %86 = vector.multi_reduction <maximumf>, %85, %cst_45 [1] : vector<8x8xf32> to vector<8xf32>
    %87 = vector.shape_cast %86 : vector<8xf32> to vector<8x1xf32>
    %88 = vector.broadcast %87 : vector<8x1xf32> to vector<8x8xf32>
    %89 = arith.subf %85, %88 : vector<8x8xf32>
    %90 = math.exp %89 : vector<8x8xf32>
    %cst_46 = arith.constant dense<0.000000e+00> : vector<8xf32>
    %91 = vector.multi_reduction <add>, %90, %cst_46 [1] : vector<8x8xf32> to vector<8xf32>
    %92 = vector.shape_cast %91 : vector<8xf32> to vector<8x1xf32>
    %93 = vector.broadcast %92 : vector<8x1xf32> to vector<8x8xf32>
    %94 = arith.divf %90, %93 : vector<8x8xf32>
    %c0_47 = arith.constant 0 : index
    %c96 = arith.constant 96 : index
    %95 = vector.load %arg14[%c0_47, %c96] : memref<16x128xf32, #tpu.memory_space<vmem>>, vector<8x32xf32>
    %cst_48 = arith.constant dense<0.000000e+00> : vector<8x32xf32>
    %96 = tpu.matmul %94, %95, %cst_48 {dimension_numbers = #tpu.dot_dimension_numbers<[1], [0], [0], [1], [0, 0, 1, 1], [], []>} : vector<8x8xf32>, vector<8x32xf32>, vector<8x32xf32> -> vector<8x32xf32>
    %97 = arith.addf %81, %96 : vector<8x32xf32>
    %98 = vector.extract_strided_slice %12 {offsets = [2, 0], sizes = [1, 32], strides = [1, 1]} : vector<3x32xf32> to vector<1x32xf32>
    %99 = vector.shape_cast %98 : vector<1x32xf32> to vector<32xf32>
    %100 = vector.shape_cast %99 : vector<32xf32> to vector<1x32xf32>
    %101 = vector.broadcast %100 : vector<1x32xf32> to vector<8x32xf32>
    %102 = arith.addf %97, %101 : vector<8x32xf32>
    %c0_49 = arith.constant 0 : index
    %c0_50 = arith.constant 0 : index
    %103 = vector.load %arg15[%c0_49, %c0_50] : memref<16x32xf32, #tpu.memory_space<vmem>>, vector<8x32xf32>
    tpu.vector_store %arg15[%c0_49, %c0_50], %102 {strides = array<i32>} : memref<16x32xf32, #tpu.memory_space<vmem>>, vector<8x32xf32>,
    %c8 = arith.constant 8 : index
    %c0_51 = arith.constant 0 : index
    %104 = vector.load %arg12[%c8, %c0_51] : memref<16x32xf32, #tpu.memory_space<vmem>>, vector<8x32xf32>
    %c8_52 = arith.constant 8 : index
    %c0_53 = arith.constant 0 : index
    %105 = vector.load %arg13[%c8_52, %c0_53] : memref<16x32xf32, #tpu.memory_space<vmem>>, vector<8x32xf32>
    %106 = vector.extract_strided_slice %104 {offsets = [0, 0], sizes = [8, 8], strides = [1, 1]} : vector<8x32xf32> to vector<8x8xf32>
    %107 = vector.extract_strided_slice %105 {offsets = [0, 0], sizes = [8, 8], strides = [1, 1]} : vector<8x32xf32> to vector<8x8xf32>
    %cst_54 = arith.constant dense<0.000000e+00> : vector<8x8xf32>
    %108 = tpu.matmul %106, %107, %cst_54 {dimension_numbers = #tpu.dot_dimension_numbers<[1], [1], [0], [0], [0, 0, 1, 0], [], []>} : vector<8x8xf32>, vector<8x8xf32>, vector<8x8xf32> -> vector<8x8xf32>
    %109 = arith.addf %108, %8 : vector<8x8xf32>
    %cst_55 = arith.constant dense<0xFF800000> : vector<8xf32>
    %110 = vector.multi_reduction <maximumf>, %109, %cst_55 [1] : vector<8x8xf32> to vector<8xf32>
    %111 = vector.shape_cast %110 : vector<8xf32> to vector<8x1xf32>
    %112 = vector.broadcast %111 : vector<8x1xf32> to vector<8x8xf32>
    %113 = arith.subf %109, %112 : vector<8x8xf32>
    %114 = math.exp %113 : vector<8x8xf32>
    %cst_56 = arith.constant dense<0.000000e+00> : vector<8xf32>
    %115 = vector.multi_reduction <add>, %114, %cst_56 [1] : vector<8x8xf32> to vector<8xf32>
    %116 = vector.shape_cast %115 : vector<8xf32> to vector<8x1xf32>
    %117 = vector.broadcast %116 : vector<8x1xf32> to vector<8x8xf32>
    %118 = arith.divf %114, %117 : vector<8x8xf32>
    %c8_57 = arith.constant 8 : index
    %c0_58 = arith.constant 0 : index
    %119 = vector.load %arg14[%c8_57, %c0_58] : memref<16x128xf32, #tpu.memory_space<vmem>>, vector<8x32xf32>
    %cst_59 = arith.constant dense<0.000000e+00> : vector<8x32xf32>
    %120 = tpu.matmul %118, %119, %cst_59 {dimension_numbers = #tpu.dot_dimension_numbers<[1], [0], [0], [1], [0, 0, 1, 1], [], []>} : vector<8x8xf32>, vector<8x32xf32>, vector<8x32xf32> -> vector<8x32xf32>
    %121 = vector.extract_strided_slice %104 {offsets = [0, 8], sizes = [8, 8], strides = [1, 1]} : vector<8x32xf32> to vector<8x8xf32>
    %122 = vector.extract_strided_slice %105 {offsets = [0, 8], sizes = [8, 8], strides = [1, 1]} : vector<8x32xf32> to vector<8x8xf32>
    %cst_60 = arith.constant dense<0.000000e+00> : vector<8x8xf32>
    %123 = tpu.matmul %121, %122, %cst_60 {dimension_numbers = #tpu.dot_dimension_numbers<[1], [1], [0], [0], [0, 0, 1, 0], [], []>} : vector<8x8xf32>, vector<8x8xf32>, vector<8x8xf32> -> vector<8x8xf32>
    %124 = arith.addf %123, %8 : vector<8x8xf32>
    %cst_61 = arith.constant dense<0xFF800000> : vector<8xf32>
    %125 = vector.multi_reduction <maximumf>, %124, %cst_61 [1] : vector<8x8xf32> to vector<8xf32>
    %126 = vector.shape_cast %125 : vector<8xf32> to vector<8x1xf32>
    %127 = vector.broadcast %126 : vector<8x1xf32> to vector<8x8xf32>
    %128 = arith.subf %124, %127 : vector<8x8xf32>
    %129 = math.exp %128 : vector<8x8xf32>
    %cst_62 = arith.constant dense<0.000000e+00> : vector<8xf32>
    %130 = vector.multi_reduction <add>, %129, %cst_62 [1] : vector<8x8xf32> to vector<8xf32>
    %131 = vector.shape_cast %130 : vector<8xf32> to vector<8x1xf32>
    %132 = vector.broadcast %131 : vector<8x1xf32> to vector<8x8xf32>
    %133 = arith.divf %129, %132 : vector<8x8xf32>
    %c8_63 = arith.constant 8 : index
    %c32_64 = arith.constant 32 : index
    %134 = vector.load %arg14[%c8_63, %c32_64] : memref<16x128xf32, #tpu.memory_space<vmem>>, vector<8x32xf32>
    %cst_65 = arith.constant dense<0.000000e+00> : vector<8x32xf32>
    %135 = tpu.matmul %133, %134, %cst_65 {dimension_numbers = #tpu.dot_dimension_numbers<[1], [0], [0], [1], [0, 0, 1, 1], [], []>} : vector<8x8xf32>, vector<8x32xf32>, vector<8x32xf32> -> vector<8x32xf32>
    %136 = arith.addf %120, %135 : vector<8x32xf32>
    %137 = vector.extract_strided_slice %104 {offsets = [0, 16], sizes = [8, 8], strides = [1, 1]} : vector<8x32xf32> to vector<8x8xf32>
    %138 = vector.extract_strided_slice %105 {offsets = [0, 16], sizes = [8, 8], strides = [1, 1]} : vector<8x32xf32> to vector<8x8xf32>
    %cst_66 = arith.constant dense<0.000000e+00> : vector<8x8xf32>
    %139 = tpu.matmul %137, %138, %cst_66 {dimension_numbers = #tpu.dot_dimension_numbers<[1], [1], [0], [0], [0, 0, 1, 0], [], []>} : vector<8x8xf32>, vector<8x8xf32>, vector<8x8xf32> -> vector<8x8xf32>
    %140 = arith.addf %139, %8 : vector<8x8xf32>
    %cst_67 = arith.constant dense<0xFF800000> : vector<8xf32>
    %141 = vector.multi_reduction <maximumf>, %140, %cst_67 [1] : vector<8x8xf32> to vector<8xf32>
    %142 = vector.shape_cast %141 : vector<8xf32> to vector<8x1xf32>
    %143 = vector.broadcast %142 : vector<8x1xf32> to vector<8x8xf32>
    %144 = arith.subf %140, %143 : vector<8x8xf32>
    %145 = math.exp %144 : vector<8x8xf32>
    %cst_68 = arith.constant dense<0.000000e+00> : vector<8xf32>
    %146 = vector.multi_reduction <add>, %145, %cst_68 [1] : vector<8x8xf32> to vector<8xf32>
    %147 = vector.shape_cast %146 : vector<8xf32> to vector<8x1xf32>
    %148 = vector.broadcast %147 : vector<8x1xf32> to vector<8x8xf32>
    %149 = arith.divf %145, %148 : vector<8x8xf32>
    %c8_69 = arith.constant 8 : index
    %c64_70 = arith.constant 64 : index
    %150 = vector.load %arg14[%c8_69, %c64_70] : memref<16x128xf32, #tpu.memory_space<vmem>>, vector<8x32xf32>
    %cst_71 = arith.constant dense<0.000000e+00> : vector<8x32xf32>
    %151 = tpu.matmul %149, %150, %cst_71 {dimension_numbers = #tpu.dot_dimension_numbers<[1], [0], [0], [1], [0, 0, 1, 1], [], []>} : vector<8x8xf32>, vector<8x32xf32>, vector<8x32xf32> -> vector<8x32xf32>
    %152 = arith.addf %136, %151 : vector<8x32xf32>
    %153 = vector.extract_strided_slice %104 {offsets = [0, 24], sizes = [8, 8], strides = [1, 1]} : vector<8x32xf32> to vector<8x8xf32>
    %154 = vector.extract_strided_slice %105 {offsets = [0, 24], sizes = [8, 8], strides = [1, 1]} : vector<8x32xf32> to vector<8x8xf32>
    %cst_72 = arith.constant dense<0.000000e+00> : vector<8x8xf32>
    %155 = tpu.matmul %153, %154, %cst_72 {dimension_numbers = #tpu.dot_dimension_numbers<[1], [1], [0], [0], [0, 0, 1, 0], [], []>} : vector<8x8xf32>, vector<8x8xf32>, vector<8x8xf32> -> vector<8x8xf32>
    %156 = arith.addf %155, %8 : vector<8x8xf32>
    %cst_73 = arith.constant dense<0xFF800000> : vector<8xf32>
    %157 = vector.multi_reduction <maximumf>, %156, %cst_73 [1] : vector<8x8xf32> to vector<8xf32>
    %158 = vector.shape_cast %157 : vector<8xf32> to vector<8x1xf32>
    %159 = vector.broadcast %158 : vector<8x1xf32> to vector<8x8xf32>
    %160 = arith.subf %156, %159 : vector<8x8xf32>
    %161 = math.exp %160 : vector<8x8xf32>
    %cst_74 = arith.constant dense<0.000000e+00> : vector<8xf32>
    %162 = vector.multi_reduction <add>, %161, %cst_74 [1] : vector<8x8xf32> to vector<8xf32>
    %163 = vector.shape_cast %162 : vector<8xf32> to vector<8x1xf32>
    %164 = vector.broadcast %163 : vector<8x1xf32> to vector<8x8xf32>
    %165 = arith.divf %161, %164 : vector<8x8xf32>
    %c8_75 = arith.constant 8 : index
    %c96_76 = arith.constant 96 : index
    %166 = vector.load %arg14[%c8_75, %c96_76] : memref<16x128xf32, #tpu.memory_space<vmem>>, vector<8x32xf32>
    %cst_77 = arith.constant dense<0.000000e+00> : vector<8x32xf32>
    %167 = tpu.matmul %165, %166, %cst_77 {dimension_numbers = #tpu.dot_dimension_numbers<[1], [0], [0], [1], [0, 0, 1, 1], [], []>} : vector<8x8xf32>, vector<8x32xf32>, vector<8x32xf32> -> vector<8x32xf32>
    %168 = arith.addf %152, %167 : vector<8x32xf32>
    %169 = vector.extract_strided_slice %12 {offsets = [2, 0], sizes = [1, 32], strides = [1, 1]} : vector<3x32xf32> to vector<1x32xf32>
    %170 = vector.shape_cast %169 : vector<1x32xf32> to vector<32xf32>
    %171 = vector.shape_cast %170 : vector<32xf32> to vector<1x32xf32>
    %172 = vector.broadcast %171 : vector<1x32xf32> to vector<8x32xf32>
    %173 = arith.addf %168, %172 : vector<8x32xf32>
    %c8_78 = arith.constant 8 : index
    %c0_79 = arith.constant 0 : index
    %174 = vector.load %arg15[%c8_78, %c0_79] : memref<16x32xf32, #tpu.memory_space<vmem>>, vector<8x32xf32>
    tpu.vector_store %arg15[%c8_78, %c0_79], %173 {strides = array<i32>} : memref<16x32xf32, #tpu.memory_space<vmem>>, vector<8x32xf32>,
    %c0_80 = arith.constant 0 : index
    %c0_81 = arith.constant 0 : index
    %175 = vector.load %arg15[%c0_80, %c0_81] : memref<16x32xf32, #tpu.memory_space<vmem>>, vector<16x32xf32>
    %176 = arith.addf %0, %175 : vector<16x32xf32>
    %177 = vector.extract_strided_slice %2 {offsets = [0, 0], sizes = [1, 32], strides = [1, 1]} : vector<6x32xf32> to vector<1x32xf32>
    %178 = vector.shape_cast %177 : vector<1x32xf32> to vector<32xf32>
    %179 = vector.extract_strided_slice %2 {offsets = [1, 0], sizes = [1, 32], strides = [1, 1]} : vector<6x32xf32> to vector<1x32xf32>
    %180 = vector.shape_cast %179 : vector<1x32xf32> to vector<32xf32>
    %cst_82 = arith.constant dense<0.000000e+00> : vector<16xf32>
    %181 = vector.multi_reduction <add>, %176, %cst_82 [1] : vector<16x32xf32> to vector<16xf32>
    %182 = vector.shape_cast %181 : vector<16xf32> to vector<16x1xf32>
    %cst_83 = arith.constant 3.200000e+01 : f32
    %183 = vector.broadcast %cst_83 : f32 to vector<16x1xf32>
    %184 = arith.divf %182, %183 : vector<16x1xf32>
    %185 = vector.broadcast %184 : vector<16x1xf32> to vector<16x32xf32>
    %186 = arith.subf %176, %185 : vector<16x32xf32>
    %187 = arith.mulf %186, %186 : vector<16x32xf32>
    %cst_84 = arith.constant dense<0.000000e+00> : vector<16xf32>
    %188 = vector.multi_reduction <add>, %187, %cst_84 [1] : vector<16x32xf32> to vector<16xf32>
    %189 = vector.shape_cast %188 : vector<16xf32> to vector<16x1xf32>
    %cst_85 = arith.constant 3.200000e+01 : f32
    %190 = vector.broadcast %cst_85 : f32 to vector<16x1xf32>
    %191 = arith.divf %189, %190 : vector<16x1xf32>
    %cst_86 = arith.constant 9.99999974E-6 : f32
    %192 = vector.broadcast %cst_86 : f32 to vector<16x1xf32>
    %193 = arith.addf %191, %192 : vector<16x1xf32>
    %194 = math.rsqrt %193 : vector<16x1xf32>
    %195 = vector.broadcast %194 : vector<16x1xf32> to vector<16x32xf32>
    %196 = arith.mulf %186, %195 : vector<16x32xf32>
    %197 = vector.shape_cast %178 : vector<32xf32> to vector<1x32xf32>
    %198 = vector.broadcast %197 : vector<1x32xf32> to vector<16x32xf32>
    %199 = arith.mulf %196, %198 : vector<16x32xf32>
    %200 = vector.shape_cast %180 : vector<32xf32> to vector<1x32xf32>
    %201 = vector.broadcast %200 : vector<1x32xf32> to vector<16x32xf32>
    %202 = arith.addf %199, %201 : vector<16x32xf32>
    %c1 = arith.constant 1 : index
    %c0_87 = arith.constant 0 : index
    %c0_88 = arith.constant 0 : index
    %203 = vector.load %arg3[%c1, %c0_87, %c0_88] : memref<2x64x32xf32, #tpu.memory_space<vmem>>, vector<1x64x32xf32>
    %204 = vector.shape_cast %203 : vector<1x64x32xf32> to vector<64x32xf32>
    %c1_89 = arith.constant 1 : index
    %c0_90 = arith.constant 0 : index
    %c0_91 = arith.constant 0 : index
    %205 = vector.load %arg4[%c1_89, %c0_90, %c0_91] : memref<2x3x32xf32, #tpu.memory_space<vmem>>, vector<1x3x32xf32>
    %206 = vector.shape_cast %205 : vector<1x3x32xf32> to vector<3x32xf32>
    %c1_92 = arith.constant 1 : index
    %c0_93 = arith.constant 0 : index
    %c0_94 = arith.constant 0 : index
    %207 = vector.load %arg5[%c1_92, %c0_93, %c0_94] : memref<2x32x128xf32, #tpu.memory_space<vmem>>, vector<1x32x128xf32>
    %208 = vector.shape_cast %207 : vector<1x32x128xf32> to vector<32x128xf32>
    %209 = vector.extract_strided_slice %204 {offsets = [0, 0], sizes = [32, 32], strides = [1, 1]} : vector<64x32xf32> to vector<32x32xf32>
    %cst_95 = arith.constant dense<0.000000e+00> : vector<16x32xf32>
    %210 = tpu.matmul %0, %209, %cst_95 {dimension_numbers = #tpu.dot_dimension_numbers<[1], [0], [0], [1], [0, 0, 1, 1], [], []>} : vector<16x32xf32>, vector<32x32xf32>, vector<16x32xf32> -> vector<16x32xf32>
    %211 = vector.extract_strided_slice %206 {offsets = [0, 0], sizes = [1, 32], strides = [1, 1]} : vector<3x32xf32> to vector<1x32xf32>
    %212 = vector.shape_cast %211 : vector<1x32xf32> to vector<32xf32>
    %213 = vector.shape_cast %212 : vector<32xf32> to vector<1x32xf32>
    %214 = vector.broadcast %213 : vector<1x32xf32> to vector<16x32xf32>
    %215 = arith.addf %210, %214 : vector<16x32xf32>
    %c0_96 = arith.constant 0 : index
    %c0_97 = arith.constant 0 : index
    %216 = vector.load %arg12[%c0_96, %c0_97] : memref<16x32xf32, #tpu.memory_space<vmem>>, vector<16x32xf32>
    tpu.vector_store %arg12[%c0_96, %c0_97], %215 {strides = array<i32>} : memref<16x32xf32, #tpu.memory_space<vmem>>, vector<16x32xf32>,
    %217 = vector.extract_strided_slice %204 {offsets = [32, 0], sizes = [32, 32], strides = [1, 1]} : vector<64x32xf32> to vector<32x32xf32>
    %cst_98 = arith.constant dense<0.000000e+00> : vector<16x32xf32>
    %218 = tpu.matmul %1, %217, %cst_98 {dimension_numbers = #tpu.dot_dimension_numbers<[1], [0], [0], [1], [0, 0, 1, 1], [], []>} : vector<16x32xf32>, vector<32x32xf32>, vector<16x32xf32> -> vector<16x32xf32>
    %219 = vector.extract_strided_slice %206 {offsets = [1, 0], sizes = [1, 32], strides = [1, 1]} : vector<3x32xf32> to vector<1x32xf32>
    %220 = vector.shape_cast %219 : vector<1x32xf32> to vector<32xf32>
    %221 = vector.shape_cast %220 : vector<32xf32> to vector<1x32xf32>
    %222 = vector.broadcast %221 : vector<1x32xf32> to vector<16x32xf32>
    %223 = arith.addf %218, %222 : vector<16x32xf32>
    %c0_99 = arith.constant 0 : index
    %c0_100 = arith.constant 0 : index
    %224 = vector.load %arg13[%c0_99, %c0_100] : memref<16x32xf32, #tpu.memory_space<vmem>>, vector<16x32xf32>
    tpu.vector_store %arg13[%c0_99, %c0_100], %223 {strides = array<i32>} : memref<16x32xf32, #tpu.memory_space<vmem>>, vector<16x32xf32>,
    %cst_101 = arith.constant dense<0.000000e+00> : vector<16x128xf32>
    %225 = tpu.matmul %1, %208, %cst_101 {dimension_numbers = #tpu.dot_dimension_numbers<[1], [0], [0], [1], [0, 0, 1, 1], [], []>} : vector<16x32xf32>, vector<32x128xf32>, vector<16x128xf32> -> vector<16x128xf32>
    %c0_102 = arith.constant 0 : index
    %c0_103 = arith.constant 0 : index
    %226 = vector.load %arg14[%c0_102, %c0_103] : memref<16x128xf32, #tpu.memory_space<vmem>>, vector<16x128xf32>
    tpu.vector_store %arg14[%c0_102, %c0_103], %225 {strides = array<i32>} : memref<16x128xf32, #tpu.memory_space<vmem>>, vector<16x128xf32>,
    %c0_104 = arith.constant 0 : index
    %c0_105 = arith.constant 0 : index
    %227 = vector.load %arg12[%c0_104, %c0_105] : memref<16x32xf32, #tpu.memory_space<vmem>>, vector<8x32xf32>
    %c0_106 = arith.constant 0 : index
    %c0_107 = arith.constant 0 : index
    %228 = vector.load %arg13[%c0_106, %c0_107] : memref<16x32xf32, #tpu.memory_space<vmem>>, vector<8x32xf32>
    %229 = vector.extract_strided_slice %227 {offsets = [0, 0], sizes = [8, 8], strides = [1, 1]} : vector<8x32xf32> to vector<8x8xf32>
    %230 = vector.extract_strided_slice %228 {offsets = [0, 0], sizes = [8, 8], strides = [1, 1]} : vector<8x32xf32> to vector<8x8xf32>
    %cst_108 = arith.constant dense<0.000000e+00> : vector<8x8xf32>
    %231 = tpu.matmul %229, %230, %cst_108 {dimension_numbers = #tpu.dot_dimension_numbers<[1], [1], [0], [0], [0, 0, 1, 0], [], []>} : vector<8x8xf32>, vector<8x8xf32>, vector<8x8xf32> -> vector<8x8xf32>
    %cst_109 = arith.constant dense<0xFF800000> : vector<8xf32>
    %232 = vector.multi_reduction <maximumf>, %231, %cst_109 [1] : vector<8x8xf32> to vector<8xf32>
    %233 = vector.shape_cast %232 : vector<8xf32> to vector<8x1xf32>
    %234 = vector.broadcast %233 : vector<8x1xf32> to vector<8x8xf32>
    %235 = arith.subf %231, %234 : vector<8x8xf32>
    %236 = math.exp %235 : vector<8x8xf32>
    %cst_110 = arith.constant dense<0.000000e+00> : vector<8xf32>
    %237 = vector.multi_reduction <add>, %236, %cst_110 [1] : vector<8x8xf32> to vector<8xf32>
    %238 = vector.shape_cast %237 : vector<8xf32> to vector<8x1xf32>
    %239 = vector.broadcast %238 : vector<8x1xf32> to vector<8x8xf32>
    %240 = arith.divf %236, %239 : vector<8x8xf32>
    %c0_111 = arith.constant 0 : index
    %c0_112 = arith.constant 0 : index
    %241 = vector.load %arg14[%c0_111, %c0_112] : memref<16x128xf32, #tpu.memory_space<vmem>>, vector<8x32xf32>
    %cst_113 = arith.constant dense<0.000000e+00> : vector<8x32xf32>
    %242 = tpu.matmul %240, %241, %cst_113 {dimension_numbers = #tpu.dot_dimension_numbers<[1], [0], [0], [1], [0, 0, 1, 1], [], []>} : vector<8x8xf32>, vector<8x32xf32>, vector<8x32xf32> -> vector<8x32xf32>
    %243 = vector.extract_strided_slice %227 {offsets = [0, 8], sizes = [8, 8], strides = [1, 1]} : vector<8x32xf32> to vector<8x8xf32>
    %244 = vector.extract_strided_slice %228 {offsets = [0, 8], sizes = [8, 8], strides = [1, 1]} : vector<8x32xf32> to vector<8x8xf32>
    %cst_114 = arith.constant dense<0.000000e+00> : vector<8x8xf32>
    %245 = tpu.matmul %243, %244, %cst_114 {dimension_numbers = #tpu.dot_dimension_numbers<[1], [1], [0], [0], [0, 0, 1, 0], [], []>} : vector<8x8xf32>, vector<8x8xf32>, vector<8x8xf32> -> vector<8x8xf32>
    %cst_115 = arith.constant dense<0xFF800000> : vector<8xf32>
    %246 = vector.multi_reduction <maximumf>, %245, %cst_115 [1] : vector<8x8xf32> to vector<8xf32>
    %247 = vector.shape_cast %246 : vector<8xf32> to vector<8x1xf32>
    %248 = vector.broadcast %247 : vector<8x1xf32> to vector<8x8xf32>
    %249 = arith.subf %245, %248 : vector<8x8xf32>
    %250 = math.exp %249 : vector<8x8xf32>
    %cst_116 = arith.constant dense<0.000000e+00> : vector<8xf32>
    %251 = vector.multi_reduction <add>, %250, %cst_116 [1] : vector<8x8xf32> to vector<8xf32>
    %252 = vector.shape_cast %251 : vector<8xf32> to vector<8x1xf32>
    %253 = vector.broadcast %252 : vector<8x1xf32> to vector<8x8xf32>
    %254 = arith.divf %250, %253 : vector<8x8xf32>
    %c0_117 = arith.constant 0 : index
    %c32_118 = arith.constant 32 : index
    %255 = vector.load %arg14[%c0_117, %c32_118] : memref<16x128xf32, #tpu.memory_space<vmem>>, vector<8x32xf32>
    %cst_119 = arith.constant dense<0.000000e+00> : vector<8x32xf32>
    %256 = tpu.matmul %254, %255, %cst_119 {dimension_numbers = #tpu.dot_dimension_numbers<[1], [0], [0], [1], [0, 0, 1, 1], [], []>} : vector<8x8xf32>, vector<8x32xf32>, vector<8x32xf32> -> vector<8x32xf32>
    %257 = arith.addf %242, %256 : vector<8x32xf32>
    %258 = vector.extract_strided_slice %227 {offsets = [0, 16], sizes = [8, 8], strides = [1, 1]} : vector<8x32xf32> to vector<8x8xf32>
    %259 = vector.extract_strided_slice %228 {offsets = [0, 16], sizes = [8, 8], strides = [1, 1]} : vector<8x32xf32> to vector<8x8xf32>
    %cst_120 = arith.constant dense<0.000000e+00> : vector<8x8xf32>
    %260 = tpu.matmul %258, %259, %cst_120 {dimension_numbers = #tpu.dot_dimension_numbers<[1], [1], [0], [0], [0, 0, 1, 0], [], []>} : vector<8x8xf32>, vector<8x8xf32>, vector<8x8xf32> -> vector<8x8xf32>
    %cst_121 = arith.constant dense<0xFF800000> : vector<8xf32>
    %261 = vector.multi_reduction <maximumf>, %260, %cst_121 [1] : vector<8x8xf32> to vector<8xf32>
    %262 = vector.shape_cast %261 : vector<8xf32> to vector<8x1xf32>
    %263 = vector.broadcast %262 : vector<8x1xf32> to vector<8x8xf32>
    %264 = arith.subf %260, %263 : vector<8x8xf32>
    %265 = math.exp %264 : vector<8x8xf32>
    %cst_122 = arith.constant dense<0.000000e+00> : vector<8xf32>
    %266 = vector.multi_reduction <add>, %265, %cst_122 [1] : vector<8x8xf32> to vector<8xf32>
    %267 = vector.shape_cast %266 : vector<8xf32> to vector<8x1xf32>
    %268 = vector.broadcast %267 : vector<8x1xf32> to vector<8x8xf32>
    %269 = arith.divf %265, %268 : vector<8x8xf32>
    %c0_123 = arith.constant 0 : index
    %c64_124 = arith.constant 64 : index
    %270 = vector.load %arg14[%c0_123, %c64_124] : memref<16x128xf32, #tpu.memory_space<vmem>>, vector<8x32xf32>
    %cst_125 = arith.constant dense<0.000000e+00> : vector<8x32xf32>
    %271 = tpu.matmul %269, %270, %cst_125 {dimension_numbers = #tpu.dot_dimension_numbers<[1], [0], [0], [1], [0, 0, 1, 1], [], []>} : vector<8x8xf32>, vector<8x32xf32>, vector<8x32xf32> -> vector<8x32xf32>
    %272 = arith.addf %257, %271 : vector<8x32xf32>
    %273 = vector.extract_strided_slice %227 {offsets = [0, 24], sizes = [8, 8], strides = [1, 1]} : vector<8x32xf32> to vector<8x8xf32>
    %274 = vector.extract_strided_slice %228 {offsets = [0, 24], sizes = [8, 8], strides = [1, 1]} : vector<8x32xf32> to vector<8x8xf32>
    %cst_126 = arith.constant dense<0.000000e+00> : vector<8x8xf32>
    %275 = tpu.matmul %273, %274, %cst_126 {dimension_numbers = #tpu.dot_dimension_numbers<[1], [1], [0], [0], [0, 0, 1, 0], [], []>} : vector<8x8xf32>, vector<8x8xf32>, vector<8x8xf32> -> vector<8x8xf32>
    %cst_127 = arith.constant dense<0xFF800000> : vector<8xf32>
    %276 = vector.multi_reduction <maximumf>, %275, %cst_127 [1] : vector<8x8xf32> to vector<8xf32>
    %277 = vector.shape_cast %276 : vector<8xf32> to vector<8x1xf32>
    %278 = vector.broadcast %277 : vector<8x1xf32> to vector<8x8xf32>
    %279 = arith.subf %275, %278 : vector<8x8xf32>
    %280 = math.exp %279 : vector<8x8xf32>
    %cst_128 = arith.constant dense<0.000000e+00> : vector<8xf32>
    %281 = vector.multi_reduction <add>, %280, %cst_128 [1] : vector<8x8xf32> to vector<8xf32>
    %282 = vector.shape_cast %281 : vector<8xf32> to vector<8x1xf32>
    %283 = vector.broadcast %282 : vector<8x1xf32> to vector<8x8xf32>
    %284 = arith.divf %280, %283 : vector<8x8xf32>
    %c0_129 = arith.constant 0 : index
    %c96_130 = arith.constant 96 : index
    %285 = vector.load %arg14[%c0_129, %c96_130] : memref<16x128xf32, #tpu.memory_space<vmem>>, vector<8x32xf32>
    %cst_131 = arith.constant dense<0.000000e+00> : vector<8x32xf32>
    %286 = tpu.matmul %284, %285, %cst_131 {dimension_numbers = #tpu.dot_dimension_numbers<[1], [0], [0], [1], [0, 0, 1, 1], [], []>} : vector<8x8xf32>, vector<8x32xf32>, vector<8x32xf32> -> vector<8x32xf32>
    %287 = arith.addf %272, %286 : vector<8x32xf32>
    %288 = vector.extract_strided_slice %206 {offsets = [2, 0], sizes = [1, 32], strides = [1, 1]} : vector<3x32xf32> to vector<1x32xf32>
    %289 = vector.shape_cast %288 : vector<1x32xf32> to vector<32xf32>
    %290 = vector.shape_cast %289 : vector<32xf32> to vector<1x32xf32>
    %291 = vector.broadcast %290 : vector<1x32xf32> to vector<8x32xf32>
    %292 = arith.addf %287, %291 : vector<8x32xf32>
    %c0_132 = arith.constant 0 : index
    %c0_133 = arith.constant 0 : index
    %293 = vector.load %arg15[%c0_132, %c0_133] : memref<16x32xf32, #tpu.memory_space<vmem>>, vector<8x32xf32>
    tpu.vector_store %arg15[%c0_132, %c0_133], %292 {strides = array<i32>} : memref<16x32xf32, #tpu.memory_space<vmem>>, vector<8x32xf32>,
    %c8_134 = arith.constant 8 : index
    %c0_135 = arith.constant 0 : index
    %294 = vector.load %arg12[%c8_134, %c0_135] : memref<16x32xf32, #tpu.memory_space<vmem>>, vector<8x32xf32>
    %c8_136 = arith.constant 8 : index
    %c0_137 = arith.constant 0 : index
    %295 = vector.load %arg13[%c8_136, %c0_137] : memref<16x32xf32, #tpu.memory_space<vmem>>, vector<8x32xf32>
    %296 = vector.extract_strided_slice %294 {offsets = [0, 0], sizes = [8, 8], strides = [1, 1]} : vector<8x32xf32> to vector<8x8xf32>
    %297 = vector.extract_strided_slice %295 {offsets = [0, 0], sizes = [8, 8], strides = [1, 1]} : vector<8x32xf32> to vector<8x8xf32>
    %cst_138 = arith.constant dense<0.000000e+00> : vector<8x8xf32>
    %298 = tpu.matmul %296, %297, %cst_138 {dimension_numbers = #tpu.dot_dimension_numbers<[1], [1], [0], [0], [0, 0, 1, 0], [], []>} : vector<8x8xf32>, vector<8x8xf32>, vector<8x8xf32> -> vector<8x8xf32>
    %cst_139 = arith.constant dense<0xFF800000> : vector<8xf32>
    %299 = vector.multi_reduction <maximumf>, %298, %cst_139 [1] : vector<8x8xf32> to vector<8xf32>
    %300 = vector.shape_cast %299 : vector<8xf32> to vector<8x1xf32>
    %301 = vector.broadcast %300 : vector<8x1xf32> to vector<8x8xf32>
    %302 = arith.subf %298, %301 : vector<8x8xf32>
    %303 = math.exp %302 : vector<8x8xf32>
    %cst_140 = arith.constant dense<0.000000e+00> : vector<8xf32>
    %304 = vector.multi_reduction <add>, %303, %cst_140 [1] : vector<8x8xf32> to vector<8xf32>
    %305 = vector.shape_cast %304 : vector<8xf32> to vector<8x1xf32>
    %306 = vector.broadcast %305 : vector<8x1xf32> to vector<8x8xf32>
    %307 = arith.divf %303, %306 : vector<8x8xf32>
    %c8_141 = arith.constant 8 : index
    %c0_142 = arith.constant 0 : index
    %308 = vector.load %arg14[%c8_141, %c0_142] : memref<16x128xf32, #tpu.memory_space<vmem>>, vector<8x32xf32>
    %cst_143 = arith.constant dense<0.000000e+00> : vector<8x32xf32>
    %309 = tpu.matmul %307, %308, %cst_143 {dimension_numbers = #tpu.dot_dimension_numbers<[1], [0], [0], [1], [0, 0, 1, 1], [], []>} : vector<8x8xf32>, vector<8x32xf32>, vector<8x32xf32> -> vector<8x32xf32>
    %310 = vector.extract_strided_slice %294 {offsets = [0, 8], sizes = [8, 8], strides = [1, 1]} : vector<8x32xf32> to vector<8x8xf32>
    %311 = vector.extract_strided_slice %295 {offsets = [0, 8], sizes = [8, 8], strides = [1, 1]} : vector<8x32xf32> to vector<8x8xf32>
    %cst_144 = arith.constant dense<0.000000e+00> : vector<8x8xf32>
    %312 = tpu.matmul %310, %311, %cst_144 {dimension_numbers = #tpu.dot_dimension_numbers<[1], [1], [0], [0], [0, 0, 1, 0], [], []>} : vector<8x8xf32>, vector<8x8xf32>, vector<8x8xf32> -> vector<8x8xf32>
    %cst_145 = arith.constant dense<0xFF800000> : vector<8xf32>
    %313 = vector.multi_reduction <maximumf>, %312, %cst_145 [1] : vector<8x8xf32> to vector<8xf32>
    %314 = vector.shape_cast %313 : vector<8xf32> to vector<8x1xf32>
    %315 = vector.broadcast %314 : vector<8x1xf32> to vector<8x8xf32>
    %316 = arith.subf %312, %315 : vector<8x8xf32>
    %317 = math.exp %316 : vector<8x8xf32>
    %cst_146 = arith.constant dense<0.000000e+00> : vector<8xf32>
    %318 = vector.multi_reduction <add>, %317, %cst_146 [1] : vector<8x8xf32> to vector<8xf32>
    %319 = vector.shape_cast %318 : vector<8xf32> to vector<8x1xf32>
    %320 = vector.broadcast %319 : vector<8x1xf32> to vector<8x8xf32>
    %321 = arith.divf %317, %320 : vector<8x8xf32>
    %c8_147 = arith.constant 8 : index
    %c32_148 = arith.constant 32 : index
    %322 = vector.load %arg14[%c8_147, %c32_148] : memref<16x128xf32, #tpu.memory_space<vmem>>, vector<8x32xf32>
    %cst_149 = arith.constant dense<0.000000e+00> : vector<8x32xf32>
    %323 = tpu.matmul %321, %322, %cst_149 {dimension_numbers = #tpu.dot_dimension_numbers<[1], [0], [0], [1], [0, 0, 1, 1], [], []>} : vector<8x8xf32>, vector<8x32xf32>, vector<8x32xf32> -> vector<8x32xf32>
    %324 = arith.addf %309, %323 : vector<8x32xf32>
    %325 = vector.extract_strided_slice %294 {offsets = [0, 16], sizes = [8, 8], strides = [1, 1]} : vector<8x32xf32> to vector<8x8xf32>
    %326 = vector.extract_strided_slice %295 {offsets = [0, 16], sizes = [8, 8], strides = [1, 1]} : vector<8x32xf32> to vector<8x8xf32>
    %cst_150 = arith.constant dense<0.000000e+00> : vector<8x8xf32>
    %327 = tpu.matmul %325, %326, %cst_150 {dimension_numbers = #tpu.dot_dimension_numbers<[1], [1], [0], [0], [0, 0, 1, 0], [], []>} : vector<8x8xf32>, vector<8x8xf32>, vector<8x8xf32> -> vector<8x8xf32>
    %cst_151 = arith.constant dense<0xFF800000> : vector<8xf32>
    %328 = vector.multi_reduction <maximumf>, %327, %cst_151 [1] : vector<8x8xf32> to vector<8xf32>
    %329 = vector.shape_cast %328 : vector<8xf32> to vector<8x1xf32>
    %330 = vector.broadcast %329 : vector<8x1xf32> to vector<8x8xf32>
    %331 = arith.subf %327, %330 : vector<8x8xf32>
    %332 = math.exp %331 : vector<8x8xf32>
    %cst_152 = arith.constant dense<0.000000e+00> : vector<8xf32>
    %333 = vector.multi_reduction <add>, %332, %cst_152 [1] : vector<8x8xf32> to vector<8xf32>
    %334 = vector.shape_cast %333 : vector<8xf32> to vector<8x1xf32>
    %335 = vector.broadcast %334 : vector<8x1xf32> to vector<8x8xf32>
    %336 = arith.divf %332, %335 : vector<8x8xf32>
    %c8_153 = arith.constant 8 : index
    %c64_154 = arith.constant 64 : index
    %337 = vector.load %arg14[%c8_153, %c64_154] : memref<16x128xf32, #tpu.memory_space<vmem>>, vector<8x32xf32>
    %cst_155 = arith.constant dense<0.000000e+00> : vector<8x32xf32>
    %338 = tpu.matmul %336, %337, %cst_155 {dimension_numbers = #tpu.dot_dimension_numbers<[1], [0], [0], [1], [0, 0, 1, 1], [], []>} : vector<8x8xf32>, vector<8x32xf32>, vector<8x32xf32> -> vector<8x32xf32>
    %339 = arith.addf %324, %338 : vector<8x32xf32>
    %340 = vector.extract_strided_slice %294 {offsets = [0, 24], sizes = [8, 8], strides = [1, 1]} : vector<8x32xf32> to vector<8x8xf32>
    %341 = vector.extract_strided_slice %295 {offsets = [0, 24], sizes = [8, 8], strides = [1, 1]} : vector<8x32xf32> to vector<8x8xf32>
    %cst_156 = arith.constant dense<0.000000e+00> : vector<8x8xf32>
    %342 = tpu.matmul %340, %341, %cst_156 {dimension_numbers = #tpu.dot_dimension_numbers<[1], [1], [0], [0], [0, 0, 1, 0], [], []>} : vector<8x8xf32>, vector<8x8xf32>, vector<8x8xf32> -> vector<8x8xf32>
    %cst_157 = arith.constant dense<0xFF800000> : vector<8xf32>
    %343 = vector.multi_reduction <maximumf>, %342, %cst_157 [1] : vector<8x8xf32> to vector<8xf32>
    %344 = vector.shape_cast %343 : vector<8xf32> to vector<8x1xf32>
    %345 = vector.broadcast %344 : vector<8x1xf32> to vector<8x8xf32>
    %346 = arith.subf %342, %345 : vector<8x8xf32>
    %347 = math.exp %346 : vector<8x8xf32>
    %cst_158 = arith.constant dense<0.000000e+00> : vector<8xf32>
    %348 = vector.multi_reduction <add>, %347, %cst_158 [1] : vector<8x8xf32> to vector<8xf32>
    %349 = vector.shape_cast %348 : vector<8xf32> to vector<8x1xf32>
    %350 = vector.broadcast %349 : vector<8x1xf32> to vector<8x8xf32>
    %351 = arith.divf %347, %350 : vector<8x8xf32>
    %c8_159 = arith.constant 8 : index
    %c96_160 = arith.constant 96 : index
    %352 = vector.load %arg14[%c8_159, %c96_160] : memref<16x128xf32, #tpu.memory_space<vmem>>, vector<8x32xf32>
    %cst_161 = arith.constant dense<0.000000e+00> : vector<8x32xf32>
    %353 = tpu.matmul %351, %352, %cst_161 {dimension_numbers = #tpu.dot_dimension_numbers<[1], [0], [0], [1], [0, 0, 1, 1], [], []>} : vector<8x8xf32>, vector<8x32xf32>, vector<8x32xf32> -> vector<8x32xf32>
    %354 = arith.addf %339, %353 : vector<8x32xf32>
    %355 = vector.extract_strided_slice %206 {offsets = [2, 0], sizes = [1, 32], strides = [1, 1]} : vector<3x32xf32> to vector<1x32xf32>
    %356 = vector.shape_cast %355 : vector<1x32xf32> to vector<32xf32>
    %357 = vector.shape_cast %356 : vector<32xf32> to vector<1x32xf32>
    %358 = vector.broadcast %357 : vector<1x32xf32> to vector<8x32xf32>
    %359 = arith.addf %354, %358 : vector<8x32xf32>
    %c8_162 = arith.constant 8 : index
    %c0_163 = arith.constant 0 : index
    %360 = vector.load %arg15[%c8_162, %c0_163] : memref<16x32xf32, #tpu.memory_space<vmem>>, vector<8x32xf32>
    tpu.vector_store %arg15[%c8_162, %c0_163], %359 {strides = array<i32>} : memref<16x32xf32, #tpu.memory_space<vmem>>, vector<8x32xf32>,
    %c0_164 = arith.constant 0 : index
    %c0_165 = arith.constant 0 : index
    %361 = vector.load %arg15[%c0_164, %c0_165] : memref<16x32xf32, #tpu.memory_space<vmem>>, vector<16x32xf32>
    %362 = arith.addf %202, %361 : vector<16x32xf32>
    %363 = vector.extract_strided_slice %2 {offsets = [2, 0], sizes = [1, 32], strides = [1, 1]} : vector<6x32xf32> to vector<1x32xf32>
    %364 = vector.shape_cast %363 : vector<1x32xf32> to vector<32xf32>
    %365 = vector.extract_strided_slice %2 {offsets = [3, 0], sizes = [1, 32], strides = [1, 1]} : vector<6x32xf32> to vector<1x32xf32>
    %366 = vector.shape_cast %365 : vector<1x32xf32> to vector<32xf32>
    %cst_166 = arith.constant dense<0.000000e+00> : vector<16xf32>
    %367 = vector.multi_reduction <add>, %362, %cst_166 [1] : vector<16x32xf32> to vector<16xf32>
    %368 = vector.shape_cast %367 : vector<16xf32> to vector<16x1xf32>
    %cst_167 = arith.constant 3.200000e+01 : f32
    %369 = vector.broadcast %cst_167 : f32 to vector<16x1xf32>
    %370 = arith.divf %368, %369 : vector<16x1xf32>
    %371 = vector.broadcast %370 : vector<16x1xf32> to vector<16x32xf32>
    %372 = arith.subf %362, %371 : vector<16x32xf32>
    %373 = arith.mulf %372, %372 : vector<16x32xf32>
    %cst_168 = arith.constant dense<0.000000e+00> : vector<16xf32>
    %374 = vector.multi_reduction <add>, %373, %cst_168 [1] : vector<16x32xf32> to vector<16xf32>
    %375 = vector.shape_cast %374 : vector<16xf32> to vector<16x1xf32>
    %cst_169 = arith.constant 3.200000e+01 : f32
    %376 = vector.broadcast %cst_169 : f32 to vector<16x1xf32>
    %377 = arith.divf %375, %376 : vector<16x1xf32>
    %cst_170 = arith.constant 9.99999974E-6 : f32
    %378 = vector.broadcast %cst_170 : f32 to vector<16x1xf32>
    %379 = arith.addf %377, %378 : vector<16x1xf32>
    %380 = math.rsqrt %379 : vector<16x1xf32>
    %381 = vector.broadcast %380 : vector<16x1xf32> to vector<16x32xf32>
    %382 = arith.mulf %372, %381 : vector<16x32xf32>
    %383 = vector.shape_cast %364 : vector<32xf32> to vector<1x32xf32>
    %384 = vector.broadcast %383 : vector<1x32xf32> to vector<16x32xf32>
    %385 = arith.mulf %382, %384 : vector<16x32xf32>
    %386 = vector.shape_cast %366 : vector<32xf32> to vector<1x32xf32>
    %387 = vector.broadcast %386 : vector<1x32xf32> to vector<16x32xf32>
    %388 = arith.addf %385, %387 : vector<16x32xf32>
    %c0_171 = arith.constant 0 : index
    %c0_172 = arith.constant 0 : index
    %389 = vector.load %arg7[%c0_171, %c0_172] : memref<32x128xf32, #tpu.memory_space<vmem>>, vector<32x128xf32>
    %cst_173 = arith.constant dense<0.000000e+00> : vector<16x128xf32>
    %390 = tpu.matmul %388, %389, %cst_173 {dimension_numbers = #tpu.dot_dimension_numbers<[1], [0], [0], [1], [0, 0, 1, 1], [], []>} : vector<16x32xf32>, vector<32x128xf32>, vector<16x128xf32> -> vector<16x128xf32>
    %c0_174 = arith.constant 0 : index
    %c0_175 = arith.constant 0 : index
    %391 = vector.load %arg8[%c0_174, %c0_175] : memref<1x128xf32, #tpu.memory_space<vmem>>, vector<1x128xf32>
    %392 = vector.broadcast %391 : vector<1x128xf32> to vector<16x128xf32>
    %393 = arith.addf %390, %392 : vector<16x128xf32>
    %cst_176 = arith.constant 0.000000e+00 : f32
    %394 = vector.broadcast %cst_176 : f32 to vector<16x128xf32>
    %395 = arith.maximumf %393, %394 : vector<16x128xf32>
    %c0_177 = arith.constant 0 : index
    %c0_178 = arith.constant 0 : index
    %396 = vector.load %arg9[%c0_177, %c0_178] : memref<128x32xf32, #tpu.memory_space<vmem>>, vector<128x32xf32>
    %cst_179 = arith.constant dense<0.000000e+00> : vector<16x32xf32>
    %397 = tpu.matmul %395, %396, %cst_179 {dimension_numbers = #tpu.dot_dimension_numbers<[1], [0], [0], [1], [0, 0, 1, 1], [], []>} : vector<16x128xf32>, vector<128x32xf32>, vector<16x32xf32> -> vector<16x32xf32>
    %c0_180 = arith.constant 0 : index
    %c0_181 = arith.constant 0 : index
    %398 = vector.load %arg10[%c0_180, %c0_181] : memref<1x32xf32, #tpu.memory_space<vmem>>, vector<1x32xf32>
    %399 = vector.broadcast %398 : vector<1x32xf32> to vector<16x32xf32>
    %400 = arith.addf %397, %399 : vector<16x32xf32>
    %401 = arith.addf %388, %400 : vector<16x32xf32>
    %402 = vector.extract_strided_slice %2 {offsets = [4, 0], sizes = [1, 32], strides = [1, 1]} : vector<6x32xf32> to vector<1x32xf32>
    %403 = vector.shape_cast %402 : vector<1x32xf32> to vector<32xf32>
    %404 = vector.extract_strided_slice %2 {offsets = [5, 0], sizes = [1, 32], strides = [1, 1]} : vector<6x32xf32> to vector<1x32xf32>
    %405 = vector.shape_cast %404 : vector<1x32xf32> to vector<32xf32>
    %cst_182 = arith.constant dense<0.000000e+00> : vector<16xf32>
    %406 = vector.multi_reduction <add>, %401, %cst_182 [1] : vector<16x32xf32> to vector<16xf32>
    %407 = vector.shape_cast %406 : vector<16xf32> to vector<16x1xf32>
    %cst_183 = arith.constant 3.200000e+01 : f32
    %408 = vector.broadcast %cst_183 : f32 to vector<16x1xf32>
    %409 = arith.divf %407, %408 : vector<16x1xf32>
    %410 = vector.broadcast %409 : vector<16x1xf32> to vector<16x32xf32>
    %411 = arith.subf %401, %410 : vector<16x32xf32>
    %412 = arith.mulf %411, %411 : vector<16x32xf32>
    %cst_184 = arith.constant dense<0.000000e+00> : vector<16xf32>
    %413 = vector.multi_reduction <add>, %412, %cst_184 [1] : vector<16x32xf32> to vector<16xf32>
    %414 = vector.shape_cast %413 : vector<16xf32> to vector<16x1xf32>
    %cst_185 = arith.constant 3.200000e+01 : f32
    %415 = vector.broadcast %cst_185 : f32 to vector<16x1xf32>
    %416 = arith.divf %414, %415 : vector<16x1xf32>
    %cst_186 = arith.constant 9.99999974E-6 : f32
    %417 = vector.broadcast %cst_186 : f32 to vector<16x1xf32>
    %418 = arith.addf %416, %417 : vector<16x1xf32>
    %419 = math.rsqrt %418 : vector<16x1xf32>
    %420 = vector.broadcast %419 : vector<16x1xf32> to vector<16x32xf32>
    %421 = arith.mulf %411, %420 : vector<16x32xf32>
    %422 = vector.shape_cast %403 : vector<32xf32> to vector<1x32xf32>
    %423 = vector.broadcast %422 : vector<1x32xf32> to vector<16x32xf32>
    %424 = arith.mulf %421, %423 : vector<16x32xf32>
    %425 = vector.shape_cast %405 : vector<32xf32> to vector<1x32xf32>
    %426 = vector.broadcast %425 : vector<1x32xf32> to vector<16x32xf32>
    %427 = arith.addf %424, %426 : vector<16x32xf32>
    %c0_187 = arith.constant 0 : index
    %c0_188 = arith.constant 0 : index
    %428 = vector.load %arg11[%c0_187, %c0_188] : memref<16x32xf32, #tpu.memory_space<vmem>>, vector<16x32xf32>
    tpu.vector_store %arg11[%c0_187, %c0_188], %427 {strides = array<i32>} : memref<16x32xf32, #tpu.memory_space<vmem>>, vector<16x32xf32>,
    return
  }
  func.func @transform_0(%arg0: i32) -> (i32, i32) {
    %c0_i32 = arith.constant 0 : i32
    %c0_i32_0 = arith.constant 0 : i32
    return %arg0, %c0_i32 : i32, i32
  }
  func.func @transform_1(%arg0: i32) -> (i32, i32) {
    %c0_i32 = arith.constant 0 : i32
    %c0_i32_0 = arith.constant 0 : i32
    return %arg0, %c0_i32 : i32, i32
  }
  func.func @transform_2(%arg0: i32) -> (i32, i32, i32) {
    %c0_i32 = arith.constant 0 : i32
    %c0_i32_0 = arith.constant 0 : i32
    %c0_i32_1 = arith.constant 0 : i32
    %c0_i32_2 = arith.constant 0 : i32
    return %c0_i32, %c0_i32_0, %c0_i32_1 : i32, i32, i32
  }
  func.func @transform_3(%arg0: i32) -> (i32, i32, i32) {
    %c0_i32 = arith.constant 0 : i32
    %c0_i32_0 = arith.constant 0 : i32
    %c0_i32_1 = arith.constant 0 : i32
    %c0_i32_2 = arith.constant 0 : i32
    return %c0_i32, %c0_i32_0, %c0_i32_1 : i32, i32, i32
  }
  func.func @transform_4(%arg0: i32) -> (i32, i32, i32) {
    %c0_i32 = arith.constant 0 : i32
    %c0_i32_0 = arith.constant 0 : i32
    %c0_i32_1 = arith.constant 0 : i32
    %c0_i32_2 = arith.constant 0 : i32
    return %c0_i32, %c0_i32_0, %c0_i32_1 : i32, i32, i32
  }
  func.func @transform_5(%arg0: i32) -> (i32, i32) {
    %c0_i32 = arith.constant 0 : i32
    %c0_i32_0 = arith.constant 0 : i32
    %c0_i32_1 = arith.constant 0 : i32
    return %c0_i32, %c0_i32_0 : i32, i32
  }
  func.func @transform_6(%arg0: i32) -> (i32, i32) {
    %c0_i32 = arith.constant 0 : i32
    %c0_i32_0 = arith.constant 0 : i32
    %c0_i32_1 = arith.constant 0 : i32
    return %c0_i32, %c0_i32_0 : i32, i32
  }
  func.func @transform_7(%arg0: i32) -> (i32, i32) {
    %c0_i32 = arith.constant 0 : i32
    %c0_i32_0 = arith.constant 0 : i32
    %c0_i32_1 = arith.constant 0 : i32
    return %c0_i32, %c0_i32_0 : i32, i32
  }
  func.func @transform_8(%arg0: i32) -> (i32, i32) {
    %c0_i32 = arith.constant 0 : i32
    %c0_i32_0 = arith.constant 0 : i32
    %c0_i32_1 = arith.constant 0 : i32
    return %c0_i32, %c0_i32_0 : i32, i32
  }
  func.func @transform_9(%arg0: i32) -> (i32, i32) {
    %c0_i32 = arith.constant 0 : i32
    %c0_i32_0 = arith.constant 0 : i32
    %c0_i32_1 = arith.constant 0 : i32
    return %c0_i32, %c0_i32_0 : i32, i32
  }
  func.func @transform_10(%arg0: i32) -> (i32, i32) {
    %c0_i32 = arith.constant 0 : i32
    %c0_i32_0 = arith.constant 0 : i32
    return %arg0, %c0_i32 : i32, i32
  }
}

</mosaic_0001>

<llo_original>
// kernel: tpu_custom_call.1
$region0: #{tpu_custom_call.1}
  #allocation0 [shape = 'u32[]', space=smem, size = 0x4, offset = 0x4, fixed_abs, tag = 'smem constant byte address 0x4 - core index']
  #allocation1 [shape = 'u32[144,128]{1,0:T(1,128)}', space=vmem, size = 0x12000, scoped, tag = 'internal scratch']
  #allocation2 [shape = 'f32[16,32]{1,0:T(8,128)}', space=vmem, size = 0x2000, scoped, tag = 'scratch operand']
  #allocation3 [shape = 'f32[16,32]{1,0:T(8,128)}', space=vmem, size = 0x2000, scoped, tag = 'scratch operand']
  #allocation4 [shape = 'f32[16,128]{1,0:T(8,128)}', space=vmem, size = 0x2000, scoped, tag = 'scratch operand']
  #allocation5 [shape = 'f32[16,32]{1,0:T(8,128)}', space=vmem, size = 0x2000, scoped, tag = 'scratch operand']
  %s0 = inlined_call_operand.vmem [shape: f32[16,32], index: 0, kind: input, shape index: {}]
  %s1 = inlined_call_operand.vmem [shape: f32[16,32], index: 1, kind: input, shape index: {}]
  %s2 = inlined_call_operand.vmem [shape: f32[2,64,32], index: 2, kind: input, shape index: {}]
  %s3 = inlined_call_operand.vmem [shape: f32[2,3,32], index: 3, kind: input, shape index: {}]
  %s4 = inlined_call_operand.vmem [shape: f32[2,32,128], index: 4, kind: input, shape index: {}]
  %s5 = inlined_call_operand.vmem [shape: f32[6,32], index: 5, kind: input, shape index: {}]
  %s6 = inlined_call_operand.vmem [shape: f32[32,128], index: 6, kind: input, shape index: {}]
  %s7 = inlined_call_operand.vmem [shape: f32[1,128], index: 7, kind: input, shape index: {}]
  %s8 = inlined_call_operand.vmem [shape: f32[128,32], index: 8, kind: input, shape index: {}]
  %s9 = inlined_call_operand.vmem [shape: f32[1,32], index: 9, kind: input, shape index: {}]
  %s10 = inlined_call_operand.hbm [shape: f32[16,32], index: 10, kind: output, shape index: {}]
  %s11 = sld [smem:[#allocation0]]
  $region50: #{tpu_custom_call.1} parent=0
    _
  %s13 = ssub.s32 1, %s11
  %s14 = scalar_select 0, %s13, %s11
  $region1: #{tpu_custom_call.1} parent=0
    #allocation6 [shape = 'u8[8192]{0}', space=vmem, size = 0x2000, scoped, tag = 'output window, operand 0, single buffered']
    #allocation7 [shape = 's32[1]{0}', space=sflag, size = 0x4, scoped, tag = 'scoped memory for tpu_custom_call.1']
    %15 = vsyncpa [#allocation7], 0
    // Predicated region
    $region2: #{tpu_custom_call.1} parent=1 // pred_check
      _
    $region3: #{tpu_custom_call.1} parent=1 // pred_check_branch
      %17 = sbr.rel (0) target = $region5
    $region4: #{tpu_custom_call.1} parent=1 // pred_region
      _
    $region5: #{tpu_custom_call.1} parent=1 // pred_fallthru
      _
    // Predicated region
    $region6: #{tpu_custom_call.1} parent=1 // pred_check
      _
    $region7: #{tpu_custom_call.1} parent=1 // pred_check_branch
      %19 = sbr.rel (0) target = $region9
    $region8: #{tpu_custom_call.1} parent=1 // pred_region
      _
    $region9: #{tpu_custom_call.1} parent=1 // pred_fallthru
      _
    // Predicated region
    $region10: #{tpu_custom_call.1} parent=1 // pred_check
      _
    $region11: #{tpu_custom_call.1} parent=1 // pred_check_branch
      %21 = sbr.rel (0) target = $region13
    $region12: #{tpu_custom_call.1} parent=1 // pred_region
      _
    $region13: #{tpu_custom_call.1} parent=1 // pred_fallthru
      _
    // Predicated region
    $region14: #{tpu_custom_call.1} parent=1 // pred_check
      _
    $region15: #{tpu_custom_call.1} parent=1 // pred_check_branch
      %23 = sbr.rel (0) target = $region17
    $region16: #{tpu_custom_call.1} parent=1 // pred_region
      _
    $region17: #{tpu_custom_call.1} parent=1 // pred_fallthru
      _
    // Predicated region
    $region18: #{tpu_custom_call.1} parent=1 // pred_check
      _
    $region19: #{tpu_custom_call.1} parent=1 // pred_check_branch
      %25 = sbr.rel (0) target = $region21
    $region20: #{tpu_custom_call.1} parent=1 // pred_region
      _
    $region21: #{tpu_custom_call.1} parent=1 // pred_fallthru
      _
    // Predicated region
    $region22: #{tpu_custom_call.1} parent=1 // pred_check
      _
    $region23: #{tpu_custom_call.1} parent=1 // pred_check_branch
      %27 = sbr.rel (0) target = $region25
    $region24: #{tpu_custom_call.1} parent=1 // pred_region
      _
    $region25: #{tpu_custom_call.1} parent=1 // pred_fallthru
      _
    // Predicated region
    $region26: #{tpu_custom_call.1} parent=1 // pred_check
      _
    $region27: #{tpu_custom_call.1} parent=1 // pred_check_branch
      %29 = sbr.rel (0) target = $region29
    $region28: #{tpu_custom_call.1} parent=1 // pred_region
      _
    $region29: #{tpu_custom_call.1} parent=1 // pred_fallthru
      _
    // Predicated region
    $region30: #{tpu_custom_call.1} parent=1 // pred_check
      _
    $region31: #{tpu_custom_call.1} parent=1 // pred_check_branch
      %31 = sbr.rel (0) target = $region33
    $region32: #{tpu_custom_call.1} parent=1 // pred_region
      _
    $region33: #{tpu_custom_call.1} parent=1 // pred_fallthru
      _
    // Predicated region
    $region34: #{tpu_custom_call.1} parent=1 // pred_check
      _
    $region35: #{tpu_custom_call.1} parent=1 // pred_check_branch
      %33 = sbr.rel (0) target = $region37
    $region36: #{tpu_custom_call.1} parent=1 // pred_region
      _
    $region37: #{tpu_custom_call.1} parent=1 // pred_fallthru
      _
    // Predicated region
    $region38: #{tpu_custom_call.1} parent=1 // pred_check
      _
    $region39: #{tpu_custom_call.1} parent=1 // pred_check_branch
      %35 = sbr.rel (0) target = $region41
    $region40: #{tpu_custom_call.1} parent=1 // pred_region
      _
    $region41: #{tpu_custom_call.1} parent=1 // pred_fallthru
      _
    %v36 = vld [vmem:[%s0] sm:$0xff]
    %v37 = vld [vmem:[%s0 + $0x8] sm:$0xff]
    %v38 = vld [vmem:[%s1] sm:$0xff]
    %v39 = vld [vmem:[%s1 + $0x8] sm:$0xff]
    %v40 = vld [vmem:[%s5] sm:$0x3f]
    %v41 = vlaneseq
    %v42 = vshrl.u32 %v41, 7
    %v43 = vlaneseq
    %v44 = vand.u32 %v43, 127
    %vm45 = vcmp.gt.s32.totalorder %v42, %v44
    %v46 = vsel %vm45, -3.5355338e+08, 0.0
    %v47 = vld [vmem:[%s2] sm:$0xff]
    %v48 = vld [vmem:[%s2 + $0x8] sm:$0xff]
    %v49 = vld [vmem:[%s2 + $0x10] sm:$0xff]
    %v50 = vld [vmem:[%s2 + $0x18] sm:$0xff]
    %v51 = vld [vmem:[%s2 + $0x20] sm:$0xff]
    %v52 = vld [vmem:[%s2 + $0x28] sm:$0xff]
    %v53 = vld [vmem:[%s2 + $0x30] sm:$0xff]
    %v54 = vld [vmem:[%s2 + $0x38] sm:$0xff]
    %v55 = vld [vmem:[%s3] sm:$0x7]
    %v56 = vld [vmem:[%s4] sm:$0xff]
    %v57 = vld [vmem:[%s4 + $0x8] sm:$0xff]
    %v58 = vld [vmem:[%s4 + $0x10] sm:$0xff]
    %v59 = vld [vmem:[%s4 + $0x18] sm:$0xff]
    %v60 = vlaneseq
    %v61 = vshrl.u32 %v60, 7
    %v62 = vsub.s32 0, %v61
    %v63 = vrot.slane %v55, %v62
    %vm64 = vcmask 261120
    %v66 = vsel %vm64, %v36, 0
    %v69 = vsel %vm64, %v37, 0
    %71 = vmatprep.subr.mxu0 0.0
    %72 = vmatpush1.msra.mxu0 0.0
    %73 = vmatprep.subr.mxu0 0.0
    %74 = vmatpush1.msra.mxu0 0.0
    %75 = vmatprep.subr.mxu0 0.0
    %76 = vmatpush1.msra.mxu0 0.0
    %77 = vmatprep.subr.mxu0 0.0
    %78 = vmatpush1.msra.mxu0 0.0
    %79 = vmatprep.subr.mxu0 0.0
    %80 = vmatpush1.msra.mxu0 0.0
    %81 = vmatprep.subr.mxu0 0.0
    %82 = vmatpush1.msra.mxu0 0.0
    %83 = vmatprep.subr.mxu0 0.0
    %84 = vmatpush1.msra.mxu0 0.0
    %85 = vmatprep.subr.mxu0 0.0
    %86 = vmatpush1.msra.mxu0 0.0
    %87 = vmatprep.subr.mxu0 0.0
    %88 = vmatpush1.msra.mxu0 0.0
    %89 = vmatprep.subr.mxu0 0.0
    %90 = vmatpush1.msra.mxu0 0.0
    %91 = vmatprep.subr.mxu0 0.0
    %92 = vmatpush1.msra.mxu0 0.0
    %93 = vmatprep.subr.mxu0 0.0
    %94 = vmatpush1.msra.mxu0 0.0
    %95 = vmatprep.subr.mxu0 0.0
    %96 = vmatpush1.msra.mxu0 %v50
    %97 = vmatprep.subr.mxu0 0.0
    %98 = vmatpush1.msra.mxu0 %v49
    %99 = vmatprep.subr.mxu0 0.0
    %100 = vmatpush1.msra.mxu0 %v48
    %101 = vmatprep.subr.mxu0 0.0
    %102 = vmatpush1.msra.mxu0 %v47
    %103 = vmatprep.subr.mxu0 0.0
    %104 = vmatpush2.msra.mxu0 0.0
    %105 = vmatprep.subr.mxu0 0.0
    %106 = vmatpush2.msra.mxu0 0.0
    %107 = vmatprep.subr.mxu0 0.0
    %108 = vmatpush2.msra.mxu0 0.0
    %109 = vmatprep.subr.mxu0 0.0
    %110 = vmatpush2.msra.mxu0 0.0
    %111 = vmatprep.subr.mxu0 0.0
    %112 = vmatpush2.msra.mxu0 0.0
    %113 = vmatprep.subr.mxu0 0.0
    %114 = vmatpush2.msra.mxu0 0.0
    %115 = vmatprep.subr.mxu0 0.0
    %116 = vmatpush2.msra.mxu0 0.0
    %117 = vmatprep.subr.mxu0 0.0
    %118 = vmatpush2.msra.mxu0 0.0
    %119 = vmatprep.subr.mxu0 0.0
    %120 = vmatpush2.msra.mxu0 0.0
    %121 = vmatprep.subr.mxu0 0.0
    %122 = vmatpush2.msra.mxu0 0.0
    %123 = vmatprep.subr.mxu0 0.0
    %124 = vmatpush2.msra.mxu0 0.0
    %125 = vmatprep.subr.mxu0 0.0
    %126 = vmatpush2.msra.mxu0 0.0
    %127 = vmatprep.subr.mxu0 0.0
    %128 = vmatpush2.msra.mxu0 0.0
    %129 = vmatprep.subr.mxu0 0.0
    %130 = vmatpush2.msra.mxu0 0.0
    %131 = vmatprep.subr.mxu0 0.0
    %132 = vmatpush2.msra.mxu0 0.0
    %133 = vmatprep.subr.mxu0 0.0
    %134 = vmatpush2.msra.mxu0 0.0
    %135 = vmatprep.mubr.f32.mxu0 0.0
    %136 = vmatmul.mubr.f32.gmra.mxu0 %v66
    %v137 = vpop.f32.mrf.mxu0
    %v138 = vadd.f32 %v63, %v137
    %v139 = vpop.f32.mrf.mxu0
    %140 = vmatprep.mubr.f32.mxu0 0.0
    %141 = vmatmul.mubr.f32.gmra.mxu0 %v69
    %v142 = vpop.f32.mrf.mxu0
    %v143 = vadd.f32 %v63, %v142
    %v144 = vpop.f32.mrf.mxu0
    %145 = vdwg.mxu0
    %146 = vst.msk [vmem:[#allocation2] sm:$0xff] %vm64, %v138
    %147 = vst.msk [vmem:[#allocation2 + $0x8] sm:$0xff] %vm64, %v143
    %v148 = vlaneseq
    %v149 = vshrl.u32 %v148, 7
    %v150 = vsub.s32 1, %v149
    %v151 = vrot.slane %v55, %v150
    %152 = vmatprep.subr.mxu0 0.0
    %153 = vmatpush1.msra.mxu0 0.0
    %154 = vmatprep.subr.mxu0 0.0
    %155 = vmatpush1.msra.mxu0 0.0
    %156 = vmatprep.subr.mxu0 0.0
    %157 = vmatpush1.msra.mxu0 0.0
    %158 = vmatprep.subr.mxu0 0.0
    %159 = vmatpush1.msra.mxu0 0.0
    %160 = vmatprep.subr.mxu0 0.0
    %161 = vmatpush1.msra.mxu0 0.0
    %162 = vmatprep.subr.mxu0 0.0
    %163 = vmatpush1.msra.mxu0 0.0
    %164 = vmatprep.subr.mxu0 0.0
    %165 = vmatpush1.msra.mxu0 0.0
    %166 = vmatprep.subr.mxu0 0.0
    %167 = vmatpush1.msra.mxu0 0.0
    %168 = vmatprep.subr.mxu0 0.0
    %169 = vmatpush1.msra.mxu0 0.0
    %170 = vmatprep.subr.mxu0 0.0
    %171 = vmatpush1.msra.mxu0 0.0
    %172 = vmatprep.subr.mxu0 0.0
    %173 = vmatpush1.msra.mxu0 0.0
    %174 = vmatprep.subr.mxu0 0.0
    %175 = vmatpush1.msra.mxu0 0.0
    %176 = vmatprep.subr.mxu0 0.0
    %177 = vmatpush1.msra.mxu0 %v54
    %178 = vmatprep.subr.mxu0 0.0
    %179 = vmatpush1.msra.mxu0 %v53
    %180 = vmatprep.subr.mxu0 0.0
    %181 = vmatpush1.msra.mxu0 %v52
    %182 = vmatprep.subr.mxu0 0.0
    %183 = vmatpush1.msra.mxu0 %v51
    %184 = vmatprep.subr.mxu0 0.0
    %185 = vmatpush2.msra.mxu0 0.0
    %186 = vmatprep.subr.mxu0 0.0
    %187 = vmatpush2.msra.mxu0 0.0
    %188 = vmatprep.subr.mxu0 0.0
    %189 = vmatpush2.msra.mxu0 0.0
    %190 = vmatprep.subr.mxu0 0.0
    %191 = vmatpush2.msra.mxu0 0.0
    %192 = vmatprep.subr.mxu0 0.0
    %193 = vmatpush2.msra.mxu0 0.0
    %194 = vmatprep.subr.mxu0 0.0
    %195 = vmatpush2.msra.mxu0 0.0
    %196 = vmatprep.subr.mxu0 0.0
    %197 = vmatpush2.msra.mxu0 0.0
    %198 = vmatprep.subr.mxu0 0.0
    %199 = vmatpush2.msra.mxu0 0.0
    %200 = vmatprep.subr.mxu0 0.0
    %201 = vmatpush2.msra.mxu0 0.0
    %202 = vmatprep.subr.mxu0 0.0
    %203 = vmatpush2.msra.mxu0 0.0
    %204 = vmatprep.subr.mxu0 0.0
    %205 = vmatpush2.msra.mxu0 0.0
    %206 = vmatprep.subr.mxu0 0.0
    %207 = vmatpush2.msra.mxu0 0.0
    %208 = vmatprep.subr.mxu0 0.0
    %209 = vmatpush2.msra.mxu0 0.0
    %210 = vmatprep.subr.mxu0 0.0
    %211 = vmatpush2.msra.mxu0 0.0
    %212 = vmatprep.subr.mxu0 0.0
    %213 = vmatpush2.msra.mxu0 0.0
    %214 = vmatprep.subr.mxu0 0.0
    %215 = vmatpush2.msra.mxu0 0.0
    %216 = vmatprep.mubr.f32.mxu0 0.0
    %217 = vmatmul.mubr.f32.gmra.mxu0 %v66
    %v218 = vpop.f32.mrf.mxu0
    %v219 = vadd.f32 %v151, %v218
    %v220 = vpop.f32.mrf.mxu0
    %221 = vmatprep.mubr.f32.mxu0 0.0
    %222 = vmatmul.mubr.f32.gmra.mxu0 %v69
    %v223 = vpop.f32.mrf.mxu0
    %v224 = vadd.f32 %v151, %v223
    %v225 = vpop.f32.mrf.mxu0
    %226 = vdwg.mxu0
    %227 = vst.msk [vmem:[#allocation3] sm:$0xff] %vm64, %v219
    %228 = vst.msk [vmem:[#allocation3 + $0x8] sm:$0xff] %vm64, %v224
    %229 = vmatprep.subr.mxu0 0.0
    %230 = vmatpush1.msra.mxu0 0.0
    %231 = vmatprep.subr.mxu0 0.0
    %232 = vmatpush1.msra.mxu0 0.0
    %233 = vmatprep.subr.mxu0 0.0
    %234 = vmatpush1.msra.mxu0 0.0
    %235 = vmatprep.subr.mxu0 0.0
    %236 = vmatpush1.msra.mxu0 0.0
    %237 = vmatprep.subr.mxu0 0.0
    %238 = vmatpush1.msra.mxu0 0.0
    %239 = vmatprep.subr.mxu0 0.0
    %240 = vmatpush1.msra.mxu0 0.0
    %241 = vmatprep.subr.mxu0 0.0
    %242 = vmatpush1.msra.mxu0 0.0
    %243 = vmatprep.subr.mxu0 0.0
    %244 = vmatpush1.msra.mxu0 0.0
    %245 = vmatprep.subr.mxu0 0.0
    %246 = vmatpush1.msra.mxu0 0.0
    %247 = vmatprep.subr.mxu0 0.0
    %248 = vmatpush1.msra.mxu0 0.0
    %249 = vmatprep.subr.mxu0 0.0
    %250 = vmatpush1.msra.mxu0 0.0
    %251 = vmatprep.subr.mxu0 0.0
    %252 = vmatpush1.msra.mxu0 0.0
    %253 = vmatprep.subr.mxu0 0.0
    %254 = vmatpush1.msra.mxu0 %v59
    %255 = vmatprep.subr.mxu0 0.0
    %256 = vmatpush1.msra.mxu0 %v58
    %257 = vmatprep.subr.mxu0 0.0
    %258 = vmatpush1.msra.mxu0 %v57
    %259 = vmatprep.subr.mxu0 0.0
    %260 = vmatpush1.msra.mxu0 %v56
    %261 = vmatprep.subr.mxu0 0.0
    %262 = vmatpush2.msra.mxu0 0.0
    %263 = vmatprep.subr.mxu0 0.0
    %264 = vmatpush2.msra.mxu0 0.0
    %265 = vmatprep.subr.mxu0 0.0
    %266 = vmatpush2.msra.mxu0 0.0
    %267 = vmatprep.subr.mxu0 0.0
    %268 = vmatpush2.msra.mxu0 0.0
    %269 = vmatprep.subr.mxu0 0.0
    %270 = vmatpush2.msra.mxu0 0.0
    %271 = vmatprep.subr.mxu0 0.0
    %272 = vmatpush2.msra.mxu0 0.0
    %273 = vmatprep.subr.mxu0 0.0
    %274 = vmatpush2.msra.mxu0 0.0
    %275 = vmatprep.subr.mxu0 0.0
    %276 = vmatpush2.msra.mxu0 0.0
    %277 = vmatprep.subr.mxu0 0.0
    %278 = vmatpush2.msra.mxu0 0.0
    %279 = vmatprep.subr.mxu0 0.0
    %280 = vmatpush2.msra.mxu0 0.0
    %281 = vmatprep.subr.mxu0 0.0
    %282 = vmatpush2.msra.mxu0 0.0
    %283 = vmatprep.subr.mxu0 0.0
    %284 = vmatpush2.msra.mxu0 0.0
    %285 = vmatprep.subr.mxu0 0.0
    %286 = vmatpush2.msra.mxu0 0.0
    %287 = vmatprep.subr.mxu0 0.0
    %288 = vmatpush2.msra.mxu0 0.0
    %289 = vmatprep.subr.mxu0 0.0
    %290 = vmatpush2.msra.mxu0 0.0
    %291 = vmatprep.subr.mxu0 0.0
    %292 = vmatpush2.msra.mxu0 0.0
    %293 = vmatprep.mubr.f32.mxu0 0.0
    %294 = vmatmul.mubr.f32.gmra.mxu0 %v66
    %v295 = vpop.f32.mrf.mxu0
    %v296 = vadd.f32 0.0, %v295
    %v297 = vpop.f32.mrf.mxu0
    %298 = vmatprep.mubr.f32.mxu0 0.0
    %299 = vmatmul.mubr.f32.gmra.mxu0 %v69
    %v300 = vpop.f32.mrf.mxu0
    %v301 = vadd.f32 0.0, %v300
    %v302 = vpop.f32.mrf.mxu0
    %303 = vdwg.mxu0
    %304 = vst [vmem:[#allocation4] sm:$0xff] %v296
    %305 = vst [vmem:[#allocation4 + $0x8] sm:$0xff] %v301
    %v306 = vld [vmem:[#allocation2] sm:$0xff]
    %v307 = vld [vmem:[#allocation3] sm:$0xff]
    %vm308 = vcmask 64512
    %v310 = vsel %vm308, %v306, 0
    %v313 = vsel %vm308, %v307, 0
    %315 = vmatprep.subr.mxu0 0.0
    %316 = vmatpush1.xpose.msra.mxu0 0.0
    %317 = vmatprep.subr.mxu0 0.0
    %318 = vmatpush1.xpose.msra.mxu0 0.0
    %319 = vmatprep.subr.mxu0 0.0
    %320 = vmatpush1.xpose.msra.mxu0 0.0
    %321 = vmatprep.subr.mxu0 0.0
    %322 = vmatpush1.xpose.msra.mxu0 0.0
    %323 = vmatprep.subr.mxu0 0.0
    %324 = vmatpush1.xpose.msra.mxu0 0.0
    %325 = vmatprep.subr.mxu0 0.0
    %326 = vmatpush1.xpose.msra.mxu0 0.0
    %327 = vmatprep.subr.mxu0 0.0
    %328 = vmatpush1.xpose.msra.mxu0 0.0
    %329 = vmatprep.subr.mxu0 0.0
    %330 = vmatpush1.xpose.msra.mxu0 0.0
    %331 = vmatprep.subr.mxu0 0.0
    %332 = vmatpush1.xpose.msra.mxu0 0.0
    %333 = vmatprep.subr.mxu0 0.0
    %334 = vmatpush1.xpose.msra.mxu0 0.0
    %335 = vmatprep.subr.mxu0 0.0
    %336 = vmatpush1.xpose.msra.mxu0 0.0
    %337 = vmatprep.subr.mxu0 0.0
    %338 = vmatpush1.xpose.msra.mxu0 0.0
    %339 = vmatprep.subr.mxu0 0.0
    %340 = vmatpush1.xpose.msra.mxu0 0.0
    %341 = vmatprep.subr.mxu0 0.0
    %342 = vmatpush1.xpose.msra.mxu0 0.0
    %343 = vmatprep.subr.mxu0 0.0
    %344 = vmatpush1.xpose.msra.mxu0 0.0
    %345 = vmatprep.subr.mxu0 0.0
    %346 = vmatpush1.xpose.msra.mxu0 %v313
    %347 = vmatprep.subr.mxu0 0.0
    %348 = vmatpush2.xpose.msra.mxu0 0.0
    %349 = vmatprep.subr.mxu0 0.0
    %350 = vmatpush2.xpose.msra.mxu0 0.0
    %351 = vmatprep.subr.mxu0 0.0
    %352 = vmatpush2.xpose.msra.mxu0 0.0
    %353 = vmatprep.subr.mxu0 0.0
    %354 = vmatpush2.xpose.msra.mxu0 0.0
    %355 = vmatprep.subr.mxu0 0.0
    %356 = vmatpush2.xpose.msra.mxu0 0.0
    %357 = vmatprep.subr.mxu0 0.0
    %358 = vmatpush2.xpose.msra.mxu0 0.0
    %359 = vmatprep.subr.mxu0 0.0
    %360 = vmatpush2.xpose.msra.mxu0 0.0
    %361 = vmatprep.subr.mxu0 0.0
    %362 = vmatpush2.xpose.msra.mxu0 0.0
    %363 = vmatprep.subr.mxu0 0.0
    %364 = vmatpush2.xpose.msra.mxu0 0.0
    %365 = vmatprep.subr.mxu0 0.0
    %366 = vmatpush2.xpose.msra.mxu0 0.0
    %367 = vmatprep.subr.mxu0 0.0
    %368 = vmatpush2.xpose.msra.mxu0 0.0
    %369 = vmatprep.subr.mxu0 0.0
    %370 = vmatpush2.xpose.msra.mxu0 0.0
    %371 = vmatprep.subr.mxu0 0.0
    %372 = vmatpush2.xpose.msra.mxu0 0.0
    %373 = vmatprep.subr.mxu0 0.0
    %374 = vmatpush2.xpose.msra.mxu0 0.0
    %375 = vmatprep.subr.mxu0 0.0
    %376 = vmatpush2.xpose.msra.mxu0 0.0
    %377 = vmatprep.subr.mxu0 0.0
    %378 = vmatpush2.xpose.msra.mxu0 0.0
    %379 = vmatprep.mubr.f32.mxu0 0.0
    %380 = vmatmul.mubr.f32.gmra.mxu0 %v310
    %v381 = vpop.f32.mrf.mxu0
    %v382 = vadd.f32 %v46, %v381
    %v383 = vpop.f32.mrf.mxu0
    %384 = vdwg.mxu0
    %v385 = vsel %vm308, %v382, -inf
    %386 = vmax.xlane.f32.xlu0 %v385
    %v387 = vpop.xlane.xlu0 %386
    %v388 = vsub.f32 %v382, %v387
    %v389 = vmul.f32 %v388, 1.442695
    %v390 = vpow.pop %v389
    %v391 = vsel %vm308, %v390, 0.0
    %392 = vadd.xlane.f32.xlu0 %v391
    %v393 = vpop.xlane.xlu0 %392
    %v394 = vrcp.pop %v393
    %v395 = vmul.f32 %v390, %v394
    %v396 = vld [vmem:[#allocation4] sm:$0xff]
    %397 = vrot.lane.b32.xlu0 %v306, 120
    %v398 = vpop.permute.xlu0 %397
    %399 = vrot.lane.b32.xlu0 %v307, 120
    %v400 = vpop.permute.xlu0 %399
    %v401 = vsel %vm308, %v398, 0
    %v403 = vsel %vm308, %v400, 0
    %405 = vmatprep.subr.mxu0 0.0
    %406 = vmatpush1.xpose.msra.mxu0 0.0
    %407 = vmatprep.subr.mxu0 0.0
    %408 = vmatpush1.xpose.msra.mxu0 0.0
    %409 = vmatprep.subr.mxu0 0.0
    %410 = vmatpush1.xpose.msra.mxu0 0.0
    %411 = vmatprep.subr.mxu0 0.0
    %412 = vmatpush1.xpose.msra.mxu0 0.0
    %413 = vmatprep.subr.mxu0 0.0
    %414 = vmatpush1.xpose.msra.mxu0 0.0
    %415 = vmatprep.subr.mxu0 0.0
    %416 = vmatpush1.xpose.msra.mxu0 0.0
    %417 = vmatprep.subr.mxu0 0.0
    %418 = vmatpush1.xpose.msra.mxu0 0.0
    %419 = vmatprep.subr.mxu0 0.0
    %420 = vmatpush1.xpose.msra.mxu0 0.0
    %421 = vmatprep.subr.mxu0 0.0
    %422 = vmatpush1.xpose.msra.mxu0 0.0
    %423 = vmatprep.subr.mxu0 0.0
    %424 = vmatpush1.xpose.msra.mxu0 0.0
    %425 = vmatprep.subr.mxu0 0.0
    %426 = vmatpush1.xpose.msra.mxu0 0.0
    %427 = vmatprep.subr.mxu0 0.0
    %428 = vmatpush1.xpose.msra.mxu0 0.0
    %429 = vmatprep.subr.mxu0 0.0
    %430 = vmatpush1.xpose.msra.mxu0 0.0
    %431 = vmatprep.subr.mxu0 0.0
    %432 = vmatpush1.xpose.msra.mxu0 0.0
    %433 = vmatprep.subr.mxu0 0.0
    %434 = vmatpush1.xpose.msra.mxu0 0.0
    %435 = vmatprep.subr.mxu0 0.0
    %436 = vmatpush1.xpose.msra.mxu0 %v403
    %437 = vmatprep.subr.mxu0 0.0
    %438 = vmatpush2.xpose.msra.mxu0 0.0
    %439 = vmatprep.subr.mxu0 0.0
    %440 = vmatpush2.xpose.msra.mxu0 0.0
    %441 = vmatprep.subr.mxu0 0.0
    %442 = vmatpush2.xpose.msra.mxu0 0.0
    %443 = vmatprep.subr.mxu0 0.0
    %444 = vmatpush2.xpose.msra.mxu0 0.0
    %445 = vmatprep.subr.mxu0 0.0
    %446 = vmatpush2.xpose.msra.mxu0 0.0
    %447 = vmatprep.subr.mxu0 0.0
    %448 = vmatpush2.xpose.msra.mxu0 0.0
    %449 = vmatprep.subr.mxu0 0.0
    %450 = vmatpush2.xpose.msra.mxu0 0.0
    %451 = vmatprep.subr.mxu0 0.0
    %452 = vmatpush2.xpose.msra.mxu0 0.0
    %453 = vmatprep.subr.mxu0 0.0
    %454 = vmatpush2.xpose.msra.mxu0 0.0
    %455 = vmatprep.subr.mxu0 0.0
    %456 = vmatpush2.xpose.msra.mxu0 0.0
    %457 = vmatprep.subr.mxu0 0.0
    %458 = vmatpush2.xpose.msra.mxu0 0.0
    %459 = vmatprep.subr.mxu0 0.0
    %460 = vmatpush2.xpose.msra.mxu0 0.0
    %461 = vmatprep.subr.mxu0 0.0
    %462 = vmatpush2.xpose.msra.mxu0 0.0
    %463 = vmatprep.subr.mxu0 0.0
    %464 = vmatpush2.xpose.msra.mxu0 0.0
    %465 = vmatprep.subr.mxu0 0.0
    %466 = vmatpush2.xpose.msra.mxu0 0.0
    %467 = vmatprep.subr.mxu0 0.0
    %468 = vmatpush2.xpose.msra.mxu0 0.0
    %469 = vmatprep.mubr.f32.mxu0 0.0
    %470 = vmatmul.mubr.f32.gmra.mxu0 %v401
    %v471 = vpop.f32.mrf.mxu0
    %v472 = vadd.f32 %v46, %v471
    %v473 = vpop.f32.mrf.mxu0
    %474 = vdwg.mxu0
    %v475 = vsel %vm308, %v472, -inf
    %476 = vmax.xlane.f32.xlu0 %v475
    %v477 = vpop.xlane.xlu0 %476
    %v478 = vsub.f32 %v472, %v477
    %v479 = vmul.f32 %v478, 1.442695
    %v480 = vpow.pop %v479
    %v481 = vsel %vm308, %v480, 0.0
    %482 = vadd.xlane.f32.xlu0 %v481
    %v483 = vpop.xlane.xlu0 %482
    %v484 = vrcp.pop %v483
    %v485 = vmul.f32 %v480, %v484
    %487 = vrot.lane.b32.xlu0 %v396, 96
    %v488 = vpop.permute.xlu0 %487
    %v491 = vsel %vm308, %v485, 0
    %493 = vmatprep.subr.mxu0 0.0
    %494 = vmatpush1.msra.mxu0 0.0
    %495 = vmatprep.subr.mxu0 0.0
    %496 = vmatpush1.msra.mxu0 0.0
    %497 = vmatprep.subr.mxu0 0.0
    %498 = vmatpush1.msra.mxu0 0.0
    %499 = vmatprep.subr.mxu0 0.0
    %500 = vmatpush1.msra.mxu0 0.0
    %501 = vmatprep.subr.mxu0 0.0
    %502 = vmatpush1.msra.mxu0 0.0
    %503 = vmatprep.subr.mxu0 0.0
    %504 = vmatpush1.msra.mxu0 0.0
    %505 = vmatprep.subr.mxu0 0.0
    %506 = vmatpush1.msra.mxu0 0.0
    %507 = vmatprep.subr.mxu0 0.0
    %508 = vmatpush1.msra.mxu0 0.0
    %509 = vmatprep.subr.mxu0 0.0
    %510 = vmatpush1.msra.mxu0 0.0
    %511 = vmatprep.subr.mxu0 0.0
    %512 = vmatpush1.msra.mxu0 0.0
    %513 = vmatprep.subr.mxu0 0.0
    %514 = vmatpush1.msra.mxu0 0.0
    %515 = vmatprep.subr.mxu0 0.0
    %516 = vmatpush1.msra.mxu0 0.0
    %517 = vmatprep.subr.mxu0 0.0
    %518 = vmatpush1.msra.mxu0 0.0
    %519 = vmatprep.subr.mxu0 0.0
    %520 = vmatpush1.msra.mxu0 0.0
    %521 = vmatprep.subr.mxu0 0.0
    %522 = vmatpush1.msra.mxu0 0.0
    %523 = vmatprep.subr.mxu0 0.0
    %524 = vmatpush1.msra.mxu0 %v488
    %525 = vmatprep.subr.mxu0 0.0
    %526 = vmatpush2.msra.mxu0 0.0
    %527 = vmatprep.subr.mxu0 0.0
    %528 = vmatpush2.msra.mxu0 0.0
    %529 = vmatprep.subr.mxu0 0.0
    %530 = vmatpush2.msra.mxu0 0.0
    %531 = vmatprep.subr.mxu0 0.0
    %532 = vmatpush2.msra.mxu0 0.0
    %533 = vmatprep.subr.mxu0 0.0
    %534 = vmatpush2.msra.mxu0 0.0
    %535 = vmatprep.subr.mxu0 0.0
    %536 = vmatpush2.msra.mxu0 0.0
    %537 = vmatprep.subr.mxu0 0.0
    %538 = vmatpush2.msra.mxu0 0.0
    %539 = vmatprep.subr.mxu0 0.0
    %540 = vmatpush2.msra.mxu0 0.0
    %541 = vmatprep.subr.mxu0 0.0
    %542 = vmatpush2.msra.mxu0 0.0
    %543 = vmatprep.subr.mxu0 0.0
    %544 = vmatpush2.msra.mxu0 0.0
    %545 = vmatprep.subr.mxu0 0.0
    %546 = vmatpush2.msra.mxu0 0.0
    %547 = vmatprep.subr.mxu0 0.0
    %548 = vmatpush2.msra.mxu0 0.0
    %549 = vmatprep.subr.mxu0 0.0
    %550 = vmatpush2.msra.mxu0 0.0
    %551 = vmatprep.subr.mxu0 0.0
    %552 = vmatpush2.msra.mxu0 0.0
    %553 = vmatprep.subr.mxu0 0.0
    %554 = vmatpush2.msra.mxu0 0.0
    %555 = vmatprep.subr.mxu0 0.0
    %556 = vmatpush2.msra.mxu0 0.0
    %557 = vmatprep.mubr.f32.mxu0 0.0
    %558 = vmatmul.mubr.f32.gmra.mxu0 %v491
    %v559 = vpop.f32.mrf.mxu0
    %v560 = vadd.f32 0.0, %v559
    %v561 = vpop.f32.mrf.mxu0
    %562 = vdwg.mxu0
    %v564 = vsel %vm308, %v395, 0
    %566 = vmatprep.subr.mxu0 0.0
    %567 = vmatpush1.msra.mxu0 0.0
    %568 = vmatprep.subr.mxu0 0.0
    %569 = vmatpush1.msra.mxu0 0.0
    %570 = vmatprep.subr.mxu0 0.0
    %571 = vmatpush1.msra.mxu0 0.0
    %572 = vmatprep.subr.mxu0 0.0
    %573 = vmatpush1.msra.mxu0 0.0
    %574 = vmatprep.subr.mxu0 0.0
    %575 = vmatpush1.msra.mxu0 0.0
    %576 = vmatprep.subr.mxu0 0.0
    %577 = vmatpush1.msra.mxu0 0.0
    %578 = vmatprep.subr.mxu0 0.0
    %579 = vmatpush1.msra.mxu0 0.0
    %580 = vmatprep.subr.mxu0 0.0
    %581 = vmatpush1.msra.mxu0 0.0
    %582 = vmatprep.subr.mxu0 0.0
    %583 = vmatpush1.msra.mxu0 0.0
    %584 = vmatprep.subr.mxu0 0.0
    %585 = vmatpush1.msra.mxu0 0.0
    %586 = vmatprep.subr.mxu0 0.0
    %587 = vmatpush1.msra.mxu0 0.0
    %588 = vmatprep.subr.mxu0 0.0
    %589 = vmatpush1.msra.mxu0 0.0
    %590 = vmatprep.subr.mxu0 0.0
    %591 = vmatpush1.msra.mxu0 0.0
    %592 = vmatprep.subr.mxu0 0.0
    %593 = vmatpush1.msra.mxu0 0.0
    %594 = vmatprep.subr.mxu0 0.0
    %595 = vmatpush1.msra.mxu0 0.0
    %596 = vmatprep.subr.mxu0 0.0
    %597 = vmatpush1.msra.mxu0 %v396
    %598 = vmatprep.subr.mxu0 0.0
    %599 = vmatpush2.msra.mxu0 0.0
    %600 = vmatprep.subr.mxu0 0.0
    %601 = vmatpush2.msra.mxu0 0.0
    %602 = vmatprep.subr.mxu0 0.0
    %603 = vmatpush2.msra.mxu0 0.0
    %604 = vmatprep.subr.mxu0 0.0
    %605 = vmatpush2.msra.mxu0 0.0
    %606 = vmatprep.subr.mxu0 0.0
    %607 = vmatpush2.msra.mxu0 0.0
    %608 = vmatprep.subr.mxu0 0.0
    %609 = vmatpush2.msra.mxu0 0.0
    %610 = vmatprep.subr.mxu0 0.0
    %611 = vmatpush2.msra.mxu0 0.0
    %612 = vmatprep.subr.mxu0 0.0
    %613 = vmatpush2.msra.mxu0 0.0
    %614 = vmatprep.subr.mxu0 0.0
    %615 = vmatpush2.msra.mxu0 0.0
    %616 = vmatprep.subr.mxu0 0.0
    %617 = vmatpush2.msra.mxu0 0.0
    %618 = vmatprep.subr.mxu0 0.0
    %619 = vmatpush2.msra.mxu0 0.0
    %620 = vmatprep.subr.mxu0 0.0
    %621 = vmatpush2.msra.mxu0 0.0
    %622 = vmatprep.subr.mxu0 0.0
    %623 = vmatpush2.msra.mxu0 0.0
    %624 = vmatprep.subr.mxu0 0.0
    %625 = vmatpush2.msra.mxu0 0.0
    %626 = vmatprep.subr.mxu0 0.0
    %627 = vmatpush2.msra.mxu0 0.0
    %628 = vmatprep.subr.mxu0 0.0
    %629 = vmatpush2.msra.mxu0 0.0
    %630 = vmatprep.mubr.f32.mxu0 0.0
    %631 = vmatmul.mubr.f32.gmra.mxu0 %v564
    %v632 = vpop.f32.mrf.mxu0
    %v633 = vadd.f32 %v560, %v632
    %v634 = vpop.f32.mrf.mxu0
    %635 = vdwg.mxu0
    %636 = vrot.lane.b32.xlu0 %v306, 112
    %v637 = vpop.permute.xlu0 %636
    %638 = vrot.lane.b32.xlu0 %v307, 112
    %v639 = vpop.permute.xlu0 %638
    %v640 = vsel %vm308, %v637, 0
    %v642 = vsel %vm308, %v639, 0
    %644 = vmatprep.subr.mxu0 0.0
    %645 = vmatpush1.xpose.msra.mxu0 0.0
    %646 = vmatprep.subr.mxu0 0.0
    %647 = vmatpush1.xpose.msra.mxu0 0.0
    %648 = vmatprep.subr.mxu0 0.0
    %649 = vmatpush1.xpose.msra.mxu0 0.0
    %650 = vmatprep.subr.mxu0 0.0
    %651 = vmatpush1.xpose.msra.mxu0 0.0
    %652 = vmatprep.subr.mxu0 0.0
    %653 = vmatpush1.xpose.msra.mxu0 0.0
    %654 = vmatprep.subr.mxu0 0.0
    %655 = vmatpush1.xpose.msra.mxu0 0.0
    %656 = vmatprep.subr.mxu0 0.0
    %657 = vmatpush1.xpose.msra.mxu0 0.0
    %658 = vmatprep.subr.mxu0 0.0
    %659 = vmatpush1.xpose.msra.mxu0 0.0
    %660 = vmatprep.subr.mxu0 0.0
    %661 = vmatpush1.xpose.msra.mxu0 0.0
    %662 = vmatprep.subr.mxu0 0.0
    %663 = vmatpush1.xpose.msra.mxu0 0.0
    %664 = vmatprep.subr.mxu0 0.0
    %665 = vmatpush1.xpose.msra.mxu0 0.0
    %666 = vmatprep.subr.mxu0 0.0
    %667 = vmatpush1.xpose.msra.mxu0 0.0
    %668 = vmatprep.subr.mxu0 0.0
    %669 = vmatpush1.xpose.msra.mxu0 0.0
    %670 = vmatprep.subr.mxu0 0.0
    %671 = vmatpush1.xpose.msra.mxu0 0.0
    %672 = vmatprep.subr.mxu0 0.0
    %673 = vmatpush1.xpose.msra.mxu0 0.0
    %674 = vmatprep.subr.mxu0 0.0
    %675 = vmatpush1.xpose.msra.mxu0 %v642
    %676 = vmatprep.subr.mxu0 0.0
    %677 = vmatpush2.xpose.msra.mxu0 0.0
    %678 = vmatprep.subr.mxu0 0.0
    %679 = vmatpush2.xpose.msra.mxu0 0.0
    %680 = vmatprep.subr.mxu0 0.0
    %681 = vmatpush2.xpose.msra.mxu0 0.0
    %682 = vmatprep.subr.mxu0 0.0
    %683 = vmatpush2.xpose.msra.mxu0 0.0
    %684 = vmatprep.subr.mxu0 0.0
    %685 = vmatpush2.xpose.msra.mxu0 0.0
    %686 = vmatprep.subr.mxu0 0.0
    %687 = vmatpush2.xpose.msra.mxu0 0.0
    %688 = vmatprep.subr.mxu0 0.0
    %689 = vmatpush2.xpose.msra.mxu0 0.0
    %690 = vmatprep.subr.mxu0 0.0
    %691 = vmatpush2.xpose.msra.mxu0 0.0
    %692 = vmatprep.subr.mxu0 0.0
    %693 = vmatpush2.xpose.msra.mxu0 0.0
    %694 = vmatprep.subr.mxu0 0.0
    %695 = vmatpush2.xpose.msra.mxu0 0.0
    %696 = vmatprep.subr.mxu0 0.0
    %697 = vmatpush2.xpose.msra.mxu0 0.0
    %698 = vmatprep.subr.mxu0 0.0
    %699 = vmatpush2.xpose.msra.mxu0 0.0
    %700 = vmatprep.subr.mxu0 0.0
    %701 = vmatpush2.xpose.msra.mxu0 0.0
    %702 = vmatprep.subr.mxu0 0.0
    %703 = vmatpush2.xpose.msra.mxu0 0.0
    %704 = vmatprep.subr.mxu0 0.0
    %705 = vmatpush2.xpose.msra.mxu0 0.0
    %706 = vmatprep.subr.mxu0 0.0
    %707 = vmatpush2.xpose.msra.mxu0 0.0
    %708 = vmatprep.mubr.f32.mxu0 0.0
    %709 = vmatmul.mubr.f32.gmra.mxu0 %v640
    %v710 = vpop.f32.mrf.mxu0
    %v711 = vadd.f32 %v46, %v710
    %v712 = vpop.f32.mrf.mxu0
    %713 = vdwg.mxu0
    %v714 = vsel %vm308, %v711, -inf
    %715 = vmax.xlane.f32.xlu0 %v714
    %v716 = vpop.xlane.xlu0 %715
    %v717 = vsub.f32 %v711, %v716
    %v718 = vmul.f32 %v717, 1.442695
    %v719 = vpow.pop %v718
    %v720 = vsel %vm308, %v719, 0.0
    %721 = vadd.xlane.f32.xlu0 %v720
    %v722 = vpop.xlane.xlu0 %721
    %v723 = vrcp.pop %v722
    %v724 = vmul.f32 %v719, %v723
    %725 = vrot.lane.b32.xlu0 %v396, 64
    %v726 = vpop.permute.xlu0 %725
    %v729 = vsel %vm308, %v724, 0
    %731 = vmatprep.subr.mxu0 0.0
    %732 = vmatpush1.msra.mxu0 0.0
    %733 = vmatprep.subr.mxu0 0.0
    %734 = vmatpush1.msra.mxu0 0.0
    %735 = vmatprep.subr.mxu0 0.0
    %736 = vmatpush1.msra.mxu0 0.0
    %737 = vmatprep.subr.mxu0 0.0
    %738 = vmatpush1.msra.mxu0 0.0
    %739 = vmatprep.subr.mxu0 0.0
    %740 = vmatpush1.msra.mxu0 0.0
    %741 = vmatprep.subr.mxu0 0.0
    %742 = vmatpush1.msra.mxu0 0.0
    %743 = vmatprep.subr.mxu0 0.0
    %744 = vmatpush1.msra.mxu0 0.0
    %745 = vmatprep.subr.mxu0 0.0
    %746 = vmatpush1.msra.mxu0 0.0
    %747 = vmatprep.subr.mxu0 0.0
    %748 = vmatpush1.msra.mxu0 0.0
    %749 = vmatprep.subr.mxu0 0.0
    %750 = vmatpush1.msra.mxu0 0.0
    %751 = vmatprep.subr.mxu0 0.0
    %752 = vmatpush1.msra.mxu0 0.0
    %753 = vmatprep.subr.mxu0 0.0
    %754 = vmatpush1.msra.mxu0 0.0
    %755 = vmatprep.subr.mxu0 0.0
    %756 = vmatpush1.msra.mxu0 0.0
    %757 = vmatprep.subr.mxu0 0.0
    %758 = vmatpush1.msra.mxu0 0.0
    %759 = vmatprep.subr.mxu0 0.0
    %760 = vmatpush1.msra.mxu0 0.0
    %761 = vmatprep.subr.mxu0 0.0
    %762 = vmatpush1.msra.mxu0 %v726
    %763 = vmatprep.subr.mxu0 0.0
    %764 = vmatpush2.msra.mxu0 0.0
    %765 = vmatprep.subr.mxu0 0.0
    %766 = vmatpush2.msra.mxu0 0.0
    %767 = vmatprep.subr.mxu0 0.0
    %768 = vmatpush2.msra.mxu0 0.0
    %769 = vmatprep.subr.mxu0 0.0
    %770 = vmatpush2.msra.mxu0 0.0
    %771 = vmatprep.subr.mxu0 0.0
    %772 = vmatpush2.msra.mxu0 0.0
    %773 = vmatprep.subr.mxu0 0.0
    %774 = vmatpush2.msra.mxu0 0.0
    %775 = vmatprep.subr.mxu0 0.0
    %776 = vmatpush2.msra.mxu0 0.0
    %777 = vmatprep.subr.mxu0 0.0
    %778 = vmatpush2.msra.mxu0 0.0
    %779 = vmatprep.subr.mxu0 0.0
    %780 = vmatpush2.msra.mxu0 0.0
    %781 = vmatprep.subr.mxu0 0.0
    %782 = vmatpush2.msra.mxu0 0.0
    %783 = vmatprep.subr.mxu0 0.0
    %784 = vmatpush2.msra.mxu0 0.0
    %785 = vmatprep.subr.mxu0 0.0
    %786 = vmatpush2.msra.mxu0 0.0
    %787 = vmatprep.subr.mxu0 0.0
    %788 = vmatpush2.msra.mxu0 0.0
    %789 = vmatprep.subr.mxu0 0.0
    %790 = vmatpush2.msra.mxu0 0.0
    %791 = vmatprep.subr.mxu0 0.0
    %792 = vmatpush2.msra.mxu0 0.0
    %793 = vmatprep.subr.mxu0 0.0
    %794 = vmatpush2.msra.mxu0 0.0
    %795 = vmatprep.mubr.f32.mxu0 0.0
    %796 = vmatmul.mubr.f32.gmra.mxu0 %v729
    %v797 = vpop.f32.mrf.mxu0
    %v798 = vadd.f32 0.0, %v797
    %v799 = vpop.f32.mrf.mxu0
    %800 = vdwg.mxu0
    %v801 = vadd.f32 %v633, %v798
    %802 = vrot.lane.b32.xlu0 %v306, 104
    %v803 = vpop.permute.xlu0 %802
    %804 = vrot.lane.b32.xlu0 %v307, 104
    %v805 = vpop.permute.xlu0 %804
    %v806 = vsel %vm308, %v803, 0
    %v808 = vsel %vm308, %v805, 0
    %810 = vmatprep.subr.mxu0 0.0
    %811 = vmatpush1.xpose.msra.mxu0 0.0
    %812 = vmatprep.subr.mxu0 0.0
    %813 = vmatpush1.xpose.msra.mxu0 0.0
    %814 = vmatprep.subr.mxu0 0.0
    %815 = vmatpush1.xpose.msra.mxu0 0.0
    %816 = vmatprep.subr.mxu0 0.0
    %817 = vmatpush1.xpose.msra.mxu0 0.0
    %818 = vmatprep.subr.mxu0 0.0
    %819 = vmatpush1.xpose.msra.mxu0 0.0
    %820 = vmatprep.subr.mxu0 0.0
    %821 = vmatpush1.xpose.msra.mxu0 0.0
    %822 = vmatprep.subr.mxu0 0.0
    %823 = vmatpush1.xpose.msra.mxu0 0.0
    %824 = vmatprep.subr.mxu0 0.0
    %825 = vmatpush1.xpose.msra.mxu0 0.0
    %826 = vmatprep.subr.mxu0 0.0
    %827 = vmatpush1.xpose.msra.mxu0 0.0
    %828 = vmatprep.subr.mxu0 0.0
    %829 = vmatpush1.xpose.msra.mxu0 0.0
    %830 = vmatprep.subr.mxu0 0.0
    %831 = vmatpush1.xpose.msra.mxu0 0.0
    %832 = vmatprep.subr.mxu0 0.0
    %833 = vmatpush1.xpose.msra.mxu0 0.0
    %834 = vmatprep.subr.mxu0 0.0
    %835 = vmatpush1.xpose.msra.mxu0 0.0
    %836 = vmatprep.subr.mxu0 0.0
    %837 = vmatpush1.xpose.msra.mxu0 0.0
    %838 = vmatprep.subr.mxu0 0.0
    %839 = vmatpush1.xpose.msra.mxu0 0.0
    %840 = vmatprep.subr.mxu0 0.0
    %841 = vmatpush1.xpose.msra.mxu0 %v808
    %842 = vmatprep.subr.mxu0 0.0
    %843 = vmatpush2.xpose.msra.mxu0 0.0
    %844 = vmatprep.subr.mxu0 0.0
    %845 = vmatpush2.xpose.msra.mxu0 0.0
    %846 = vmatprep.subr.mxu0 0.0
    %847 = vmatpush2.xpose.msra.mxu0 0.0
    %848 = vmatprep.subr.mxu0 0.0
    %849 = vmatpush2.xpose.msra.mxu0 0.0
    %850 = vmatprep.subr.mxu0 0.0
    %851 = vmatpush2.xpose.msra.mxu0 0.0
    %852 = vmatprep.subr.mxu0 0.0
    %853 = vmatpush2.xpose.msra.mxu0 0.0
    %854 = vmatprep.subr.mxu0 0.0
    %855 = vmatpush2.xpose.msra.mxu0 0.0
    %856 = vmatprep.subr.mxu0 0.0
    %857 = vmatpush2.xpose.msra.mxu0 0.0
    %858 = vmatprep.subr.mxu0 0.0
    %859 = vmatpush2.xpose.msra.mxu0 0.0
    %860 = vmatprep.subr.mxu0 0.0
    %861 = vmatpush2.xpose.msra.mxu0 0.0
    %862 = vmatprep.subr.mxu0 0.0
    %863 = vmatpush2.xpose.msra.mxu0 0.0
    %864 = vmatprep.subr.mxu0 0.0
    %865 = vmatpush2.xpose.msra.mxu0 0.0
    %866 = vmatprep.subr.mxu0 0.0
    %867 = vmatpush2.xpose.msra.mxu0 0.0
    %868 = vmatprep.subr.mxu0 0.0
    %869 = vmatpush2.xpose.msra.mxu0 0.0
    %870 = vmatprep.subr.mxu0 0.0
    %871 = vmatpush2.xpose.msra.mxu0 0.0
    %872 = vmatprep.subr.mxu0 0.0
    %873 = vmatpush2.xpose.msra.mxu0 0.0
    %874 = vmatprep.mubr.f32.mxu0 0.0
    %875 = vmatmul.mubr.f32.gmra.mxu0 %v806
    %v876 = vpop.f32.mrf.mxu0
    %v877 = vadd.f32 %v46, %v876
    %v878 = vpop.f32.mrf.mxu0
    %879 = vdwg.mxu0
    %v880 = vsel %vm308, %v877, -inf
    %881 = vmax.xlane.f32.xlu0 %v880
    %v882 = vpop.xlane.xlu0 %881
    %v883 = vsub.f32 %v877, %v882
    %v884 = vmul.f32 %v883, 1.442695
    %v885 = vpow.pop %v884
    %v886 = vsel %vm308, %v885, 0.0
    %887 = vadd.xlane.f32.xlu0 %v886
    %v888 = vpop.xlane.xlu0 %887
    %v889 = vrcp.pop %v888
    %v890 = vmul.f32 %v885, %v889
    %891 = vrot.lane.b32.xlu0 %v396, 32
    %v892 = vpop.permute.xlu0 %891
    %v895 = vsel %vm308, %v890, 0
    %897 = vmatprep.subr.mxu0 0.0
    %898 = vmatpush1.msra.mxu0 0.0
    %899 = vmatprep.subr.mxu0 0.0
    %900 = vmatpush1.msra.mxu0 0.0
    %901 = vmatprep.subr.mxu0 0.0
    %902 = vmatpush1.msra.mxu0 0.0
    %903 = vmatprep.subr.mxu0 0.0
    %904 = vmatpush1.msra.mxu0 0.0
    %905 = vmatprep.subr.mxu0 0.0
    %906 = vmatpush1.msra.mxu0 0.0
    %907 = vmatprep.subr.mxu0 0.0
    %908 = vmatpush1.msra.mxu0 0.0
    %909 = vmatprep.subr.mxu0 0.0
    %910 = vmatpush1.msra.mxu0 0.0
    %911 = vmatprep.subr.mxu0 0.0
    %912 = vmatpush1.msra.mxu0 0.0
    %913 = vmatprep.subr.mxu0 0.0
    %914 = vmatpush1.msra.mxu0 0.0
    %915 = vmatprep.subr.mxu0 0.0
    %916 = vmatpush1.msra.mxu0 0.0
    %917 = vmatprep.subr.mxu0 0.0
    %918 = vmatpush1.msra.mxu0 0.0
    %919 = vmatprep.subr.mxu0 0.0
    %920 = vmatpush1.msra.mxu0 0.0
    %921 = vmatprep.subr.mxu0 0.0
    %922 = vmatpush1.msra.mxu0 0.0
    %923 = vmatprep.subr.mxu0 0.0
    %924 = vmatpush1.msra.mxu0 0.0
    %925 = vmatprep.subr.mxu0 0.0
    %926 = vmatpush1.msra.mxu0 0.0
    %927 = vmatprep.subr.mxu0 0.0
    %928 = vmatpush1.msra.mxu0 %v892
    %929 = vmatprep.subr.mxu0 0.0
    %930 = vmatpush2.msra.mxu0 0.0
    %931 = vmatprep.subr.mxu0 0.0
    %932 = vmatpush2.msra.mxu0 0.0
    %933 = vmatprep.subr.mxu0 0.0
    %934 = vmatpush2.msra.mxu0 0.0
    %935 = vmatprep.subr.mxu0 0.0
    %936 = vmatpush2.msra.mxu0 0.0
    %937 = vmatprep.subr.mxu0 0.0
    %938 = vmatpush2.msra.mxu0 0.0
    %939 = vmatprep.subr.mxu0 0.0
    %940 = vmatpush2.msra.mxu0 0.0
    %941 = vmatprep.subr.mxu0 0.0
    %942 = vmatpush2.msra.mxu0 0.0
    %943 = vmatprep.subr.mxu0 0.0
    %944 = vmatpush2.msra.mxu0 0.0
    %945 = vmatprep.subr.mxu0 0.0
    %946 = vmatpush2.msra.mxu0 0.0
    %947 = vmatprep.subr.mxu0 0.0
    %948 = vmatpush2.msra.mxu0 0.0
    %949 = vmatprep.subr.mxu0 0.0
    %950 = vmatpush2.msra.mxu0 0.0
    %951 = vmatprep.subr.mxu0 0.0
    %952 = vmatpush2.msra.mxu0 0.0
    %953 = vmatprep.subr.mxu0 0.0
    %954 = vmatpush2.msra.mxu0 0.0
    %955 = vmatprep.subr.mxu0 0.0
    %956 = vmatpush2.msra.mxu0 0.0
    %957 = vmatprep.subr.mxu0 0.0
    %958 = vmatpush2.msra.mxu0 0.0
    %959 = vmatprep.subr.mxu0 0.0
    %960 = vmatpush2.msra.mxu0 0.0
    %961 = vmatprep.mubr.f32.mxu0 0.0
    %962 = vmatmul.mubr.f32.gmra.mxu0 %v895
    %v963 = vpop.f32.mrf.mxu0
    %v964 = vadd.f32 0.0, %v963
    %v965 = vpop.f32.mrf.mxu0
    %966 = vdwg.mxu0
    %v967 = vadd.f32 %v801, %v964
    %v968 = vlaneseq
    %v969 = vshrl.u32 %v968, 7
    %v970 = vsub.s32 2, %v969
    %v971 = vrot.slane %v55, %v970
    %v972 = vadd.f32 %v967, %v971
    %973 = vst.msk [vmem:[#allocation5] sm:$0xff] %vm64, %v972
    %v974 = vld [vmem:[#allocation2 + $0x8] sm:$0xff]
    %v975 = vld [vmem:[#allocation3 + $0x8] sm:$0xff]
    %v977 = vsel %vm308, %v974, 0
    %v980 = vsel %vm308, %v975, 0
    %982 = vmatprep.subr.mxu0 0.0
    %983 = vmatpush1.xpose.msra.mxu0 0.0
    %984 = vmatprep.subr.mxu0 0.0
    %985 = vmatpush1.xpose.msra.mxu0 0.0
    %986 = vmatprep.subr.mxu0 0.0
    %987 = vmatpush1.xpose.msra.mxu0 0.0
    %988 = vmatprep.subr.mxu0 0.0
    %989 = vmatpush1.xpose.msra.mxu0 0.0
    %990 = vmatprep.subr.mxu0 0.0
    %991 = vmatpush1.xpose.msra.mxu0 0.0
    %992 = vmatprep.subr.mxu0 0.0
    %993 = vmatpush1.xpose.msra.mxu0 0.0
    %994 = vmatprep.subr.mxu0 0.0
    %995 = vmatpush1.xpose.msra.mxu0 0.0
    %996 = vmatprep.subr.mxu0 0.0
    %997 = vmatpush1.xpose.msra.mxu0 0.0
    %998 = vmatprep.subr.mxu0 0.0
    %999 = vmatpush1.xpose.msra.mxu0 0.0
    %1000 = vmatprep.subr.mxu0 0.0
    %1001 = vmatpush1.xpose.msra.mxu0 0.0
    %1002 = vmatprep.subr.mxu0 0.0
    %1003 = vmatpush1.xpose.msra.mxu0 0.0
    %1004 = vmatprep.subr.mxu0 0.0
    %1005 = vmatpush1.xpose.msra.mxu0 0.0
    %1006 = vmatprep.subr.mxu0 0.0
    %1007 = vmatpush1.xpose.msra.mxu0 0.0
    %1008 = vmatprep.subr.mxu0 0.0
    %1009 = vmatpush1.xpose.msra.mxu0 0.0
    %1010 = vmatprep.subr.mxu0 0.0
    %1011 = vmatpush1.xpose.msra.mxu0 0.0
    %1012 = vmatprep.subr.mxu0 0.0
    %1013 = vmatpush1.xpose.msra.mxu0 %v980
    %1014 = vmatprep.subr.mxu0 0.0
    %1015 = vmatpush2.xpose.msra.mxu0 0.0
    %1016 = vmatprep.subr.mxu0 0.0
    %1017 = vmatpush2.xpose.msra.mxu0 0.0
    %1018 = vmatprep.subr.mxu0 0.0
    %1019 = vmatpush2.xpose.msra.mxu0 0.0
    %1020 = vmatprep.subr.mxu0 0.0
    %1021 = vmatpush2.xpose.msra.mxu0 0.0
    %1022 = vmatprep.subr.mxu0 0.0
    %1023 = vmatpush2.xpose.msra.mxu0 0.0
    %1024 = vmatprep.subr.mxu0 0.0
    %1025 = vmatpush2.xpose.msra.mxu0 0.0
    %1026 = vmatprep.subr.mxu0 0.0
    %1027 = vmatpush2.xpose.msra.mxu0 0.0
    %1028 = vmatprep.subr.mxu0 0.0
    %1029 = vmatpush2.xpose.msra.mxu0 0.0
    %1030 = vmatprep.subr.mxu0 0.0
    %1031 = vmatpush2.xpose.msra.mxu0 0.0
    %1032 = vmatprep.subr.mxu0 0.0
    %1033 = vmatpush2.xpose.msra.mxu0 0.0
    %1034 = vmatprep.subr.mxu0 0.0
    %1035 = vmatpush2.xpose.msra.mxu0 0.0
    %1036 = vmatprep.subr.mxu0 0.0
    %1037 = vmatpush2.xpose.msra.mxu0 0.0
    %1038 = vmatprep.subr.mxu0 0.0
    %1039 = vmatpush2.xpose.msra.mxu0 0.0
    %1040 = vmatprep.subr.mxu0 0.0
    %1041 = vmatpush2.xpose.msra.mxu0 0.0
    %1042 = vmatprep.subr.mxu0 0.0
    %1043 = vmatpush2.xpose.msra.mxu0 0.0
    %1044 = vmatprep.subr.mxu0 0.0
    %1045 = vmatpush2.xpose.msra.mxu0 0.0
    %1046 = vmatprep.mubr.f32.mxu0 0.0
    %1047 = vmatmul.mubr.f32.gmra.mxu0 %v977
    %v1048 = vpop.f32.mrf.mxu0
    %v1049 = vadd.f32 %v46, %v1048
    %v1050 = vpop.f32.mrf.mxu0
    %1051 = vdwg.mxu0
    %v1052 = vsel %vm308, %v1049, -inf
    %1053 = vmax.xlane.f32.xlu0 %v1052
    %v1054 = vpop.xlane.xlu0 %1053
    %v1055 = vsub.f32 %v1049, %v1054
    %v1056 = vmul.f32 %v1055, 1.442695
    %v1057 = vpow.pop %v1056
    %v1058 = vsel %vm308, %v1057, 0.0
    %1059 = vadd.xlane.f32.xlu0 %v1058
    %v1060 = vpop.xlane.xlu0 %1059
    %v1061 = vrcp.pop %v1060
    %v1062 = vmul.f32 %v1057, %v1061
    %v1063 = vld [vmem:[#allocation4 + $0x8] sm:$0xff]
    %1064 = vrot.lane.b32.xlu0 %v974, 120
    %v1065 = vpop.permute.xlu0 %1064
    %1066 = vrot.lane.b32.xlu0 %v975, 120
    %v1067 = vpop.permute.xlu0 %1066
    %v1068 = vsel %vm308, %v1065, 0
    %v1070 = vsel %vm308, %v1067, 0
    %1072 = vmatprep.subr.mxu0 0.0
    %1073 = vmatpush1.xpose.msra.mxu0 0.0
    %1074 = vmatprep.subr.mxu0 0.0
    %1075 = vmatpush1.xpose.msra.mxu0 0.0
    %1076 = vmatprep.subr.mxu0 0.0
    %1077 = vmatpush1.xpose.msra.mxu0 0.0
    %1078 = vmatprep.subr.mxu0 0.0
    %1079 = vmatpush1.xpose.msra.mxu0 0.0
    %1080 = vmatprep.subr.mxu0 0.0
    %1081 = vmatpush1.xpose.msra.mxu0 0.0
    %1082 = vmatprep.subr.mxu0 0.0
    %1083 = vmatpush1.xpose.msra.mxu0 0.0
    %1084 = vmatprep.subr.mxu0 0.0
    %1085 = vmatpush1.xpose.msra.mxu0 0.0
    %1086 = vmatprep.subr.mxu0 0.0
    %1087 = vmatpush1.xpose.msra.mxu0 0.0
    %1088 = vmatprep.subr.mxu0 0.0
    %1089 = vmatpush1.xpose.msra.mxu0 0.0
    %1090 = vmatprep.subr.mxu0 0.0
    %1091 = vmatpush1.xpose.msra.mxu0 0.0
    %1092 = vmatprep.subr.mxu0 0.0
    %1093 = vmatpush1.xpose.msra.mxu0 0.0
    %1094 = vmatprep.subr.mxu0 0.0
    %1095 = vmatpush1.xpose.msra.mxu0 0.0
    %1096 = vmatprep.subr.mxu0 0.0
    %1097 = vmatpush1.xpose.msra.mxu0 0.0
    %1098 = vmatprep.subr.mxu0 0.0
    %1099 = vmatpush1.xpose.msra.mxu0 0.0
    %1100 = vmatprep.subr.mxu0 0.0
    %1101 = vmatpush1.xpose.msra.mxu0 0.0
    %1102 = vmatprep.subr.mxu0 0.0
    %1103 = vmatpush1.xpose.msra.mxu0 %v1070
    %1104 = vmatprep.subr.mxu0 0.0
    %1105 = vmatpush2.xpose.msra.mxu0 0.0
    %1106 = vmatprep.subr.mxu0 0.0
    %1107 = vmatpush2.xpose.msra.mxu0 0.0
    %1108 = vmatprep.subr.mxu0 0.0
    %1109 = vmatpush2.xpose.msra.mxu0 0.0
    %1110 = vmatprep.subr.mxu0 0.0
    %1111 = vmatpush2.xpose.msra.mxu0 0.0
    %1112 = vmatprep.subr.mxu0 0.0
    %1113 = vmatpush2.xpose.msra.mxu0 0.0
    %1114 = vmatprep.subr.mxu0 0.0
    %1115 = vmatpush2.xpose.msra.mxu0 0.0
    %1116 = vmatprep.subr.mxu0 0.0
    %1117 = vmatpush2.xpose.msra.mxu0 0.0
    %1118 = vmatprep.subr.mxu0 0.0
    %1119 = vmatpush2.xpose.msra.mxu0 0.0
    %1120 = vmatprep.subr.mxu0 0.0
    %1121 = vmatpush2.xpose.msra.mxu0 0.0
    %1122 = vmatprep.subr.mxu0 0.0
    %1123 = vmatpush2.xpose.msra.mxu0 0.0
    %1124 = vmatprep.subr.mxu0 0.0
    %1125 = vmatpush2.xpose.msra.mxu0 0.0
    %1126 = vmatprep.subr.mxu0 0.0
    %1127 = vmatpush2.xpose.msra.mxu0 0.0
    %1128 = vmatprep.subr.mxu0 0.0
    %1129 = vmatpush2.xpose.msra.mxu0 0.0
    %1130 = vmatprep.subr.mxu0 0.0
    %1131 = vmatpush2.xpose.msra.mxu0 0.0
    %1132 = vmatprep.subr.mxu0 0.0
    %1133 = vmatpush2.xpose.msra.mxu0 0.0
    %1134 = vmatprep.subr.mxu0 0.0
    %1135 = vmatpush2.xpose.msra.mxu0 0.0
    %1136 = vmatprep.mubr.f32.mxu0 0.0
    %1137 = vmatmul.mubr.f32.gmra.mxu0 %v1068
    %v1138 = vpop.f32.mrf.mxu0
    %v1139 = vadd.f32 %v46, %v1138
    %v1140 = vpop.f32.mrf.mxu0
    %1141 = vdwg.mxu0
    %v1142 = vsel %vm308, %v1139, -inf
    %1143 = vmax.xlane.f32.xlu0 %v1142
    %v1144 = vpop.xlane.xlu0 %1143
    %v1145 = vsub.f32 %v1139, %v1144
    %v1146 = vmul.f32 %v1145, 1.442695
    %v1147 = vpow.pop %v1146
    %v1148 = vsel %vm308, %v1147, 0.0
    %1149 = vadd.xlane.f32.xlu0 %v1148
    %v1150 = vpop.xlane.xlu0 %1149
    %v1151 = vrcp.pop %v1150
    %v1152 = vmul.f32 %v1147, %v1151
    %1154 = vrot.lane.b32.xlu0 %v1063, 96
    %v1155 = vpop.permute.xlu0 %1154
    %v1158 = vsel %vm308, %v1152, 0
    %1160 = vmatprep.subr.mxu0 0.0
    %1161 = vmatpush1.msra.mxu0 0.0
    %1162 = vmatprep.subr.mxu0 0.0
    %1163 = vmatpush1.msra.mxu0 0.0
    %1164 = vmatprep.subr.mxu0 0.0
    %1165 = vmatpush1.msra.mxu0 0.0
    %1166 = vmatprep.subr.mxu0 0.0
    %1167 = vmatpush1.msra.mxu0 0.0
    %1168 = vmatprep.subr.mxu0 0.0
    %1169 = vmatpush1.msra.mxu0 0.0
    %1170 = vmatprep.subr.mxu0 0.0
    %1171 = vmatpush1.msra.mxu0 0.0
    %1172 = vmatprep.subr.mxu0 0.0
    %1173 = vmatpush1.msra.mxu0 0.0
    %1174 = vmatprep.subr.mxu0 0.0
    %1175 = vmatpush1.msra.mxu0 0.0
    %1176 = vmatprep.subr.mxu0 0.0
    %1177 = vmatpush1.msra.mxu0 0.0
    %1178 = vmatprep.subr.mxu0 0.0
    %1179 = vmatpush1.msra.mxu0 0.0
    %1180 = vmatprep.subr.mxu0 0.0
    %1181 = vmatpush1.msra.mxu0 0.0
    %1182 = vmatprep.subr.mxu0 0.0
    %1183 = vmatpush1.msra.mxu0 0.0
    %1184 = vmatprep.subr.mxu0 0.0
    %1185 = vmatpush1.msra.mxu0 0.0
    %1186 = vmatprep.subr.mxu0 0.0
    %1187 = vmatpush1.msra.mxu0 0.0
    %1188 = vmatprep.subr.mxu0 0.0
    %1189 = vmatpush1.msra.mxu0 0.0
    %1190 = vmatprep.subr.mxu0 0.0
    %1191 = vmatpush1.msra.mxu0 %v1155
    %1192 = vmatprep.subr.mxu0 0.0
    %1193 = vmatpush2.msra.mxu0 0.0
    %1194 = vmatprep.subr.mxu0 0.0
    %1195 = vmatpush2.msra.mxu0 0.0
    %1196 = vmatprep.subr.mxu0 0.0
    %1197 = vmatpush2.msra.mxu0 0.0
    %1198 = vmatprep.subr.mxu0 0.0
    %1199 = vmatpush2.msra.mxu0 0.0
    %1200 = vmatprep.subr.mxu0 0.0
    %1201 = vmatpush2.msra.mxu0 0.0
    %1202 = vmatprep.subr.mxu0 0.0
    %1203 = vmatpush2.msra.mxu0 0.0
    %1204 = vmatprep.subr.mxu0 0.0
    %1205 = vmatpush2.msra.mxu0 0.0
    %1206 = vmatprep.subr.mxu0 0.0
    %1207 = vmatpush2.msra.mxu0 0.0
    %1208 = vmatprep.subr.mxu0 0.0
    %1209 = vmatpush2.msra.mxu0 0.0
    %1210 = vmatprep.subr.mxu0 0.0
    %1211 = vmatpush2.msra.mxu0 0.0
    %1212 = vmatprep.subr.mxu0 0.0
    %1213 = vmatpush2.msra.mxu0 0.0
    %1214 = vmatprep.subr.mxu0 0.0
    %1215 = vmatpush2.msra.mxu0 0.0
    %1216 = vmatprep.subr.mxu0 0.0
    %1217 = vmatpush2.msra.mxu0 0.0
    %1218 = vmatprep.subr.mxu0 0.0
    %1219 = vmatpush2.msra.mxu0 0.0
    %1220 = vmatprep.subr.mxu0 0.0
    %1221 = vmatpush2.msra.mxu0 0.0
    %1222 = vmatprep.subr.mxu0 0.0
    %1223 = vmatpush2.msra.mxu0 0.0
    %1224 = vmatprep.mubr.f32.mxu0 0.0
    %1225 = vmatmul.mubr.f32.gmra.mxu0 %v1158
    %v1226 = vpop.f32.mrf.mxu0
    %v1227 = vadd.f32 0.0, %v1226
    %v1228 = vpop.f32.mrf.mxu0
    %1229 = vdwg.mxu0
    %v1231 = vsel %vm308, %v1062, 0
    %1233 = vmatprep.subr.mxu0 0.0
    %1234 = vmatpush1.msra.mxu0 0.0
    %1235 = vmatprep.subr.mxu0 0.0
    %1236 = vmatpush1.msra.mxu0 0.0
    %1237 = vmatprep.subr.mxu0 0.0
    %1238 = vmatpush1.msra.mxu0 0.0
    %1239 = vmatprep.subr.mxu0 0.0
    %1240 = vmatpush1.msra.mxu0 0.0
    %1241 = vmatprep.subr.mxu0 0.0
    %1242 = vmatpush1.msra.mxu0 0.0
    %1243 = vmatprep.subr.mxu0 0.0
    %1244 = vmatpush1.msra.mxu0 0.0
    %1245 = vmatprep.subr.mxu0 0.0
    %1246 = vmatpush1.msra.mxu0 0.0
    %1247 = vmatprep.subr.mxu0 0.0
    %1248 = vmatpush1.msra.mxu0 0.0
    %1249 = vmatprep.subr.mxu0 0.0
    %1250 = vmatpush1.msra.mxu0 0.0
    %1251 = vmatprep.subr.mxu0 0.0
    %1252 = vmatpush1.msra.mxu0 0.0
    %1253 = vmatprep.subr.mxu0 0.0
    %1254 = vmatpush1.msra.mxu0 0.0
    %1255 = vmatprep.subr.mxu0 0.0
    %1256 = vmatpush1.msra.mxu0 0.0
    %1257 = vmatprep.subr.mxu0 0.0
    %1258 = vmatpush1.msra.mxu0 0.0
    %1259 = vmatprep.subr.mxu0 0.0
    %1260 = vmatpush1.msra.mxu0 0.0
    %1261 = vmatprep.subr.mxu0 0.0
    %1262 = vmatpush1.msra.mxu0 0.0
    %1263 = vmatprep.subr.mxu0 0.0
    %1264 = vmatpush1.msra.mxu0 %v1063
    %1265 = vmatprep.subr.mxu0 0.0
    %1266 = vmatpush2.msra.mxu0 0.0
    %1267 = vmatprep.subr.mxu0 0.0
    %1268 = vmatpush2.msra.mxu0 0.0
    %1269 = vmatprep.subr.mxu0 0.0
    %1270 = vmatpush2.msra.mxu0 0.0
    %1271 = vmatprep.subr.mxu0 0.0
    %1272 = vmatpush2.msra.mxu0 0.0
    %1273 = vmatprep.subr.mxu0 0.0
    %1274 = vmatpush2.msra.mxu0 0.0
    %1275 = vmatprep.subr.mxu0 0.0
    %1276 = vmatpush2.msra.mxu0 0.0
    %1277 = vmatprep.subr.mxu0 0.0
    %1278 = vmatpush2.msra.mxu0 0.0
    %1279 = vmatprep.subr.mxu0 0.0
    %1280 = vmatpush2.msra.mxu0 0.0
    %1281 = vmatprep.subr.mxu0 0.0
    %1282 = vmatpush2.msra.mxu0 0.0
    %1283 = vmatprep.subr.mxu0 0.0
    %1284 = vmatpush2.msra.mxu0 0.0
    %1285 = vmatprep.subr.mxu0 0.0
    %1286 = vmatpush2.msra.mxu0 0.0
    %1287 = vmatprep.subr.mxu0 0.0
    %1288 = vmatpush2.msra.mxu0 0.0
    %1289 = vmatprep.subr.mxu0 0.0
    %1290 = vmatpush2.msra.mxu0 0.0
    %1291 = vmatprep.subr.mxu0 0.0
    %1292 = vmatpush2.msra.mxu0 0.0
    %1293 = vmatprep.subr.mxu0 0.0
    %1294 = vmatpush2.msra.mxu0 0.0
    %1295 = vmatprep.subr.mxu0 0.0
    %1296 = vmatpush2.msra.mxu0 0.0
    %1297 = vmatprep.mubr.f32.mxu0 0.0
    %1298 = vmatmul.mubr.f32.gmra.mxu0 %v1231
    %v1299 = vpop.f32.mrf.mxu0
    %v1300 = vadd.f32 %v1227, %v1299
    %v1301 = vpop.f32.mrf.mxu0
    %1302 = vdwg.mxu0
    %1303 = vrot.lane.b32.xlu0 %v974, 112
    %v1304 = vpop.permute.xlu0 %1303
    %1305 = vrot.lane.b32.xlu0 %v975, 112
    %v1306 = vpop.permute.xlu0 %1305
    %v1307 = vsel %vm308, %v1304, 0
    %v1309 = vsel %vm308, %v1306, 0
    %1311 = vmatprep.subr.mxu0 0.0
    %1312 = vmatpush1.xpose.msra.mxu0 0.0
    %1313 = vmatprep.subr.mxu0 0.0
    %1314 = vmatpush1.xpose.msra.mxu0 0.0
    %1315 = vmatprep.subr.mxu0 0.0
    %1316 = vmatpush1.xpose.msra.mxu0 0.0
    %1317 = vmatprep.subr.mxu0 0.0
    %1318 = vmatpush1.xpose.msra.mxu0 0.0
    %1319 = vmatprep.subr.mxu0 0.0
    %1320 = vmatpush1.xpose.msra.mxu0 0.0
    %1321 = vmatprep.subr.mxu0 0.0
    %1322 = vmatpush1.xpose.msra.mxu0 0.0
    %1323 = vmatprep.subr.mxu0 0.0
    %1324 = vmatpush1.xpose.msra.mxu0 0.0
    %1325 = vmatprep.subr.mxu0 0.0
    %1326 = vmatpush1.xpose.msra.mxu0 0.0
    %1327 = vmatprep.subr.mxu0 0.0
    %1328 = vmatpush1.xpose.msra.mxu0 0.0
    %1329 = vmatprep.subr.mxu0 0.0
    %1330 = vmatpush1.xpose.msra.mxu0 0.0
    %1331 = vmatprep.subr.mxu0 0.0
    %1332 = vmatpush1.xpose.msra.mxu0 0.0
    %1333 = vmatprep.subr.mxu0 0.0
    %1334 = vmatpush1.xpose.msra.mxu0 0.0
    %1335 = vmatprep.subr.mxu0 0.0
    %1336 = vmatpush1.xpose.msra.mxu0 0.0
    %1337 = vmatprep.subr.mxu0 0.0
    %1338 = vmatpush1.xpose.msra.mxu0 0.0
    %1339 = vmatprep.subr.mxu0 0.0
    %1340 = vmatpush1.xpose.msra.mxu0 0.0
    %1341 = vmatprep.subr.mxu0 0.0
    %1342 = vmatpush1.xpose.msra.mxu0 %v1309
    %1343 = vmatprep.subr.mxu0 0.0
    %1344 = vmatpush2.xpose.msra.mxu0 0.0
    %1345 = vmatprep.subr.mxu0 0.0
    %1346 = vmatpush2.xpose.msra.mxu0 0.0
    %1347 = vmatprep.subr.mxu0 0.0
    %1348 = vmatpush2.xpose.msra.mxu0 0.0
    %1349 = vmatprep.subr.mxu0 0.0
    %1350 = vmatpush2.xpose.msra.mxu0 0.0
    %1351 = vmatprep.subr.mxu0 0.0
    %1352 = vmatpush2.xpose.msra.mxu0 0.0
    %1353 = vmatprep.subr.mxu0 0.0
    %1354 = vmatpush2.xpose.msra.mxu0 0.0
    %1355 = vmatprep.subr.mxu0 0.0
    %1356 = vmatpush2.xpose.msra.mxu0 0.0
    %1357 = vmatprep.subr.mxu0 0.0
    %1358 = vmatpush2.xpose.msra.mxu0 0.0
    %1359 = vmatprep.subr.mxu0 0.0
    %1360 = vmatpush2.xpose.msra.mxu0 0.0
    %1361 = vmatprep.subr.mxu0 0.0
    %1362 = vmatpush2.xpose.msra.mxu0 0.0
    %1363 = vmatprep.subr.mxu0 0.0
    %1364 = vmatpush2.xpose.msra.mxu0 0.0
    %1365 = vmatprep.subr.mxu0 0.0
    %1366 = vmatpush2.xpose.msra.mxu0 0.0
    %1367 = vmatprep.subr.mxu0 0.0
    %1368 = vmatpush2.xpose.msra.mxu0 0.0
    %1369 = vmatprep.subr.mxu0 0.0
    %1370 = vmatpush2.xpose.msra.mxu0 0.0
    %1371 = vmatprep.subr.mxu0 0.0
    %1372 = vmatpush2.xpose.msra.mxu0 0.0
    %1373 = vmatprep.subr.mxu0 0.0
    %1374 = vmatpush2.xpose.msra.mxu0 0.0
    %1375 = vmatprep.mubr.f32.mxu0 0.0
    %1376 = vmatmul.mubr.f32.gmra.mxu0 %v1307
    %v1377 = vpop.f32.mrf.mxu0
    %v1378 = vadd.f32 %v46, %v1377
    %v1379 = vpop.f32.mrf.mxu0
    %1380 = vdwg.mxu0
    %v1381 = vsel %vm308, %v1378, -inf
    %1382 = vmax.xlane.f32.xlu0 %v1381
    %v1383 = vpop.xlane.xlu0 %1382
    %v1384 = vsub.f32 %v1378, %v1383
    %v1385 = vmul.f32 %v1384, 1.442695
    %v1386 = vpow.pop %v1385
    %v1387 = vsel %vm308, %v1386, 0.0
    %1388 = vadd.xlane.f32.xlu0 %v1387
    %v1389 = vpop.xlane.xlu0 %1388
    %v1390 = vrcp.pop %v1389
    %v1391 = vmul.f32 %v1386, %v1390
    %1392 = vrot.lane.b32.xlu0 %v1063, 64
    %v1393 = vpop.permute.xlu0 %1392
    %v1396 = vsel %vm308, %v1391, 0
    %1398 = vmatprep.subr.mxu0 0.0
    %1399 = vmatpush1.msra.mxu0 0.0
    %1400 = vmatprep.subr.mxu0 0.0
    %1401 = vmatpush1.msra.mxu0 0.0
    %1402 = vmatprep.subr.mxu0 0.0
    %1403 = vmatpush1.msra.mxu0 0.0
    %1404 = vmatprep.subr.mxu0 0.0
    %1405 = vmatpush1.msra.mxu0 0.0
    %1406 = vmatprep.subr.mxu0 0.0
    %1407 = vmatpush1.msra.mxu0 0.0
    %1408 = vmatprep.subr.mxu0 0.0
    %1409 = vmatpush1.msra.mxu0 0.0
    %1410 = vmatprep.subr.mxu0 0.0
    %1411 = vmatpush1.msra.mxu0 0.0
    %1412 = vmatprep.subr.mxu0 0.0
    %1413 = vmatpush1.msra.mxu0 0.0
    %1414 = vmatprep.subr.mxu0 0.0
    %1415 = vmatpush1.msra.mxu0 0.0
    %1416 = vmatprep.subr.mxu0 0.0
    %1417 = vmatpush1.msra.mxu0 0.0
    %1418 = vmatprep.subr.mxu0 0.0
    %1419 = vmatpush1.msra.mxu0 0.0
    %1420 = vmatprep.subr.mxu0 0.0
    %1421 = vmatpush1.msra.mxu0 0.0
    %1422 = vmatprep.subr.mxu0 0.0
    %1423 = vmatpush1.msra.mxu0 0.0
    %1424 = vmatprep.subr.mxu0 0.0
    %1425 = vmatpush1.msra.mxu0 0.0
    %1426 = vmatprep.subr.mxu0 0.0
    %1427 = vmatpush1.msra.mxu0 0.0
    %1428 = vmatprep.subr.mxu0 0.0
    %1429 = vmatpush1.msra.mxu0 %v1393
    %1430 = vmatprep.subr.mxu0 0.0
    %1431 = vmatpush2.msra.mxu0 0.0
    %1432 = vmatprep.subr.mxu0 0.0
    %1433 = vmatpush2.msra.mxu0 0.0
    %1434 = vmatprep.subr.mxu0 0.0
    %1435 = vmatpush2.msra.mxu0 0.0
    %1436 = vmatprep.subr.mxu0 0.0
    %1437 = vmatpush2.msra.mxu0 0.0
    %1438 = vmatprep.subr.mxu0 0.0
    %1439 = vmatpush2.msra.mxu0 0.0
    %1440 = vmatprep.subr.mxu0 0.0
    %1441 = vmatpush2.msra.mxu0 0.0
    %1442 = vmatprep.subr.mxu0 0.0
    %1443 = vmatpush2.msra.mxu0 0.0
    %1444 = vmatprep.subr.mxu0 0.0
    %1445 = vmatpush2.msra.mxu0 0.0
    %1446 = vmatprep.subr.mxu0 0.0
    %1447 = vmatpush2.msra.mxu0 0.0
    %1448 = vmatprep.subr.mxu0 0.0
    %1449 = vmatpush2.msra.mxu0 0.0
    %1450 = vmatprep.subr.mxu0 0.0
    %1451 = vmatpush2.msra.mxu0 0.0
    %1452 = vmatprep.subr.mxu0 0.0
    %1453 = vmatpush2.msra.mxu0 0.0
    %1454 = vmatprep.subr.mxu0 0.0
    %1455 = vmatpush2.msra.mxu0 0.0
    %1456 = vmatprep.subr.mxu0 0.0
    %1457 = vmatpush2.msra.mxu0 0.0
    %1458 = vmatprep.subr.mxu0 0.0
    %1459 = vmatpush2.msra.mxu0 0.0
    %1460 = vmatprep.subr.mxu0 0.0
    %1461 = vmatpush2.msra.mxu0 0.0
    %1462 = vmatprep.mubr.f32.mxu0 0.0
    %1463 = vmatmul.mubr.f32.gmra.mxu0 %v1396
    %v1464 = vpop.f32.mrf.mxu0
    %v1465 = vadd.f32 0.0, %v1464
    %v1466 = vpop.f32.mrf.mxu0
    %1467 = vdwg.mxu0
    %v1468 = vadd.f32 %v1300, %v1465
    %1469 = vrot.lane.b32.xlu0 %v974, 104
    %v1470 = vpop.permute.xlu0 %1469
    %1471 = vrot.lane.b32.xlu0 %v975, 104
    %v1472 = vpop.permute.xlu0 %1471
    %v1473 = vsel %vm308, %v1470, 0
    %v1475 = vsel %vm308, %v1472, 0
    %1477 = vmatprep.subr.mxu0 0.0
    %1478 = vmatpush1.xpose.msra.mxu0 0.0
    %1479 = vmatprep.subr.mxu0 0.0
    %1480 = vmatpush1.xpose.msra.mxu0 0.0
    %1481 = vmatprep.subr.mxu0 0.0
    %1482 = vmatpush1.xpose.msra.mxu0 0.0
    %1483 = vmatprep.subr.mxu0 0.0
    %1484 = vmatpush1.xpose.msra.mxu0 0.0
    %1485 = vmatprep.subr.mxu0 0.0
    %1486 = vmatpush1.xpose.msra.mxu0 0.0
    %1487 = vmatprep.subr.mxu0 0.0
    %1488 = vmatpush1.xpose.msra.mxu0 0.0
    %1489 = vmatprep.subr.mxu0 0.0
    %1490 = vmatpush1.xpose.msra.mxu0 0.0
    %1491 = vmatprep.subr.mxu0 0.0
    %1492 = vmatpush1.xpose.msra.mxu0 0.0
    %1493 = vmatprep.subr.mxu0 0.0
    %1494 = vmatpush1.xpose.msra.mxu0 0.0
    %1495 = vmatprep.subr.mxu0 0.0
    %1496 = vmatpush1.xpose.msra.mxu0 0.0
    %1497 = vmatprep.subr.mxu0 0.0
    %1498 = vmatpush1.xpose.msra.mxu0 0.0
    %1499 = vmatprep.subr.mxu0 0.0
    %1500 = vmatpush1.xpose.msra.mxu0 0.0
    %1501 = vmatprep.subr.mxu0 0.0
    %1502 = vmatpush1.xpose.msra.mxu0 0.0
    %1503 = vmatprep.subr.mxu0 0.0
    %1504 = vmatpush1.xpose.msra.mxu0 0.0
    %1505 = vmatprep.subr.mxu0 0.0
    %1506 = vmatpush1.xpose.msra.mxu0 0.0
    %1507 = vmatprep.subr.mxu0 0.0
    %1508 = vmatpush1.xpose.msra.mxu0 %v1475
    %1509 = vmatprep.subr.mxu0 0.0
    %1510 = vmatpush2.xpose.msra.mxu0 0.0
    %1511 = vmatprep.subr.mxu0 0.0
    %1512 = vmatpush2.xpose.msra.mxu0 0.0
    %1513 = vmatprep.subr.mxu0 0.0
    %1514 = vmatpush2.xpose.msra.mxu0 0.0
    %1515 = vmatprep.subr.mxu0 0.0
    %1516 = vmatpush2.xpose.msra.mxu0 0.0
    %1517 = vmatprep.subr.mxu0 0.0
    %1518 = vmatpush2.xpose.msra.mxu0 0.0
    %1519 = vmatprep.subr.mxu0 0.0
    %1520 = vmatpush2.xpose.msra.mxu0 0.0
    %1521 = vmatprep.subr.mxu0 0.0
    %1522 = vmatpush2.xpose.msra.mxu0 0.0
    %1523 = vmatprep.subr.mxu0 0.0
    %1524 = vmatpush2.xpose.msra.mxu0 0.0
    %1525 = vmatprep.subr.mxu0 0.0
    %1526 = vmatpush2.xpose.msra.mxu0 0.0
    %1527 = vmatprep.subr.mxu0 0.0
    %1528 = vmatpush2.xpose.msra.mxu0 0.0
    %1529 = vmatprep.subr.mxu0 0.0
    %1530 = vmatpush2.xpose.msra.mxu0 0.0
    %1531 = vmatprep.subr.mxu0 0.0
    %1532 = vmatpush2.xpose.msra.mxu0 0.0
    %1533 = vmatprep.subr.mxu0 0.0
    %1534 = vmatpush2.xpose.msra.mxu0 0.0
    %1535 = vmatprep.subr.mxu0 0.0
    %1536 = vmatpush2.xpose.msra.mxu0 0.0
    %1537 = vmatprep.subr.mxu0 0.0
    %1538 = vmatpush2.xpose.msra.mxu0 0.0
    %1539 = vmatprep.subr.mxu0 0.0
    %1540 = vmatpush2.xpose.msra.mxu0 0.0
    %1541 = vmatprep.mubr.f32.mxu0 0.0
    %1542 = vmatmul.mubr.f32.gmra.mxu0 %v1473
    %v1543 = vpop.f32.mrf.mxu0
    %v1544 = vadd.f32 %v46, %v1543
    %v1545 = vpop.f32.mrf.mxu0
    %1546 = vdwg.mxu0
    %v1547 = vsel %vm308, %v1544, -inf
    %1548 = vmax.xlane.f32.xlu0 %v1547
    %v1549 = vpop.xlane.xlu0 %1548
    %v1550 = vsub.f32 %v1544, %v1549
    %v1551 = vmul.f32 %v1550, 1.442695
    %v1552 = vpow.pop %v1551
    %v1553 = vsel %vm308, %v1552, 0.0
    %1554 = vadd.xlane.f32.xlu0 %v1553
    %v1555 = vpop.xlane.xlu0 %1554
    %v1556 = vrcp.pop %v1555
    %v1557 = vmul.f32 %v1552, %v1556
    %1558 = vrot.lane.b32.xlu0 %v1063, 32
    %v1559 = vpop.permute.xlu0 %1558
    %v1562 = vsel %vm308, %v1557, 0
    %1564 = vmatprep.subr.mxu0 0.0
    %1565 = vmatpush1.msra.mxu0 0.0
    %1566 = vmatprep.subr.mxu0 0.0
    %1567 = vmatpush1.msra.mxu0 0.0
    %1568 = vmatprep.subr.mxu0 0.0
    %1569 = vmatpush1.msra.mxu0 0.0
    %1570 = vmatprep.subr.mxu0 0.0
    %1571 = vmatpush1.msra.mxu0 0.0
    %1572 = vmatprep.subr.mxu0 0.0
    %1573 = vmatpush1.msra.mxu0 0.0
    %1574 = vmatprep.subr.mxu0 0.0
    %1575 = vmatpush1.msra.mxu0 0.0
    %1576 = vmatprep.subr.mxu0 0.0
    %1577 = vmatpush1.msra.mxu0 0.0
    %1578 = vmatprep.subr.mxu0 0.0
    %1579 = vmatpush1.msra.mxu0 0.0
    %1580 = vmatprep.subr.mxu0 0.0
    %1581 = vmatpush1.msra.mxu0 0.0
    %1582 = vmatprep.subr.mxu0 0.0
    %1583 = vmatpush1.msra.mxu0 0.0
    %1584 = vmatprep.subr.mxu0 0.0
    %1585 = vmatpush1.msra.mxu0 0.0
    %1586 = vmatprep.subr.mxu0 0.0
    %1587 = vmatpush1.msra.mxu0 0.0
    %1588 = vmatprep.subr.mxu0 0.0
    %1589 = vmatpush1.msra.mxu0 0.0
    %1590 = vmatprep.subr.mxu0 0.0
    %1591 = vmatpush1.msra.mxu0 0.0
    %1592 = vmatprep.subr.mxu0 0.0
    %1593 = vmatpush1.msra.mxu0 0.0
    %1594 = vmatprep.subr.mxu0 0.0
    %1595 = vmatpush1.msra.mxu0 %v1559
    %1596 = vmatprep.subr.mxu0 0.0
    %1597 = vmatpush2.msra.mxu0 0.0
    %1598 = vmatprep.subr.mxu0 0.0
    %1599 = vmatpush2.msra.mxu0 0.0
    %1600 = vmatprep.subr.mxu0 0.0
    %1601 = vmatpush2.msra.mxu0 0.0
    %1602 = vmatprep.subr.mxu0 0.0
    %1603 = vmatpush2.msra.mxu0 0.0
    %1604 = vmatprep.subr.mxu0 0.0
    %1605 = vmatpush2.msra.mxu0 0.0
    %1606 = vmatprep.subr.mxu0 0.0
    %1607 = vmatpush2.msra.mxu0 0.0
    %1608 = vmatprep.subr.mxu0 0.0
    %1609 = vmatpush2.msra.mxu0 0.0
    %1610 = vmatprep.subr.mxu0 0.0
    %1611 = vmatpush2.msra.mxu0 0.0
    %1612 = vmatprep.subr.mxu0 0.0
    %1613 = vmatpush2.msra.mxu0 0.0
    %1614 = vmatprep.subr.mxu0 0.0
    %1615 = vmatpush2.msra.mxu0 0.0
    %1616 = vmatprep.subr.mxu0 0.0
    %1617 = vmatpush2.msra.mxu0 0.0
    %1618 = vmatprep.subr.mxu0 0.0
    %1619 = vmatpush2.msra.mxu0 0.0
    %1620 = vmatprep.subr.mxu0 0.0
    %1621 = vmatpush2.msra.mxu0 0.0
    %1622 = vmatprep.subr.mxu0 0.0
    %1623 = vmatpush2.msra.mxu0 0.0
    %1624 = vmatprep.subr.mxu0 0.0
    %1625 = vmatpush2.msra.mxu0 0.0
    %1626 = vmatprep.subr.mxu0 0.0
    %1627 = vmatpush2.msra.mxu0 0.0
    %1628 = vmatprep.mubr.f32.mxu0 0.0
    %1629 = vmatmul.mubr.f32.gmra.mxu0 %v1562
    %v1630 = vpop.f32.mrf.mxu0
    %v1631 = vadd.f32 0.0, %v1630
    %v1632 = vpop.f32.mrf.mxu0
    %1633 = vdwg.mxu0
    %v1634 = vadd.f32 %v1468, %v1631
    %v1635 = vadd.f32 %v1634, %v971
    %1636 = vst.msk [vmem:[#allocation5 + $0x8] sm:$0xff] %vm64, %v1635
    %v1637 = vld [vmem:[#allocation5] sm:$0xff]
    %v1638 = vld [vmem:[#allocation5 + $0x8] sm:$0xff]
    %v1639 = vadd.f32 %v36, %v1637
    %v1640 = vadd.f32 %v37, %v1638
    %v1641 = vsel %vm64, %v1639, 0.0
    %1642 = vadd.xlane.f32.xlu0 %v1641
    %v1643 = vpop.xlane.xlu0 %1642
    %v1644 = vsel %vm64, %v1640, 0.0
    %1645 = vadd.xlane.f32.xlu0 %v1644
    %v1646 = vpop.xlane.xlu0 %1645
    %v1647 = vrcp.pop 32.0
    %v1648 = vmul.f32 %v1643, %v1647
    %v1649 = vmul.f32 %v1646, %v1647
    %v1650 = vsub.f32 %v1639, %v1648
    %v1651 = vsub.f32 %v1640, %v1649
    %v1652 = vmul.f32 %v1650, %v1650
    %v1653 = vmul.f32 %v1651, %v1651
    %v1654 = vsel %vm64, %v1652, 0.0
    %1655 = vadd.xlane.f32.xlu0 %v1654
    %v1656 = vpop.xlane.xlu0 %1655
    %v1657 = vsel %vm64, %v1653, 0.0
    %1658 = vadd.xlane.f32.xlu0 %v1657
    %v1659 = vpop.xlane.xlu0 %1658
    %v1660 = vmul.f32 %v1656, %v1647
    %v1661 = vmul.f32 %v1659, %v1647
    %v1662 = vadd.f32 %v1660, 1e-05
    %v1663 = vadd.f32 %v1661, 1e-05
    %v1664 = vrsqrt.pop %v1662
    %v1665 = vrsqrt.pop %v1663
    %v1666 = vmul.f32 %v1650, %v1664
    %v1667 = vmul.f32 %v1651, %v1665
    %v1668 = vlaneseq
    %v1669 = vshrl.u32 %v1668, 7
    %v1670 = vsub.s32 0, %v1669
    %v1671 = vrot.slane %v40, %v1670
    %v1672 = vmul.f32 %v1666, %v1671
    %v1673 = vmul.f32 %v1667, %v1671
    %v1674 = vlaneseq
    %v1675 = vshrl.u32 %v1674, 7
    %v1676 = vsub.s32 1, %v1675
    %v1677 = vrot.slane %v40, %v1676
    %v1678 = vadd.f32 %v1672, %v1677
    %v1679 = vadd.f32 %v1673, %v1677
    %s1680 = scalar_lea.vmem %s2, 64
    %v1681 = vld [vmem:[%s1680] sm:$0xff]
    %v1682 = vld [vmem:[%s1680 + $0x8] sm:$0xff]
    %v1683 = vld [vmem:[%s1680 + $0x10] sm:$0xff]
    %v1684 = vld [vmem:[%s1680 + $0x18] sm:$0xff]
    %v1685 = vld [vmem:[%s1680 + $0x20] sm:$0xff]
    %v1686 = vld [vmem:[%s1680 + $0x28] sm:$0xff]
    %v1687 = vld [vmem:[%s1680 + $0x30] sm:$0xff]
    %v1688 = vld [vmem:[%s1680 + $0x38] sm:$0xff]
    %s1689 = scalar_lea.vmem %s3, 4
    %v1690 = vld [vmem:[%s1689] sm:$0x7]
    %s1691 = scalar_lea.vmem %s4, 32
    %v1692 = vld [vmem:[%s1691] sm:$0xff]
    %v1693 = vld [vmem:[%s1691 + $0x8] sm:$0xff]
    %v1694 = vld [vmem:[%s1691 + $0x10] sm:$0xff]
    %v1695 = vld [vmem:[%s1691 + $0x18] sm:$0xff]
    %v1696 = vlaneseq
    %v1697 = vshrl.u32 %v1696, 7
    %v1698 = vsub.s32 0, %v1697
    %v1699 = vrot.slane %v1690, %v1698
    %1700 = vmatprep.subr.mxu0 0.0
    %1701 = vmatpush1.msra.mxu0 0.0
    %1702 = vmatprep.subr.mxu0 0.0
    %1703 = vmatpush1.msra.mxu0 0.0
    %1704 = vmatprep.subr.mxu0 0.0
    %1705 = vmatpush1.msra.mxu0 0.0
    %1706 = vmatprep.subr.mxu0 0.0
    %1707 = vmatpush1.msra.mxu0 0.0
    %1708 = vmatprep.subr.mxu0 0.0
    %1709 = vmatpush1.msra.mxu0 0.0
    %1710 = vmatprep.subr.mxu0 0.0
    %1711 = vmatpush1.msra.mxu0 0.0
    %1712 = vmatprep.subr.mxu0 0.0
    %1713 = vmatpush1.msra.mxu0 0.0
    %1714 = vmatprep.subr.mxu0 0.0
    %1715 = vmatpush1.msra.mxu0 0.0
    %1716 = vmatprep.subr.mxu0 0.0
    %1717 = vmatpush1.msra.mxu0 0.0
    %1718 = vmatprep.subr.mxu0 0.0
    %1719 = vmatpush1.msra.mxu0 0.0
    %1720 = vmatprep.subr.mxu0 0.0
    %1721 = vmatpush1.msra.mxu0 0.0
    %1722 = vmatprep.subr.mxu0 0.0
    %1723 = vmatpush1.msra.mxu0 0.0
    %1724 = vmatprep.subr.mxu0 0.0
    %1725 = vmatpush1.msra.mxu0 %v1684
    %1726 = vmatprep.subr.mxu0 0.0
    %1727 = vmatpush1.msra.mxu0 %v1683
    %1728 = vmatprep.subr.mxu0 0.0
    %1729 = vmatpush1.msra.mxu0 %v1682
    %1730 = vmatprep.subr.mxu0 0.0
    %1731 = vmatpush1.msra.mxu0 %v1681
    %1732 = vmatprep.subr.mxu0 0.0
    %1733 = vmatpush2.msra.mxu0 0.0
    %1734 = vmatprep.subr.mxu0 0.0
    %1735 = vmatpush2.msra.mxu0 0.0
    %1736 = vmatprep.subr.mxu0 0.0
    %1737 = vmatpush2.msra.mxu0 0.0
    %1738 = vmatprep.subr.mxu0 0.0
    %1739 = vmatpush2.msra.mxu0 0.0
    %1740 = vmatprep.subr.mxu0 0.0
    %1741 = vmatpush2.msra.mxu0 0.0
    %1742 = vmatprep.subr.mxu0 0.0
    %1743 = vmatpush2.msra.mxu0 0.0
    %1744 = vmatprep.subr.mxu0 0.0
    %1745 = vmatpush2.msra.mxu0 0.0
    %1746 = vmatprep.subr.mxu0 0.0
    %1747 = vmatpush2.msra.mxu0 0.0
    %1748 = vmatprep.subr.mxu0 0.0
    %1749 = vmatpush2.msra.mxu0 0.0
    %1750 = vmatprep.subr.mxu0 0.0
    %1751 = vmatpush2.msra.mxu0 0.0
    %1752 = vmatprep.subr.mxu0 0.0
    %1753 = vmatpush2.msra.mxu0 0.0
    %1754 = vmatprep.subr.mxu0 0.0
    %1755 = vmatpush2.msra.mxu0 0.0
    %1756 = vmatprep.subr.mxu0 0.0
    %1757 = vmatpush2.msra.mxu0 0.0
    %1758 = vmatprep.subr.mxu0 0.0
    %1759 = vmatpush2.msra.mxu0 0.0
    %1760 = vmatprep.subr.mxu0 0.0
    %1761 = vmatpush2.msra.mxu0 0.0
    %1762 = vmatprep.subr.mxu0 0.0
    %1763 = vmatpush2.msra.mxu0 0.0
    %1764 = vmatprep.mubr.f32.mxu0 0.0
    %1765 = vmatmul.mubr.f32.gmra.mxu0 %v66
    %v1766 = vpop.f32.mrf.mxu0
    %v1767 = vadd.f32 %v1699, %v1766
    %v1768 = vpop.f32.mrf.mxu0
    %1769 = vmatprep.mubr.f32.mxu0 0.0
    %1770 = vmatmul.mubr.f32.gmra.mxu0 %v69
    %v1771 = vpop.f32.mrf.mxu0
    %v1772 = vadd.f32 %v1699, %v1771
    %v1773 = vpop.f32.mrf.mxu0
    %1774 = vdwg.mxu0
    %1775 = vst.msk [vmem:[#allocation2] sm:$0xff] %vm64, %v1767
    %1776 = vst.msk [vmem:[#allocation2 + $0x8] sm:$0xff] %vm64, %v1772
    %v1777 = vlaneseq
    %v1778 = vshrl.u32 %v1777, 7
    %v1779 = vsub.s32 1, %v1778
    %v1780 = vrot.slane %v1690, %v1779
    %v1782 = vsel %vm64, %v38, 0
    %v1785 = vsel %vm64, %v39, 0
    %1787 = vmatprep.subr.mxu0 0.0
    %1788 = vmatpush1.msra.mxu0 0.0
    %1789 = vmatprep.subr.mxu0 0.0
    %1790 = vmatpush1.msra.mxu0 0.0
    %1791 = vmatprep.subr.mxu0 0.0
    %1792 = vmatpush1.msra.mxu0 0.0
    %1793 = vmatprep.subr.mxu0 0.0
    %1794 = vmatpush1.msra.mxu0 0.0
    %1795 = vmatprep.subr.mxu0 0.0
    %1796 = vmatpush1.msra.mxu0 0.0
    %1797 = vmatprep.subr.mxu0 0.0
    %1798 = vmatpush1.msra.mxu0 0.0
    %1799 = vmatprep.subr.mxu0 0.0
    %1800 = vmatpush1.msra.mxu0 0.0
    %1801 = vmatprep.subr.mxu0 0.0
    %1802 = vmatpush1.msra.mxu0 0.0
    %1803 = vmatprep.subr.mxu0 0.0
    %1804 = vmatpush1.msra.mxu0 0.0
    %1805 = vmatprep.subr.mxu0 0.0
    %1806 = vmatpush1.msra.mxu0 0.0
    %1807 = vmatprep.subr.mxu0 0.0
    %1808 = vmatpush1.msra.mxu0 0.0
    %1809 = vmatprep.subr.mxu0 0.0
    %1810 = vmatpush1.msra.mxu0 0.0
    %1811 = vmatprep.subr.mxu0 0.0
    %1812 = vmatpush1.msra.mxu0 %v1688
    %1813 = vmatprep.subr.mxu0 0.0
    %1814 = vmatpush1.msra.mxu0 %v1687
    %1815 = vmatprep.subr.mxu0 0.0
    %1816 = vmatpush1.msra.mxu0 %v1686
    %1817 = vmatprep.subr.mxu0 0.0
    %1818 = vmatpush1.msra.mxu0 %v1685
    %1819 = vmatprep.subr.mxu0 0.0
    %1820 = vmatpush2.msra.mxu0 0.0
    %1821 = vmatprep.subr.mxu0 0.0
    %1822 = vmatpush2.msra.mxu0 0.0
    %1823 = vmatprep.subr.mxu0 0.0
    %1824 = vmatpush2.msra.mxu0 0.0
    %1825 = vmatprep.subr.mxu0 0.0
    %1826 = vmatpush2.msra.mxu0 0.0
    %1827 = vmatprep.subr.mxu0 0.0
    %1828 = vmatpush2.msra.mxu0 0.0
    %1829 = vmatprep.subr.mxu0 0.0
    %1830 = vmatpush2.msra.mxu0 0.0
    %1831 = vmatprep.subr.mxu0 0.0
    %1832 = vmatpush2.msra.mxu0 0.0
    %1833 = vmatprep.subr.mxu0 0.0
    %1834 = vmatpush2.msra.mxu0 0.0
    %1835 = vmatprep.subr.mxu0 0.0
    %1836 = vmatpush2.msra.mxu0 0.0
    %1837 = vmatprep.subr.mxu0 0.0
    %1838 = vmatpush2.msra.mxu0 0.0
    %1839 = vmatprep.subr.mxu0 0.0
    %1840 = vmatpush2.msra.mxu0 0.0
    %1841 = vmatprep.subr.mxu0 0.0
    %1842 = vmatpush2.msra.mxu0 0.0
    %1843 = vmatprep.subr.mxu0 0.0
    %1844 = vmatpush2.msra.mxu0 0.0
    %1845 = vmatprep.subr.mxu0 0.0
    %1846 = vmatpush2.msra.mxu0 0.0
    %1847 = vmatprep.subr.mxu0 0.0
    %1848 = vmatpush2.msra.mxu0 0.0
    %1849 = vmatprep.subr.mxu0 0.0
    %1850 = vmatpush2.msra.mxu0 0.0
    %1851 = vmatprep.mubr.f32.mxu0 0.0
    %1852 = vmatmul.mubr.f32.gmra.mxu0 %v1782
    %v1853 = vpop.f32.mrf.mxu0
    %v1854 = vadd.f32 %v1780, %v1853
    %v1855 = vpop.f32.mrf.mxu0
    %1856 = vmatprep.mubr.f32.mxu0 0.0
    %1857 = vmatmul.mubr.f32.gmra.mxu0 %v1785
    %v1858 = vpop.f32.mrf.mxu0
    %v1859 = vadd.f32 %v1780, %v1858
    %v1860 = vpop.f32.mrf.mxu0
    %1861 = vdwg.mxu0
    %1862 = vst.msk [vmem:[#allocation3] sm:$0xff] %vm64, %v1854
    %1863 = vst.msk [vmem:[#allocation3 + $0x8] sm:$0xff] %vm64, %v1859
    %1864 = vmatprep.subr.mxu0 0.0
    %1865 = vmatpush1.msra.mxu0 0.0
    %1866 = vmatprep.subr.mxu0 0.0
    %1867 = vmatpush1.msra.mxu0 0.0
    %1868 = vmatprep.subr.mxu0 0.0
    %1869 = vmatpush1.msra.mxu0 0.0
    %1870 = vmatprep.subr.mxu0 0.0
    %1871 = vmatpush1.msra.mxu0 0.0
    %1872 = vmatprep.subr.mxu0 0.0
    %1873 = vmatpush1.msra.mxu0 0.0
    %1874 = vmatprep.subr.mxu0 0.0
    %1875 = vmatpush1.msra.mxu0 0.0
    %1876 = vmatprep.subr.mxu0 0.0
    %1877 = vmatpush1.msra.mxu0 0.0
    %1878 = vmatprep.subr.mxu0 0.0
    %1879 = vmatpush1.msra.mxu0 0.0
    %1880 = vmatprep.subr.mxu0 0.0
    %1881 = vmatpush1.msra.mxu0 0.0
    %1882 = vmatprep.subr.mxu0 0.0
    %1883 = vmatpush1.msra.mxu0 0.0
    %1884 = vmatprep.subr.mxu0 0.0
    %1885 = vmatpush1.msra.mxu0 0.0
    %1886 = vmatprep.subr.mxu0 0.0
    %1887 = vmatpush1.msra.mxu0 0.0
    %1888 = vmatprep.subr.mxu0 0.0
    %1889 = vmatpush1.msra.mxu0 %v1695
    %1890 = vmatprep.subr.mxu0 0.0
    %1891 = vmatpush1.msra.mxu0 %v1694
    %1892 = vmatprep.subr.mxu0 0.0
    %1893 = vmatpush1.msra.mxu0 %v1693
    %1894 = vmatprep.subr.mxu0 0.0
    %1895 = vmatpush1.msra.mxu0 %v1692
    %1896 = vmatprep.subr.mxu0 0.0
    %1897 = vmatpush2.msra.mxu0 0.0
    %1898 = vmatprep.subr.mxu0 0.0
    %1899 = vmatpush2.msra.mxu0 0.0
    %1900 = vmatprep.subr.mxu0 0.0
    %1901 = vmatpush2.msra.mxu0 0.0
    %1902 = vmatprep.subr.mxu0 0.0
    %1903 = vmatpush2.msra.mxu0 0.0
    %1904 = vmatprep.subr.mxu0 0.0
    %1905 = vmatpush2.msra.mxu0 0.0
    %1906 = vmatprep.subr.mxu0 0.0
    %1907 = vmatpush2.msra.mxu0 0.0
    %1908 = vmatprep.subr.mxu0 0.0
    %1909 = vmatpush2.msra.mxu0 0.0
    %1910 = vmatprep.subr.mxu0 0.0
    %1911 = vmatpush2.msra.mxu0 0.0
    %1912 = vmatprep.subr.mxu0 0.0
    %1913 = vmatpush2.msra.mxu0 0.0
    %1914 = vmatprep.subr.mxu0 0.0
    %1915 = vmatpush2.msra.mxu0 0.0
    %1916 = vmatprep.subr.mxu0 0.0
    %1917 = vmatpush2.msra.mxu0 0.0
    %1918 = vmatprep.subr.mxu0 0.0
    %1919 = vmatpush2.msra.mxu0 0.0
    %1920 = vmatprep.subr.mxu0 0.0
    %1921 = vmatpush2.msra.mxu0 0.0
    %1922 = vmatprep.subr.mxu0 0.0
    %1923 = vmatpush2.msra.mxu0 0.0
    %1924 = vmatprep.subr.mxu0 0.0
    %1925 = vmatpush2.msra.mxu0 0.0
    %1926 = vmatprep.subr.mxu0 0.0
    %1927 = vmatpush2.msra.mxu0 0.0
    %1928 = vmatprep.mubr.f32.mxu0 0.0
    %1929 = vmatmul.mubr.f32.gmra.mxu0 %v1782
    %v1930 = vpop.f32.mrf.mxu0
    %v1931 = vadd.f32 0.0, %v1930
    %v1932 = vpop.f32.mrf.mxu0
    %1933 = vmatprep.mubr.f32.mxu0 0.0
    %1934 = vmatmul.mubr.f32.gmra.mxu0 %v1785
    %v1935 = vpop.f32.mrf.mxu0
    %v1936 = vadd.f32 0.0, %v1935
    %v1937 = vpop.f32.mrf.mxu0
    %1938 = vdwg.mxu0
    %1939 = vst [vmem:[#allocation4] sm:$0xff] %v1931
    %1940 = vst [vmem:[#allocation4 + $0x8] sm:$0xff] %v1936
    %v1941 = vld [vmem:[#allocation2] sm:$0xff]
    %v1942 = vld [vmem:[#allocation3] sm:$0xff]
    %v1944 = vsel %vm308, %v1941, 0
    %v1947 = vsel %vm308, %v1942, 0
    %1949 = vmatprep.subr.mxu0 0.0
    %1950 = vmatpush1.xpose.msra.mxu0 0.0
    %1951 = vmatprep.subr.mxu0 0.0
    %1952 = vmatpush1.xpose.msra.mxu0 0.0
    %1953 = vmatprep.subr.mxu0 0.0
    %1954 = vmatpush1.xpose.msra.mxu0 0.0
    %1955 = vmatprep.subr.mxu0 0.0
    %1956 = vmatpush1.xpose.msra.mxu0 0.0
    %1957 = vmatprep.subr.mxu0 0.0
    %1958 = vmatpush1.xpose.msra.mxu0 0.0
    %1959 = vmatprep.subr.mxu0 0.0
    %1960 = vmatpush1.xpose.msra.mxu0 0.0
    %1961 = vmatprep.subr.mxu0 0.0
    %1962 = vmatpush1.xpose.msra.mxu0 0.0
    %1963 = vmatprep.subr.mxu0 0.0
    %1964 = vmatpush1.xpose.msra.mxu0 0.0
    %1965 = vmatprep.subr.mxu0 0.0
    %1966 = vmatpush1.xpose.msra.mxu0 0.0
    %1967 = vmatprep.subr.mxu0 0.0
    %1968 = vmatpush1.xpose.msra.mxu0 0.0
    %1969 = vmatprep.subr.mxu0 0.0
    %1970 = vmatpush1.xpose.msra.mxu0 0.0
    %1971 = vmatprep.subr.mxu0 0.0
    %1972 = vmatpush1.xpose.msra.mxu0 0.0
    %1973 = vmatprep.subr.mxu0 0.0
    %1974 = vmatpush1.xpose.msra.mxu0 0.0
    %1975 = vmatprep.subr.mxu0 0.0
    %1976 = vmatpush1.xpose.msra.mxu0 0.0
    %1977 = vmatprep.subr.mxu0 0.0
    %1978 = vmatpush1.xpose.msra.mxu0 0.0
    %1979 = vmatprep.subr.mxu0 0.0
    %1980 = vmatpush1.xpose.msra.mxu0 %v1947
    %1981 = vmatprep.subr.mxu0 0.0
    %1982 = vmatpush2.xpose.msra.mxu0 0.0
    %1983 = vmatprep.subr.mxu0 0.0
    %1984 = vmatpush2.xpose.msra.mxu0 0.0
    %1985 = vmatprep.subr.mxu0 0.0
    %1986 = vmatpush2.xpose.msra.mxu0 0.0
    %1987 = vmatprep.subr.mxu0 0.0
    %1988 = vmatpush2.xpose.msra.mxu0 0.0
    %1989 = vmatprep.subr.mxu0 0.0
    %1990 = vmatpush2.xpose.msra.mxu0 0.0
    %1991 = vmatprep.subr.mxu0 0.0
    %1992 = vmatpush2.xpose.msra.mxu0 0.0
    %1993 = vmatprep.subr.mxu0 0.0
    %1994 = vmatpush2.xpose.msra.mxu0 0.0
    %1995 = vmatprep.subr.mxu0 0.0
    %1996 = vmatpush2.xpose.msra.mxu0 0.0
    %1997 = vmatprep.subr.mxu0 0.0
    %1998 = vmatpush2.xpose.msra.mxu0 0.0
    %1999 = vmatprep.subr.mxu0 0.0
    %2000 = vmatpush2.xpose.msra.mxu0 0.0
    %2001 = vmatprep.subr.mxu0 0.0
    %2002 = vmatpush2.xpose.msra.mxu0 0.0
    %2003 = vmatprep.subr.mxu0 0.0
    %2004 = vmatpush2.xpose.msra.mxu0 0.0
    %2005 = vmatprep.subr.mxu0 0.0
    %2006 = vmatpush2.xpose.msra.mxu0 0.0
    %2007 = vmatprep.subr.mxu0 0.0
    %2008 = vmatpush2.xpose.msra.mxu0 0.0
    %2009 = vmatprep.subr.mxu0 0.0
    %2010 = vmatpush2.xpose.msra.mxu0 0.0
    %2011 = vmatprep.subr.mxu0 0.0
    %2012 = vmatpush2.xpose.msra.mxu0 0.0
    %2013 = vmatprep.mubr.f32.mxu0 0.0
    %2014 = vmatmul.mubr.f32.gmra.mxu0 %v1944
    %v2015 = vpop.f32.mrf.mxu0
    %v2016 = vadd.f32 0.0, %v2015
    %v2017 = vpop.f32.mrf.mxu0
    %2018 = vdwg.mxu0
    %v2019 = vsel %vm308, %v2016, -inf
    %2020 = vmax.xlane.f32.xlu0 %v2019
    %v2021 = vpop.xlane.xlu0 %2020
    %v2022 = vsub.f32 %v2016, %v2021
    %v2023 = vmul.f32 %v2022, 1.442695
    %v2024 = vpow.pop %v2023
    %v2025 = vsel %vm308, %v2024, 0.0
    %2026 = vadd.xlane.f32.xlu0 %v2025
    %v2027 = vpop.xlane.xlu0 %2026
    %v2028 = vrcp.pop %v2027
    %v2029 = vmul.f32 %v2024, %v2028
    %v2030 = vld [vmem:[#allocation4] sm:$0xff]
    %2031 = vrot.lane.b32.xlu0 %v1941, 120
    %v2032 = vpop.permute.xlu0 %2031
    %2033 = vrot.lane.b32.xlu0 %v1942, 120
    %v2034 = vpop.permute.xlu0 %2033
    %v2035 = vsel %vm308, %v2032, 0
    %v2037 = vsel %vm308, %v2034, 0
    %2039 = vmatprep.subr.mxu0 0.0
    %2040 = vmatpush1.xpose.msra.mxu0 0.0
    %2041 = vmatprep.subr.mxu0 0.0
    %2042 = vmatpush1.xpose.msra.mxu0 0.0
    %2043 = vmatprep.subr.mxu0 0.0
    %2044 = vmatpush1.xpose.msra.mxu0 0.0
    %2045 = vmatprep.subr.mxu0 0.0
    %2046 = vmatpush1.xpose.msra.mxu0 0.0
    %2047 = vmatprep.subr.mxu0 0.0
    %2048 = vmatpush1.xpose.msra.mxu0 0.0
    %2049 = vmatprep.subr.mxu0 0.0
    %2050 = vmatpush1.xpose.msra.mxu0 0.0
    %2051 = vmatprep.subr.mxu0 0.0
    %2052 = vmatpush1.xpose.msra.mxu0 0.0
    %2053 = vmatprep.subr.mxu0 0.0
    %2054 = vmatpush1.xpose.msra.mxu0 0.0
    %2055 = vmatprep.subr.mxu0 0.0
    %2056 = vmatpush1.xpose.msra.mxu0 0.0
    %2057 = vmatprep.subr.mxu0 0.0
    %2058 = vmatpush1.xpose.msra.mxu0 0.0
    %2059 = vmatprep.subr.mxu0 0.0
    %2060 = vmatpush1.xpose.msra.mxu0 0.0
    %2061 = vmatprep.subr.mxu0 0.0
    %2062 = vmatpush1.xpose.msra.mxu0 0.0
    %2063 = vmatprep.subr.mxu0 0.0
    %2064 = vmatpush1.xpose.msra.mxu0 0.0
    %2065 = vmatprep.subr.mxu0 0.0
    %2066 = vmatpush1.xpose.msra.mxu0 0.0
    %2067 = vmatprep.subr.mxu0 0.0
    %2068 = vmatpush1.xpose.msra.mxu0 0.0
    %2069 = vmatprep.subr.mxu0 0.0
    %2070 = vmatpush1.xpose.msra.mxu0 %v2037
    %2071 = vmatprep.subr.mxu0 0.0
    %2072 = vmatpush2.xpose.msra.mxu0 0.0
    %2073 = vmatprep.subr.mxu0 0.0
    %2074 = vmatpush2.xpose.msra.mxu0 0.0
    %2075 = vmatprep.subr.mxu0 0.0
    %2076 = vmatpush2.xpose.msra.mxu0 0.0
    %2077 = vmatprep.subr.mxu0 0.0
    %2078 = vmatpush2.xpose.msra.mxu0 0.0
    %2079 = vmatprep.subr.mxu0 0.0
    %2080 = vmatpush2.xpose.msra.mxu0 0.0
    %2081 = vmatprep.subr.mxu0 0.0
    %2082 = vmatpush2.xpose.msra.mxu0 0.0
    %2083 = vmatprep.subr.mxu0 0.0
    %2084 = vmatpush2.xpose.msra.mxu0 0.0
    %2085 = vmatprep.subr.mxu0 0.0
    %2086 = vmatpush2.xpose.msra.mxu0 0.0
    %2087 = vmatprep.subr.mxu0 0.0
    %2088 = vmatpush2.xpose.msra.mxu0 0.0
    %2089 = vmatprep.subr.mxu0 0.0
    %2090 = vmatpush2.xpose.msra.mxu0 0.0
    %2091 = vmatprep.subr.mxu0 0.0
    %2092 = vmatpush2.xpose.msra.mxu0 0.0
    %2093 = vmatprep.subr.mxu0 0.0
    %2094 = vmatpush2.xpose.msra.mxu0 0.0
    %2095 = vmatprep.subr.mxu0 0.0
    %2096 = vmatpush2.xpose.msra.mxu0 0.0
    %2097 = vmatprep.subr.mxu0 0.0
    %2098 = vmatpush2.xpose.msra.mxu0 0.0
    %2099 = vmatprep.subr.mxu0 0.0
    %2100 = vmatpush2.xpose.msra.mxu0 0.0
    %2101 = vmatprep.subr.mxu0 0.0
    %2102 = vmatpush2.xpose.msra.mxu0 0.0
    %2103 = vmatprep.mubr.f32.mxu0 0.0
    %2104 = vmatmul.mubr.f32.gmra.mxu0 %v2035
    %v2105 = vpop.f32.mrf.mxu0
    %v2106 = vadd.f32 0.0, %v2105
    %v2107 = vpop.f32.mrf.mxu0
    %2108 = vdwg.mxu0
    %v2109 = vsel %vm308, %v2106, -inf
    %2110 = vmax.xlane.f32.xlu0 %v2109
    %v2111 = vpop.xlane.xlu0 %2110
    %v2112 = vsub.f32 %v2106, %v2111
    %v2113 = vmul.f32 %v2112, 1.442695
    %v2114 = vpow.pop %v2113
    %v2115 = vsel %vm308, %v2114, 0.0
    %2116 = vadd.xlane.f32.xlu0 %v2115
    %v2117 = vpop.xlane.xlu0 %2116
    %v2118 = vrcp.pop %v2117
    %v2119 = vmul.f32 %v2114, %v2118
    %2121 = vrot.lane.b32.xlu0 %v2030, 96
    %v2122 = vpop.permute.xlu0 %2121
    %v2125 = vsel %vm308, %v2119, 0
    %2127 = vmatprep.subr.mxu0 0.0
    %2128 = vmatpush1.msra.mxu0 0.0
    %2129 = vmatprep.subr.mxu0 0.0
    %2130 = vmatpush1.msra.mxu0 0.0
    %2131 = vmatprep.subr.mxu0 0.0
    %2132 = vmatpush1.msra.mxu0 0.0
    %2133 = vmatprep.subr.mxu0 0.0
    %2134 = vmatpush1.msra.mxu0 0.0
    %2135 = vmatprep.subr.mxu0 0.0
    %2136 = vmatpush1.msra.mxu0 0.0
    %2137 = vmatprep.subr.mxu0 0.0
    %2138 = vmatpush1.msra.mxu0 0.0
    %2139 = vmatprep.subr.mxu0 0.0
    %2140 = vmatpush1.msra.mxu0 0.0
    %2141 = vmatprep.subr.mxu0 0.0
    %2142 = vmatpush1.msra.mxu0 0.0
    %2143 = vmatprep.subr.mxu0 0.0
    %2144 = vmatpush1.msra.mxu0 0.0
    %2145 = vmatprep.subr.mxu0 0.0
    %2146 = vmatpush1.msra.mxu0 0.0
    %2147 = vmatprep.subr.mxu0 0.0
    %2148 = vmatpush1.msra.mxu0 0.0
    %2149 = vmatprep.subr.mxu0 0.0
    %2150 = vmatpush1.msra.mxu0 0.0
    %2151 = vmatprep.subr.mxu0 0.0
    %2152 = vmatpush1.msra.mxu0 0.0
    %2153 = vmatprep.subr.mxu0 0.0
    %2154 = vmatpush1.msra.mxu0 0.0
    %2155 = vmatprep.subr.mxu0 0.0
    %2156 = vmatpush1.msra.mxu0 0.0
    %2157 = vmatprep.subr.mxu0 0.0
    %2158 = vmatpush1.msra.mxu0 %v2122
    %2159 = vmatprep.subr.mxu0 0.0
    %2160 = vmatpush2.msra.mxu0 0.0
    %2161 = vmatprep.subr.mxu0 0.0
    %2162 = vmatpush2.msra.mxu0 0.0
    %2163 = vmatprep.subr.mxu0 0.0
    %2164 = vmatpush2.msra.mxu0 0.0
    %2165 = vmatprep.subr.mxu0 0.0
    %2166 = vmatpush2.msra.mxu0 0.0
    %2167 = vmatprep.subr.mxu0 0.0
    %2168 = vmatpush2.msra.mxu0 0.0
    %2169 = vmatprep.subr.mxu0 0.0
    %2170 = vmatpush2.msra.mxu0 0.0
    %2171 = vmatprep.subr.mxu0 0.0
    %2172 = vmatpush2.msra.mxu0 0.0
    %2173 = vmatprep.subr.mxu0 0.0
    %2174 = vmatpush2.msra.mxu0 0.0
    %2175 = vmatprep.subr.mxu0 0.0
    %2176 = vmatpush2.msra.mxu0 0.0
    %2177 = vmatprep.subr.mxu0 0.0
    %2178 = vmatpush2.msra.mxu0 0.0
    %2179 = vmatprep.subr.mxu0 0.0
    %2180 = vmatpush2.msra.mxu0 0.0
    %2181 = vmatprep.subr.mxu0 0.0
    %2182 = vmatpush2.msra.mxu0 0.0
    %2183 = vmatprep.subr.mxu0 0.0
    %2184 = vmatpush2.msra.mxu0 0.0
    %2185 = vmatprep.subr.mxu0 0.0
    %2186 = vmatpush2.msra.mxu0 0.0
    %2187 = vmatprep.subr.mxu0 0.0
    %2188 = vmatpush2.msra.mxu0 0.0
    %2189 = vmatprep.subr.mxu0 0.0
    %2190 = vmatpush2.msra.mxu0 0.0
    %2191 = vmatprep.mubr.f32.mxu0 0.0
    %2192 = vmatmul.mubr.f32.gmra.mxu0 %v2125
    %v2193 = vpop.f32.mrf.mxu0
    %v2194 = vadd.f32 0.0, %v2193
    %v2195 = vpop.f32.mrf.mxu0
    %2196 = vdwg.mxu0
    %v2198 = vsel %vm308, %v2029, 0
    %2200 = vmatprep.subr.mxu0 0.0
    %2201 = vmatpush1.msra.mxu0 0.0
    %2202 = vmatprep.subr.mxu0 0.0
    %2203 = vmatpush1.msra.mxu0 0.0
    %2204 = vmatprep.subr.mxu0 0.0
    %2205 = vmatpush1.msra.mxu0 0.0
    %2206 = vmatprep.subr.mxu0 0.0
    %2207 = vmatpush1.msra.mxu0 0.0
    %2208 = vmatprep.subr.mxu0 0.0
    %2209 = vmatpush1.msra.mxu0 0.0
    %2210 = vmatprep.subr.mxu0 0.0
    %2211 = vmatpush1.msra.mxu0 0.0
    %2212 = vmatprep.subr.mxu0 0.0
    %2213 = vmatpush1.msra.mxu0 0.0
    %2214 = vmatprep.subr.mxu0 0.0
    %2215 = vmatpush1.msra.mxu0 0.0
    %2216 = vmatprep.subr.mxu0 0.0
    %2217 = vmatpush1.msra.mxu0 0.0
    %2218 = vmatprep.subr.mxu0 0.0
    %2219 = vmatpush1.msra.mxu0 0.0
    %2220 = vmatprep.subr.mxu0 0.0
    %2221 = vmatpush1.msra.mxu0 0.0
    %2222 = vmatprep.subr.mxu0 0.0
    %2223 = vmatpush1.msra.mxu0 0.0
    %2224 = vmatprep.subr.mxu0 0.0
    %2225 = vmatpush1.msra.mxu0 0.0
    %2226 = vmatprep.subr.mxu0 0.0
    %2227 = vmatpush1.msra.mxu0 0.0
    %2228 = vmatprep.subr.mxu0 0.0
    %2229 = vmatpush1.msra.mxu0 0.0
    %2230 = vmatprep.subr.mxu0 0.0
    %2231 = vmatpush1.msra.mxu0 %v2030
    %2232 = vmatprep.subr.mxu0 0.0
    %2233 = vmatpush2.msra.mxu0 0.0
    %2234 = vmatprep.subr.mxu0 0.0
    %2235 = vmatpush2.msra.mxu0 0.0
    %2236 = vmatprep.subr.mxu0 0.0
    %2237 = vmatpush2.msra.mxu0 0.0
    %2238 = vmatprep.subr.mxu0 0.0
    %2239 = vmatpush2.msra.mxu0 0.0
    %2240 = vmatprep.subr.mxu0 0.0
    %2241 = vmatpush2.msra.mxu0 0.0
    %2242 = vmatprep.subr.mxu0 0.0
    %2243 = vmatpush2.msra.mxu0 0.0
    %2244 = vmatprep.subr.mxu0 0.0
    %2245 = vmatpush2.msra.mxu0 0.0
    %2246 = vmatprep.subr.mxu0 0.0
    %2247 = vmatpush2.msra.mxu0 0.0
    %2248 = vmatprep.subr.mxu0 0.0
    %2249 = vmatpush2.msra.mxu0 0.0
    %2250 = vmatprep.subr.mxu0 0.0
    %2251 = vmatpush2.msra.mxu0 0.0
    %2252 = vmatprep.subr.mxu0 0.0
    %2253 = vmatpush2.msra.mxu0 0.0
    %2254 = vmatprep.subr.mxu0 0.0
    %2255 = vmatpush2.msra.mxu0 0.0
    %2256 = vmatprep.subr.mxu0 0.0
    %2257 = vmatpush2.msra.mxu0 0.0
    %2258 = vmatprep.subr.mxu0 0.0
    %2259 = vmatpush2.msra.mxu0 0.0
    %2260 = vmatprep.subr.mxu0 0.0
    %2261 = vmatpush2.msra.mxu0 0.0
    %2262 = vmatprep.subr.mxu0 0.0
    %2263 = vmatpush2.msra.mxu0 0.0
    %2264 = vmatprep.mubr.f32.mxu0 0.0
    %2265 = vmatmul.mubr.f32.gmra.mxu0 %v2198
    %v2266 = vpop.f32.mrf.mxu0
    %v2267 = vadd.f32 %v2194, %v2266
    %v2268 = vpop.f32.mrf.mxu0
    %2269 = vdwg.mxu0
    %2270 = vrot.lane.b32.xlu0 %v1941, 112
    %v2271 = vpop.permute.xlu0 %2270
    %2272 = vrot.lane.b32.xlu0 %v1942, 112
    %v2273 = vpop.permute.xlu0 %2272
    %v2274 = vsel %vm308, %v2271, 0
    %v2276 = vsel %vm308, %v2273, 0
    %2278 = vmatprep.subr.mxu0 0.0
    %2279 = vmatpush1.xpose.msra.mxu0 0.0
    %2280 = vmatprep.subr.mxu0 0.0
    %2281 = vmatpush1.xpose.msra.mxu0 0.0
    %2282 = vmatprep.subr.mxu0 0.0
    %2283 = vmatpush1.xpose.msra.mxu0 0.0
    %2284 = vmatprep.subr.mxu0 0.0
    %2285 = vmatpush1.xpose.msra.mxu0 0.0
    %2286 = vmatprep.subr.mxu0 0.0
    %2287 = vmatpush1.xpose.msra.mxu0 0.0
    %2288 = vmatprep.subr.mxu0 0.0
    %2289 = vmatpush1.xpose.msra.mxu0 0.0
    %2290 = vmatprep.subr.mxu0 0.0
    %2291 = vmatpush1.xpose.msra.mxu0 0.0
    %2292 = vmatprep.subr.mxu0 0.0
    %2293 = vmatpush1.xpose.msra.mxu0 0.0
    %2294 = vmatprep.subr.mxu0 0.0
    %2295 = vmatpush1.xpose.msra.mxu0 0.0
    %2296 = vmatprep.subr.mxu0 0.0
    %2297 = vmatpush1.xpose.msra.mxu0 0.0
    %2298 = vmatprep.subr.mxu0 0.0
    %2299 = vmatpush1.xpose.msra.mxu0 0.0
    %2300 = vmatprep.subr.mxu0 0.0
    %2301 = vmatpush1.xpose.msra.mxu0 0.0
    %2302 = vmatprep.subr.mxu0 0.0
    %2303 = vmatpush1.xpose.msra.mxu0 0.0
    %2304 = vmatprep.subr.mxu0 0.0
    %2305 = vmatpush1.xpose.msra.mxu0 0.0
    %2306 = vmatprep.subr.mxu0 0.0
    %2307 = vmatpush1.xpose.msra.mxu0 0.0
    %2308 = vmatprep.subr.mxu0 0.0
    %2309 = vmatpush1.xpose.msra.mxu0 %v2276
    %2310 = vmatprep.subr.mxu0 0.0
    %2311 = vmatpush2.xpose.msra.mxu0 0.0
    %2312 = vmatprep.subr.mxu0 0.0
    %2313 = vmatpush2.xpose.msra.mxu0 0.0
    %2314 = vmatprep.subr.mxu0 0.0
    %2315 = vmatpush2.xpose.msra.mxu0 0.0
    %2316 = vmatprep.subr.mxu0 0.0
    %2317 = vmatpush2.xpose.msra.mxu0 0.0
    %2318 = vmatprep.subr.mxu0 0.0
    %2319 = vmatpush2.xpose.msra.mxu0 0.0
    %2320 = vmatprep.subr.mxu0 0.0
    %2321 = vmatpush2.xpose.msra.mxu0 0.0
    %2322 = vmatprep.subr.mxu0 0.0
    %2323 = vmatpush2.xpose.msra.mxu0 0.0
    %2324 = vmatprep.subr.mxu0 0.0
    %2325 = vmatpush2.xpose.msra.mxu0 0.0
    %2326 = vmatprep.subr.mxu0 0.0
    %2327 = vmatpush2.xpose.msra.mxu0 0.0
    %2328 = vmatprep.subr.mxu0 0.0
    %2329 = vmatpush2.xpose.msra.mxu0 0.0
    %2330 = vmatprep.subr.mxu0 0.0
    %2331 = vmatpush2.xpose.msra.mxu0 0.0
    %2332 = vmatprep.subr.mxu0 0.0
    %2333 = vmatpush2.xpose.msra.mxu0 0.0
    %2334 = vmatprep.subr.mxu0 0.0
    %2335 = vmatpush2.xpose.msra.mxu0 0.0
    %2336 = vmatprep.subr.mxu0 0.0
    %2337 = vmatpush2.xpose.msra.mxu0 0.0
    %2338 = vmatprep.subr.mxu0 0.0
    %2339 = vmatpush2.xpose.msra.mxu0 0.0
    %2340 = vmatprep.subr.mxu0 0.0
    %2341 = vmatpush2.xpose.msra.mxu0 0.0
    %2342 = vmatprep.mubr.f32.mxu0 0.0
    %2343 = vmatmul.mubr.f32.gmra.mxu0 %v2274
    %v2344 = vpop.f32.mrf.mxu0
    %v2345 = vadd.f32 0.0, %v2344
    %v2346 = vpop.f32.mrf.mxu0
    %2347 = vdwg.mxu0
    %v2348 = vsel %vm308, %v2345, -inf
    %2349 = vmax.xlane.f32.xlu0 %v2348
    %v2350 = vpop.xlane.xlu0 %2349
    %v2351 = vsub.f32 %v2345, %v2350
    %v2352 = vmul.f32 %v2351, 1.442695
    %v2353 = vpow.pop %v2352
    %v2354 = vsel %vm308, %v2353, 0.0
    %2355 = vadd.xlane.f32.xlu0 %v2354
    %v2356 = vpop.xlane.xlu0 %2355
    %v2357 = vrcp.pop %v2356
    %v2358 = vmul.f32 %v2353, %v2357
    %2359 = vrot.lane.b32.xlu0 %v2030, 64
    %v2360 = vpop.permute.xlu0 %2359
    %v2363 = vsel %vm308, %v2358, 0
    %2365 = vmatprep.subr.mxu0 0.0
    %2366 = vmatpush1.msra.mxu0 0.0
    %2367 = vmatprep.subr.mxu0 0.0
    %2368 = vmatpush1.msra.mxu0 0.0
    %2369 = vmatprep.subr.mxu0 0.0
    %2370 = vmatpush1.msra.mxu0 0.0
    %2371 = vmatprep.subr.mxu0 0.0
    %2372 = vmatpush1.msra.mxu0 0.0
    %2373 = vmatprep.subr.mxu0 0.0
    %2374 = vmatpush1.msra.mxu0 0.0
    %2375 = vmatprep.subr.mxu0 0.0
    %2376 = vmatpush1.msra.mxu0 0.0
    %2377 = vmatprep.subr.mxu0 0.0
    %2378 = vmatpush1.msra.mxu0 0.0
    %2379 = vmatprep.subr.mxu0 0.0
    %2380 = vmatpush1.msra.mxu0 0.0
    %2381 = vmatprep.subr.mxu0 0.0
    %2382 = vmatpush1.msra.mxu0 0.0
    %2383 = vmatprep.subr.mxu0 0.0
    %2384 = vmatpush1.msra.mxu0 0.0
    %2385 = vmatprep.subr.mxu0 0.0
    %2386 = vmatpush1.msra.mxu0 0.0
    %2387 = vmatprep.subr.mxu0 0.0
    %2388 = vmatpush1.msra.mxu0 0.0
    %2389 = vmatprep.subr.mxu0 0.0
    %2390 = vmatpush1.msra.mxu0 0.0
    %2391 = vmatprep.subr.mxu0 0.0
    %2392 = vmatpush1.msra.mxu0 0.0
    %2393 = vmatprep.subr.mxu0 0.0
    %2394 = vmatpush1.msra.mxu0 0.0
    %2395 = vmatprep.subr.mxu0 0.0
    %2396 = vmatpush1.msra.mxu0 %v2360
    %2397 = vmatprep.subr.mxu0 0.0
    %2398 = vmatpush2.msra.mxu0 0.0
    %2399 = vmatprep.subr.mxu0 0.0
    %2400 = vmatpush2.msra.mxu0 0.0
    %2401 = vmatprep.subr.mxu0 0.0
    %2402 = vmatpush2.msra.mxu0 0.0
    %2403 = vmatprep.subr.mxu0 0.0
    %2404 = vmatpush2.msra.mxu0 0.0
    %2405 = vmatprep.subr.mxu0 0.0
    %2406 = vmatpush2.msra.mxu0 0.0
    %2407 = vmatprep.subr.mxu0 0.0
    %2408 = vmatpush2.msra.mxu0 0.0
    %2409 = vmatprep.subr.mxu0 0.0
    %2410 = vmatpush2.msra.mxu0 0.0
    %2411 = vmatprep.subr.mxu0 0.0
    %2412 = vmatpush2.msra.mxu0 0.0
    %2413 = vmatprep.subr.mxu0 0.0
    %2414 = vmatpush2.msra.mxu0 0.0
    %2415 = vmatprep.subr.mxu0 0.0
    %2416 = vmatpush2.msra.mxu0 0.0
    %2417 = vmatprep.subr.mxu0 0.0
    %2418 = vmatpush2.msra.mxu0 0.0
    %2419 = vmatprep.subr.mxu0 0.0
    %2420 = vmatpush2.msra.mxu0 0.0
    %2421 = vmatprep.subr.mxu0 0.0
    %2422 = vmatpush2.msra.mxu0 0.0
    %2423 = vmatprep.subr.mxu0 0.0
    %2424 = vmatpush2.msra.mxu0 0.0
    %2425 = vmatprep.subr.mxu0 0.0
    %2426 = vmatpush2.msra.mxu0 0.0
    %2427 = vmatprep.subr.mxu0 0.0
    %2428 = vmatpush2.msra.mxu0 0.0
    %2429 = vmatprep.mubr.f32.mxu0 0.0
    %2430 = vmatmul.mubr.f32.gmra.mxu0 %v2363
    %v2431 = vpop.f32.mrf.mxu0
    %v2432 = vadd.f32 0.0, %v2431
    %v2433 = vpop.f32.mrf.mxu0
    %2434 = vdwg.mxu0
    %v2435 = vadd.f32 %v2267, %v2432
    %2436 = vrot.lane.b32.xlu0 %v1941, 104
    %v2437 = vpop.permute.xlu0 %2436
    %2438 = vrot.lane.b32.xlu0 %v1942, 104
    %v2439 = vpop.permute.xlu0 %2438
    %v2440 = vsel %vm308, %v2437, 0
    %v2442 = vsel %vm308, %v2439, 0
    %2444 = vmatprep.subr.mxu0 0.0
    %2445 = vmatpush1.xpose.msra.mxu0 0.0
    %2446 = vmatprep.subr.mxu0 0.0
    %2447 = vmatpush1.xpose.msra.mxu0 0.0
    %2448 = vmatprep.subr.mxu0 0.0
    %2449 = vmatpush1.xpose.msra.mxu0 0.0
    %2450 = vmatprep.subr.mxu0 0.0
    %2451 = vmatpush1.xpose.msra.mxu0 0.0
    %2452 = vmatprep.subr.mxu0 0.0
    %2453 = vmatpush1.xpose.msra.mxu0 0.0
    %2454 = vmatprep.subr.mxu0 0.0
    %2455 = vmatpush1.xpose.msra.mxu0 0.0
    %2456 = vmatprep.subr.mxu0 0.0
    %2457 = vmatpush1.xpose.msra.mxu0 0.0
    %2458 = vmatprep.subr.mxu0 0.0
    %2459 = vmatpush1.xpose.msra.mxu0 0.0
    %2460 = vmatprep.subr.mxu0 0.0
    %2461 = vmatpush1.xpose.msra.mxu0 0.0
    %2462 = vmatprep.subr.mxu0 0.0
    %2463 = vmatpush1.xpose.msra.mxu0 0.0
    %2464 = vmatprep.subr.mxu0 0.0
    %2465 = vmatpush1.xpose.msra.mxu0 0.0
    %2466 = vmatprep.subr.mxu0 0.0
    %2467 = vmatpush1.xpose.msra.mxu0 0.0
    %2468 = vmatprep.subr.mxu0 0.0
    %2469 = vmatpush1.xpose.msra.mxu0 0.0
    %2470 = vmatprep.subr.mxu0 0.0
    %2471 = vmatpush1.xpose.msra.mxu0 0.0
    %2472 = vmatprep.subr.mxu0 0.0
    %2473 = vmatpush1.xpose.msra.mxu0 0.0
    %2474 = vmatprep.subr.mxu0 0.0
    %2475 = vmatpush1.xpose.msra.mxu0 %v2442
    %2476 = vmatprep.subr.mxu0 0.0
    %2477 = vmatpush2.xpose.msra.mxu0 0.0
    %2478 = vmatprep.subr.mxu0 0.0
    %2479 = vmatpush2.xpose.msra.mxu0 0.0
    %2480 = vmatprep.subr.mxu0 0.0
    %2481 = vmatpush2.xpose.msra.mxu0 0.0
    %2482 = vmatprep.subr.mxu0 0.0
    %2483 = vmatpush2.xpose.msra.mxu0 0.0
    %2484 = vmatprep.subr.mxu0 0.0
    %2485 = vmatpush2.xpose.msra.mxu0 0.0
    %2486 = vmatprep.subr.mxu0 0.0
    %2487 = vmatpush2.xpose.msra.mxu0 0.0
    %2488 = vmatprep.subr.mxu0 0.0
    %2489 = vmatpush2.xpose.msra.mxu0 0.0
    %2490 = vmatprep.subr.mxu0 0.0
    %2491 = vmatpush2.xpose.msra.mxu0 0.0
    %2492 = vmatprep.subr.mxu0 0.0
    %2493 = vmatpush2.xpose.msra.mxu0 0.0
    %2494 = vmatprep.subr.mxu0 0.0
    %2495 = vmatpush2.xpose.msra.mxu0 0.0
    %2496 = vmatprep.subr.mxu0 0.0
    %2497 = vmatpush2.xpose.msra.mxu0 0.0
    %2498 = vmatprep.subr.mxu0 0.0
    %2499 = vmatpush2.xpose.msra.mxu0 0.0
    %2500 = vmatprep.subr.mxu0 0.0
    %2501 = vmatpush2.xpose.msra.mxu0 0.0
    %2502 = vmatprep.subr.mxu0 0.0
    %2503 = vmatpush2.xpose.msra.mxu0 0.0
    %2504 = vmatprep.subr.mxu0 0.0
    %2505 = vmatpush2.xpose.msra.mxu0 0.0
    %2506 = vmatprep.subr.mxu0 0.0
    %2507 = vmatpush2.xpose.msra.mxu0 0.0
    %2508 = vmatprep.mubr.f32.mxu0 0.0
    %2509 = vmatmul.mubr.f32.gmra.mxu0 %v2440
    %v2510 = vpop.f32.mrf.mxu0
    %v2511 = vadd.f32 0.0, %v2510
    %v2512 = vpop.f32.mrf.mxu0
    %2513 = vdwg.mxu0
    %v2514 = vsel %vm308, %v2511, -inf
    %2515 = vmax.xlane.f32.xlu0 %v2514
    %v2516 = vpop.xlane.xlu0 %2515
    %v2517 = vsub.f32 %v2511, %v2516
    %v2518 = vmul.f32 %v2517, 1.442695
    %v2519 = vpow.pop %v2518
    %v2520 = vsel %vm308, %v2519, 0.0
    %2521 = vadd.xlane.f32.xlu0 %v2520
    %v2522 = vpop.xlane.xlu0 %2521
    %v2523 = vrcp.pop %v2522
    %v2524 = vmul.f32 %v2519, %v2523
    %2525 = vrot.lane.b32.xlu0 %v2030, 32
    %v2526 = vpop.permute.xlu0 %2525
    %v2529 = vsel %vm308, %v2524, 0
    %2531 = vmatprep.subr.mxu0 0.0
    %2532 = vmatpush1.msra.mxu0 0.0
    %2533 = vmatprep.subr.mxu0 0.0
    %2534 = vmatpush1.msra.mxu0 0.0
    %2535 = vmatprep.subr.mxu0 0.0
    %2536 = vmatpush1.msra.mxu0 0.0
    %2537 = vmatprep.subr.mxu0 0.0
    %2538 = vmatpush1.msra.mxu0 0.0
    %2539 = vmatprep.subr.mxu0 0.0
    %2540 = vmatpush1.msra.mxu0 0.0
    %2541 = vmatprep.subr.mxu0 0.0
    %2542 = vmatpush1.msra.mxu0 0.0
    %2543 = vmatprep.subr.mxu0 0.0
    %2544 = vmatpush1.msra.mxu0 0.0
    %2545 = vmatprep.subr.mxu0 0.0
    %2546 = vmatpush1.msra.mxu0 0.0
    %2547 = vmatprep.subr.mxu0 0.0
    %2548 = vmatpush1.msra.mxu0 0.0
    %2549 = vmatprep.subr.mxu0 0.0
    %2550 = vmatpush1.msra.mxu0 0.0
    %2551 = vmatprep.subr.mxu0 0.0
    %2552 = vmatpush1.msra.mxu0 0.0
    %2553 = vmatprep.subr.mxu0 0.0
    %2554 = vmatpush1.msra.mxu0 0.0
    %2555 = vmatprep.subr.mxu0 0.0
    %2556 = vmatpush1.msra.mxu0 0.0
    %2557 = vmatprep.subr.mxu0 0.0
    %2558 = vmatpush1.msra.mxu0 0.0
    %2559 = vmatprep.subr.mxu0 0.0
    %2560 = vmatpush1.msra.mxu0 0.0
    %2561 = vmatprep.subr.mxu0 0.0
    %2562 = vmatpush1.msra.mxu0 %v2526
    %2563 = vmatprep.subr.mxu0 0.0
    %2564 = vmatpush2.msra.mxu0 0.0
    %2565 = vmatprep.subr.mxu0 0.0
    %2566 = vmatpush2.msra.mxu0 0.0
    %2567 = vmatprep.subr.mxu0 0.0
    %2568 = vmatpush2.msra.mxu0 0.0
    %2569 = vmatprep.subr.mxu0 0.0
    %2570 = vmatpush2.msra.mxu0 0.0
    %2571 = vmatprep.subr.mxu0 0.0
    %2572 = vmatpush2.msra.mxu0 0.0
    %2573 = vmatprep.subr.mxu0 0.0
    %2574 = vmatpush2.msra.mxu0 0.0
    %2575 = vmatprep.subr.mxu0 0.0
    %2576 = vmatpush2.msra.mxu0 0.0
    %2577 = vmatprep.subr.mxu0 0.0
    %2578 = vmatpush2.msra.mxu0 0.0
    %2579 = vmatprep.subr.mxu0 0.0
    %2580 = vmatpush2.msra.mxu0 0.0
    %2581 = vmatprep.subr.mxu0 0.0
    %2582 = vmatpush2.msra.mxu0 0.0
    %2583 = vmatprep.subr.mxu0 0.0
    %2584 = vmatpush2.msra.mxu0 0.0
    %2585 = vmatprep.subr.mxu0 0.0
    %2586 = vmatpush2.msra.mxu0 0.0
    %2587 = vmatprep.subr.mxu0 0.0
    %2588 = vmatpush2.msra.mxu0 0.0
    %2589 = vmatprep.subr.mxu0 0.0
    %2590 = vmatpush2.msra.mxu0 0.0
    %2591 = vmatprep.subr.mxu0 0.0
    %2592 = vmatpush2.msra.mxu0 0.0
    %2593 = vmatprep.subr.mxu0 0.0
    %2594 = vmatpush2.msra.mxu0 0.0
    %2595 = vmatprep.mubr.f32.mxu0 0.0
    %2596 = vmatmul.mubr.f32.gmra.mxu0 %v2529
    %v2597 = vpop.f32.mrf.mxu0
    %v2598 = vadd.f32 0.0, %v2597
    %v2599 = vpop.f32.mrf.mxu0
    %2600 = vdwg.mxu0
    %v2601 = vadd.f32 %v2435, %v2598
    %v2602 = vlaneseq
    %v2603 = vshrl.u32 %v2602, 7
    %v2604 = vsub.s32 2, %v2603
    %v2605 = vrot.slane %v1690, %v2604
    %v2606 = vadd.f32 %v2601, %v2605
    %2607 = vst.msk [vmem:[#allocation5] sm:$0xff] %vm64, %v2606
    %v2608 = vld [vmem:[#allocation2 + $0x8] sm:$0xff]
    %v2609 = vld [vmem:[#allocation3 + $0x8] sm:$0xff]
    %v2611 = vsel %vm308, %v2608, 0
    %v2614 = vsel %vm308, %v2609, 0
    %2616 = vmatprep.subr.mxu0 0.0
    %2617 = vmatpush1.xpose.msra.mxu0 0.0
    %2618 = vmatprep.subr.mxu0 0.0
    %2619 = vmatpush1.xpose.msra.mxu0 0.0
    %2620 = vmatprep.subr.mxu0 0.0
    %2621 = vmatpush1.xpose.msra.mxu0 0.0
    %2622 = vmatprep.subr.mxu0 0.0
    %2623 = vmatpush1.xpose.msra.mxu0 0.0
    %2624 = vmatprep.subr.mxu0 0.0
    %2625 = vmatpush1.xpose.msra.mxu0 0.0
    %2626 = vmatprep.subr.mxu0 0.0
    %2627 = vmatpush1.xpose.msra.mxu0 0.0
    %2628 = vmatprep.subr.mxu0 0.0
    %2629 = vmatpush1.xpose.msra.mxu0 0.0
    %2630 = vmatprep.subr.mxu0 0.0
    %2631 = vmatpush1.xpose.msra.mxu0 0.0
    %2632 = vmatprep.subr.mxu0 0.0
    %2633 = vmatpush1.xpose.msra.mxu0 0.0
    %2634 = vmatprep.subr.mxu0 0.0
    %2635 = vmatpush1.xpose.msra.mxu0 0.0
    %2636 = vmatprep.subr.mxu0 0.0
    %2637 = vmatpush1.xpose.msra.mxu0 0.0
    %2638 = vmatprep.subr.mxu0 0.0
    %2639 = vmatpush1.xpose.msra.mxu0 0.0
    %2640 = vmatprep.subr.mxu0 0.0
    %2641 = vmatpush1.xpose.msra.mxu0 0.0
    %2642 = vmatprep.subr.mxu0 0.0
    %2643 = vmatpush1.xpose.msra.mxu0 0.0
    %2644 = vmatprep.subr.mxu0 0.0
    %2645 = vmatpush1.xpose.msra.mxu0 0.0
    %2646 = vmatprep.subr.mxu0 0.0
    %2647 = vmatpush1.xpose.msra.mxu0 %v2614
    %2648 = vmatprep.subr.mxu0 0.0
    %2649 = vmatpush2.xpose.msra.mxu0 0.0
    %2650 = vmatprep.subr.mxu0 0.0
    %2651 = vmatpush2.xpose.msra.mxu0 0.0
    %2652 = vmatprep.subr.mxu0 0.0
    %2653 = vmatpush2.xpose.msra.mxu0 0.0
    %2654 = vmatprep.subr.mxu0 0.0
    %2655 = vmatpush2.xpose.msra.mxu0 0.0
    %2656 = vmatprep.subr.mxu0 0.0
    %2657 = vmatpush2.xpose.msra.mxu0 0.0
    %2658 = vmatprep.subr.mxu0 0.0
    %2659 = vmatpush2.xpose.msra.mxu0 0.0
    %2660 = vmatprep.subr.mxu0 0.0
    %2661 = vmatpush2.xpose.msra.mxu0 0.0
    %2662 = vmatprep.subr.mxu0 0.0
    %2663 = vmatpush2.xpose.msra.mxu0 0.0
    %2664 = vmatprep.subr.mxu0 0.0
    %2665 = vmatpush2.xpose.msra.mxu0 0.0
    %2666 = vmatprep.subr.mxu0 0.0
    %2667 = vmatpush2.xpose.msra.mxu0 0.0
    %2668 = vmatprep.subr.mxu0 0.0
    %2669 = vmatpush2.xpose.msra.mxu0 0.0
    %2670 = vmatprep.subr.mxu0 0.0
    %2671 = vmatpush2.xpose.msra.mxu0 0.0
    %2672 = vmatprep.subr.mxu0 0.0
    %2673 = vmatpush2.xpose.msra.mxu0 0.0
    %2674 = vmatprep.subr.mxu0 0.0
    %2675 = vmatpush2.xpose.msra.mxu0 0.0
    %2676 = vmatprep.subr.mxu0 0.0
    %2677 = vmatpush2.xpose.msra.mxu0 0.0
    %2678 = vmatprep.subr.mxu0 0.0
    %2679 = vmatpush2.xpose.msra.mxu0 0.0
    %2680 = vmatprep.mubr.f32.mxu0 0.0
    %2681 = vmatmul.mubr.f32.gmra.mxu0 %v2611
    %v2682 = vpop.f32.mrf.mxu0
    %v2683 = vadd.f32 0.0, %v2682
    %v2684 = vpop.f32.mrf.mxu0
    %2685 = vdwg.mxu0
    %v2686 = vsel %vm308, %v2683, -inf
    %2687 = vmax.xlane.f32.xlu0 %v2686
    %v2688 = vpop.xlane.xlu0 %2687
    %v2689 = vsub.f32 %v2683, %v2688
    %v2690 = vmul.f32 %v2689, 1.442695
    %v2691 = vpow.pop %v2690
    %v2692 = vsel %vm308, %v2691, 0.0
    %2693 = vadd.xlane.f32.xlu0 %v2692
    %v2694 = vpop.xlane.xlu0 %2693
    %v2695 = vrcp.pop %v2694
    %v2696 = vmul.f32 %v2691, %v2695
    %v2697 = vld [vmem:[#allocation4 + $0x8] sm:$0xff]
    %2698 = vrot.lane.b32.xlu0 %v2608, 120
    %v2699 = vpop.permute.xlu0 %2698
    %2700 = vrot.lane.b32.xlu0 %v2609, 120
    %v2701 = vpop.permute.xlu0 %2700
    %v2702 = vsel %vm308, %v2699, 0
    %v2704 = vsel %vm308, %v2701, 0
    %2706 = vmatprep.subr.mxu0 0.0
    %2707 = vmatpush1.xpose.msra.mxu0 0.0
    %2708 = vmatprep.subr.mxu0 0.0
    %2709 = vmatpush1.xpose.msra.mxu0 0.0
    %2710 = vmatprep.subr.mxu0 0.0
    %2711 = vmatpush1.xpose.msra.mxu0 0.0
    %2712 = vmatprep.subr.mxu0 0.0
    %2713 = vmatpush1.xpose.msra.mxu0 0.0
    %2714 = vmatprep.subr.mxu0 0.0
    %2715 = vmatpush1.xpose.msra.mxu0 0.0
    %2716 = vmatprep.subr.mxu0 0.0
    %2717 = vmatpush1.xpose.msra.mxu0 0.0
    %2718 = vmatprep.subr.mxu0 0.0
    %2719 = vmatpush1.xpose.msra.mxu0 0.0
    %2720 = vmatprep.subr.mxu0 0.0
    %2721 = vmatpush1.xpose.msra.mxu0 0.0
    %2722 = vmatprep.subr.mxu0 0.0
    %2723 = vmatpush1.xpose.msra.mxu0 0.0
    %2724 = vmatprep.subr.mxu0 0.0
    %2725 = vmatpush1.xpose.msra.mxu0 0.0
    %2726 = vmatprep.subr.mxu0 0.0
    %2727 = vmatpush1.xpose.msra.mxu0 0.0
    %2728 = vmatprep.subr.mxu0 0.0
    %2729 = vmatpush1.xpose.msra.mxu0 0.0
    %2730 = vmatprep.subr.mxu0 0.0
    %2731 = vmatpush1.xpose.msra.mxu0 0.0
    %2732 = vmatprep.subr.mxu0 0.0
    %2733 = vmatpush1.xpose.msra.mxu0 0.0
    %2734 = vmatprep.subr.mxu0 0.0
    %2735 = vmatpush1.xpose.msra.mxu0 0.0
    %2736 = vmatprep.subr.mxu0 0.0
    %2737 = vmatpush1.xpose.msra.mxu0 %v2704
    %2738 = vmatprep.subr.mxu0 0.0
    %2739 = vmatpush2.xpose.msra.mxu0 0.0
    %2740 = vmatprep.subr.mxu0 0.0
    %2741 = vmatpush2.xpose.msra.mxu0 0.0
    %2742 = vmatprep.subr.mxu0 0.0
    %2743 = vmatpush2.xpose.msra.mxu0 0.0
    %2744 = vmatprep.subr.mxu0 0.0
    %2745 = vmatpush2.xpose.msra.mxu0 0.0
    %2746 = vmatprep.subr.mxu0 0.0
    %2747 = vmatpush2.xpose.msra.mxu0 0.0
    %2748 = vmatprep.subr.mxu0 0.0
    %2749 = vmatpush2.xpose.msra.mxu0 0.0
    %2750 = vmatprep.subr.mxu0 0.0
    %2751 = vmatpush2.xpose.msra.mxu0 0.0
    %2752 = vmatprep.subr.mxu0 0.0
    %2753 = vmatpush2.xpose.msra.mxu0 0.0
    %2754 = vmatprep.subr.mxu0 0.0
    %2755 = vmatpush2.xpose.msra.mxu0 0.0
    %2756 = vmatprep.subr.mxu0 0.0
    %2757 = vmatpush2.xpose.msra.mxu0 0.0
    %2758 = vmatprep.subr.mxu0 0.0
    %2759 = vmatpush2.xpose.msra.mxu0 0.0
    %2760 = vmatprep.subr.mxu0 0.0
    %2761 = vmatpush2.xpose.msra.mxu0 0.0
    %2762 = vmatprep.subr.mxu0 0.0
    %2763 = vmatpush2.xpose.msra.mxu0 0.0
    %2764 = vmatprep.subr.mxu0 0.0
    %2765 = vmatpush2.xpose.msra.mxu0 0.0
    %2766 = vmatprep.subr.mxu0 0.0
    %2767 = vmatpush2.xpose.msra.mxu0 0.0
    %2768 = vmatprep.subr.mxu0 0.0
    %2769 = vmatpush2.xpose.msra.mxu0 0.0
    %2770 = vmatprep.mubr.f32.mxu0 0.0
    %2771 = vmatmul.mubr.f32.gmra.mxu0 %v2702
    %v2772 = vpop.f32.mrf.mxu0
    %v2773 = vadd.f32 0.0, %v2772
    %v2774 = vpop.f32.mrf.mxu0
    %2775 = vdwg.mxu0
    %v2776 = vsel %vm308, %v2773, -inf
    %2777 = vmax.xlane.f32.xlu0 %v2776
    %v2778 = vpop.xlane.xlu0 %2777
    %v2779 = vsub.f32 %v2773, %v2778
    %v2780 = vmul.f32 %v2779, 1.442695
    %v2781 = vpow.pop %v2780
    %v2782 = vsel %vm308, %v2781, 0.0
    %2783 = vadd.xlane.f32.xlu0 %v2782
    %v2784 = vpop.xlane.xlu0 %2783
    %v2785 = vrcp.pop %v2784
    %v2786 = vmul.f32 %v2781, %v2785
    %2788 = vrot.lane.b32.xlu0 %v2697, 96
    %v2789 = vpop.permute.xlu0 %2788
    %v2792 = vsel %vm308, %v2786, 0
    %2794 = vmatprep.subr.mxu0 0.0
    %2795 = vmatpush1.msra.mxu0 0.0
    %2796 = vmatprep.subr.mxu0 0.0
    %2797 = vmatpush1.msra.mxu0 0.0
    %2798 = vmatprep.subr.mxu0 0.0
    %2799 = vmatpush1.msra.mxu0 0.0
    %2800 = vmatprep.subr.mxu0 0.0
    %2801 = vmatpush1.msra.mxu0 0.0
    %2802 = vmatprep.subr.mxu0 0.0
    %2803 = vmatpush1.msra.mxu0 0.0
    %2804 = vmatprep.subr.mxu0 0.0
    %2805 = vmatpush1.msra.mxu0 0.0
    %2806 = vmatprep.subr.mxu0 0.0
    %2807 = vmatpush1.msra.mxu0 0.0
    %2808 = vmatprep.subr.mxu0 0.0
    %2809 = vmatpush1.msra.mxu0 0.0
    %2810 = vmatprep.subr.mxu0 0.0
    %2811 = vmatpush1.msra.mxu0 0.0
    %2812 = vmatprep.subr.mxu0 0.0
    %2813 = vmatpush1.msra.mxu0 0.0
    %2814 = vmatprep.subr.mxu0 0.0
    %2815 = vmatpush1.msra.mxu0 0.0
    %2816 = vmatprep.subr.mxu0 0.0
    %2817 = vmatpush1.msra.mxu0 0.0
    %2818 = vmatprep.subr.mxu0 0.0
    %2819 = vmatpush1.msra.mxu0 0.0
    %2820 = vmatprep.subr.mxu0 0.0
    %2821 = vmatpush1.msra.mxu0 0.0
    %2822 = vmatprep.subr.mxu0 0.0
    %2823 = vmatpush1.msra.mxu0 0.0
    %2824 = vmatprep.subr.mxu0 0.0
    %2825 = vmatpush1.msra.mxu0 %v2789
    %2826 = vmatprep.subr.mxu0 0.0
    %2827 = vmatpush2.msra.mxu0 0.0
    %2828 = vmatprep.subr.mxu0 0.0
    %2829 = vmatpush2.msra.mxu0 0.0
    %2830 = vmatprep.subr.mxu0 0.0
    %2831 = vmatpush2.msra.mxu0 0.0
    %2832 = vmatprep.subr.mxu0 0.0
    %2833 = vmatpush2.msra.mxu0 0.0
    %2834 = vmatprep.subr.mxu0 0.0
    %2835 = vmatpush2.msra.mxu0 0.0
    %2836 = vmatprep.subr.mxu0 0.0
    %2837 = vmatpush2.msra.mxu0 0.0
    %2838 = vmatprep.subr.mxu0 0.0
    %2839 = vmatpush2.msra.mxu0 0.0
    %2840 = vmatprep.subr.mxu0 0.0
    %2841 = vmatpush2.msra.mxu0 0.0
    %2842 = vmatprep.subr.mxu0 0.0
    %2843 = vmatpush2.msra.mxu0 0.0
    %2844 = vmatprep.subr.mxu0 0.0
    %2845 = vmatpush2.msra.mxu0 0.0
    %2846 = vmatprep.subr.mxu0 0.0
    %2847 = vmatpush2.msra.mxu0 0.0
    %2848 = vmatprep.subr.mxu0 0.0
    %2849 = vmatpush2.msra.mxu0 0.0
    %2850 = vmatprep.subr.mxu0 0.0
    %2851 = vmatpush2.msra.mxu0 0.0
    %2852 = vmatprep.subr.mxu0 0.0
    %2853 = vmatpush2.msra.mxu0 0.0
    %2854 = vmatprep.subr.mxu0 0.0
    %2855 = vmatpush2.msra.mxu0 0.0
    %2856 = vmatprep.subr.mxu0 0.0
    %2857 = vmatpush2.msra.mxu0 0.0
    %2858 = vmatprep.mubr.f32.mxu0 0.0
    %2859 = vmatmul.mubr.f32.gmra.mxu0 %v2792
    %v2860 = vpop.f32.mrf.mxu0
    %v2861 = vadd.f32 0.0, %v2860
    %v2862 = vpop.f32.mrf.mxu0
    %2863 = vdwg.mxu0
    %v2865 = vsel %vm308, %v2696, 0
    %2867 = vmatprep.subr.mxu0 0.0
    %2868 = vmatpush1.msra.mxu0 0.0
    %2869 = vmatprep.subr.mxu0 0.0
    %2870 = vmatpush1.msra.mxu0 0.0
    %2871 = vmatprep.subr.mxu0 0.0
    %2872 = vmatpush1.msra.mxu0 0.0
    %2873 = vmatprep.subr.mxu0 0.0
    %2874 = vmatpush1.msra.mxu0 0.0
    %2875 = vmatprep.subr.mxu0 0.0
    %2876 = vmatpush1.msra.mxu0 0.0
    %2877 = vmatprep.subr.mxu0 0.0
    %2878 = vmatpush1.msra.mxu0 0.0
    %2879 = vmatprep.subr.mxu0 0.0
    %2880 = vmatpush1.msra.mxu0 0.0
    %2881 = vmatprep.subr.mxu0 0.0
    %2882 = vmatpush1.msra.mxu0 0.0
    %2883 = vmatprep.subr.mxu0 0.0
    %2884 = vmatpush1.msra.mxu0 0.0
    %2885 = vmatprep.subr.mxu0 0.0
    %2886 = vmatpush1.msra.mxu0 0.0
    %2887 = vmatprep.subr.mxu0 0.0
    %2888 = vmatpush1.msra.mxu0 0.0
    %2889 = vmatprep.subr.mxu0 0.0
    %2890 = vmatpush1.msra.mxu0 0.0
    %2891 = vmatprep.subr.mxu0 0.0
    %2892 = vmatpush1.msra.mxu0 0.0
    %2893 = vmatprep.subr.mxu0 0.0
    %2894 = vmatpush1.msra.mxu0 0.0
    %2895 = vmatprep.subr.mxu0 0.0
    %2896 = vmatpush1.msra.mxu0 0.0
    %2897 = vmatprep.subr.mxu0 0.0
    %2898 = vmatpush1.msra.mxu0 %v2697
    %2899 = vmatprep.subr.mxu0 0.0
    %2900 = vmatpush2.msra.mxu0 0.0
    %2901 = vmatprep.subr.mxu0 0.0
    %2902 = vmatpush2.msra.mxu0 0.0
    %2903 = vmatprep.subr.mxu0 0.0
    %2904 = vmatpush2.msra.mxu0 0.0
    %2905 = vmatprep.subr.mxu0 0.0
    %2906 = vmatpush2.msra.mxu0 0.0
    %2907 = vmatprep.subr.mxu0 0.0
    %2908 = vmatpush2.msra.mxu0 0.0
    %2909 = vmatprep.subr.mxu0 0.0
    %2910 = vmatpush2.msra.mxu0 0.0
    %2911 = vmatprep.subr.mxu0 0.0
    %2912 = vmatpush2.msra.mxu0 0.0
    %2913 = vmatprep.subr.mxu0 0.0
    %2914 = vmatpush2.msra.mxu0 0.0
    %2915 = vmatprep.subr.mxu0 0.0
    %2916 = vmatpush2.msra.mxu0 0.0
    %2917 = vmatprep.subr.mxu0 0.0
    %2918 = vmatpush2.msra.mxu0 0.0
    %2919 = vmatprep.subr.mxu0 0.0
    %2920 = vmatpush2.msra.mxu0 0.0
    %2921 = vmatprep.subr.mxu0 0.0
    %2922 = vmatpush2.msra.mxu0 0.0
    %2923 = vmatprep.subr.mxu0 0.0
    %2924 = vmatpush2.msra.mxu0 0.0
    %2925 = vmatprep.subr.mxu0 0.0
    %2926 = vmatpush2.msra.mxu0 0.0
    %2927 = vmatprep.subr.mxu0 0.0
    %2928 = vmatpush2.msra.mxu0 0.0
    %2929 = vmatprep.subr.mxu0 0.0
    %2930 = vmatpush2.msra.mxu0 0.0
    %2931 = vmatprep.mubr.f32.mxu0 0.0
    %2932 = vmatmul.mubr.f32.gmra.mxu0 %v2865
    %v2933 = vpop.f32.mrf.mxu0
    %v2934 = vadd.f32 %v2861, %v2933
    %v2935 = vpop.f32.mrf.mxu0
    %2936 = vdwg.mxu0
    %2937 = vrot.lane.b32.xlu0 %v2608, 112
    %v2938 = vpop.permute.xlu0 %2937
    %2939 = vrot.lane.b32.xlu0 %v2609, 112
    %v2940 = vpop.permute.xlu0 %2939
    %v2941 = vsel %vm308, %v2938, 0
    %v2943 = vsel %vm308, %v2940, 0
    %2945 = vmatprep.subr.mxu0 0.0
    %2946 = vmatpush1.xpose.msra.mxu0 0.0
    %2947 = vmatprep.subr.mxu0 0.0
    %2948 = vmatpush1.xpose.msra.mxu0 0.0
    %2949 = vmatprep.subr.mxu0 0.0
    %2950 = vmatpush1.xpose.msra.mxu0 0.0
    %2951 = vmatprep.subr.mxu0 0.0
    %2952 = vmatpush1.xpose.msra.mxu0 0.0
    %2953 = vmatprep.subr.mxu0 0.0
    %2954 = vmatpush1.xpose.msra.mxu0 0.0
    %2955 = vmatprep.subr.mxu0 0.0
    %2956 = vmatpush1.xpose.msra.mxu0 0.0
    %2957 = vmatprep.subr.mxu0 0.0
    %2958 = vmatpush1.xpose.msra.mxu0 0.0
    %2959 = vmatprep.subr.mxu0 0.0
    %2960 = vmatpush1.xpose.msra.mxu0 0.0
    %2961 = vmatprep.subr.mxu0 0.0
    %2962 = vmatpush1.xpose.msra.mxu0 0.0
    %2963 = vmatprep.subr.mxu0 0.0
    %2964 = vmatpush1.xpose.msra.mxu0 0.0
    %2965 = vmatprep.subr.mxu0 0.0
    %2966 = vmatpush1.xpose.msra.mxu0 0.0
    %2967 = vmatprep.subr.mxu0 0.0
    %2968 = vmatpush1.xpose.msra.mxu0 0.0
    %2969 = vmatprep.subr.mxu0 0.0
    %2970 = vmatpush1.xpose.msra.mxu0 0.0
    %2971 = vmatprep.subr.mxu0 0.0
    %2972 = vmatpush1.xpose.msra.mxu0 0.0
    %2973 = vmatprep.subr.mxu0 0.0
    %2974 = vmatpush1.xpose.msra.mxu0 0.0
    %2975 = vmatprep.subr.mxu0 0.0
    %2976 = vmatpush1.xpose.msra.mxu0 %v2943
    %2977 = vmatprep.subr.mxu0 0.0
    %2978 = vmatpush2.xpose.msra.mxu0 0.0
    %2979 = vmatprep.subr.mxu0 0.0
    %2980 = vmatpush2.xpose.msra.mxu0 0.0
    %2981 = vmatprep.subr.mxu0 0.0
    %2982 = vmatpush2.xpose.msra.mxu0 0.0
    %2983 = vmatprep.subr.mxu0 0.0
    %2984 = vmatpush2.xpose.msra.mxu0 0.0
    %2985 = vmatprep.subr.mxu0 0.0
    %2986 = vmatpush2.xpose.msra.mxu0 0.0
    %2987 = vmatprep.subr.mxu0 0.0
    %2988 = vmatpush2.xpose.msra.mxu0 0.0
    %2989 = vmatprep.subr.mxu0 0.0
    %2990 = vmatpush2.xpose.msra.mxu0 0.0
    %2991 = vmatprep.subr.mxu0 0.0
    %2992 = vmatpush2.xpose.msra.mxu0 0.0
    %2993 = vmatprep.subr.mxu0 0.0
    %2994 = vmatpush2.xpose.msra.mxu0 0.0
    %2995 = vmatprep.subr.mxu0 0.0
    %2996 = vmatpush2.xpose.msra.mxu0 0.0
    %2997 = vmatprep.subr.mxu0 0.0
    %2998 = vmatpush2.xpose.msra.mxu0 0.0
    %2999 = vmatprep.subr.mxu0 0.0
    %3000 = vmatpush2.xpose.msra.mxu0 0.0
    %3001 = vmatprep.subr.mxu0 0.0
    %3002 = vmatpush2.xpose.msra.mxu0 0.0
    %3003 = vmatprep.subr.mxu0 0.0
    %3004 = vmatpush2.xpose.msra.mxu0 0.0
    %3005 = vmatprep.subr.mxu0 0.0
    %3006 = vmatpush2.xpose.msra.mxu0 0.0
    %3007 = vmatprep.subr.mxu0 0.0
    %3008 = vmatpush2.xpose.msra.mxu0 0.0
    %3009 = vmatprep.mubr.f32.mxu0 0.0
    %3010 = vmatmul.mubr.f32.gmra.mxu0 %v2941
    %v3011 = vpop.f32.mrf.mxu0
    %v3012 = vadd.f32 0.0, %v3011
    %v3013 = vpop.f32.mrf.mxu0
    %3014 = vdwg.mxu0
    %v3015 = vsel %vm308, %v3012, -inf
    %3016 = vmax.xlane.f32.xlu0 %v3015
    %v3017 = vpop.xlane.xlu0 %3016
    %v3018 = vsub.f32 %v3012, %v3017
    %v3019 = vmul.f32 %v3018, 1.442695
    %v3020 = vpow.pop %v3019
    %v3021 = vsel %vm308, %v3020, 0.0
    %3022 = vadd.xlane.f32.xlu0 %v3021
    %v3023 = vpop.xlane.xlu0 %3022
    %v3024 = vrcp.pop %v3023
    %v3025 = vmul.f32 %v3020, %v3024
    %3026 = vrot.lane.b32.xlu0 %v2697, 64
    %v3027 = vpop.permute.xlu0 %3026
    %v3030 = vsel %vm308, %v3025, 0
    %3032 = vmatprep.subr.mxu0 0.0
    %3033 = vmatpush1.msra.mxu0 0.0
    %3034 = vmatprep.subr.mxu0 0.0
    %3035 = vmatpush1.msra.mxu0 0.0
    %3036 = vmatprep.subr.mxu0 0.0
    %3037 = vmatpush1.msra.mxu0 0.0
    %3038 = vmatprep.subr.mxu0 0.0
    %3039 = vmatpush1.msra.mxu0 0.0
    %3040 = vmatprep.subr.mxu0 0.0
    %3041 = vmatpush1.msra.mxu0 0.0
    %3042 = vmatprep.subr.mxu0 0.0
    %3043 = vmatpush1.msra.mxu0 0.0
    %3044 = vmatprep.subr.mxu0 0.0
    %3045 = vmatpush1.msra.mxu0 0.0
    %3046 = vmatprep.subr.mxu0 0.0
    %3047 = vmatpush1.msra.mxu0 0.0
    %3048 = vmatprep.subr.mxu0 0.0
    %3049 = vmatpush1.msra.mxu0 0.0
    %3050 = vmatprep.subr.mxu0 0.0
    %3051 = vmatpush1.msra.mxu0 0.0
    %3052 = vmatprep.subr.mxu0 0.0
    %3053 = vmatpush1.msra.mxu0 0.0
    %3054 = vmatprep.subr.mxu0 0.0
    %3055 = vmatpush1.msra.mxu0 0.0
    %3056 = vmatprep.subr.mxu0 0.0
    %3057 = vmatpush1.msra.mxu0 0.0
    %3058 = vmatprep.subr.mxu0 0.0
    %3059 = vmatpush1.msra.mxu0 0.0
    %3060 = vmatprep.subr.mxu0 0.0
    %3061 = vmatpush1.msra.mxu0 0.0
    %3062 = vmatprep.subr.mxu0 0.0
    %3063 = vmatpush1.msra.mxu0 %v3027
    %3064 = vmatprep.subr.mxu0 0.0
    %3065 = vmatpush2.msra.mxu0 0.0
    %3066 = vmatprep.subr.mxu0 0.0
    %3067 = vmatpush2.msra.mxu0 0.0
    %3068 = vmatprep.subr.mxu0 0.0
    %3069 = vmatpush2.msra.mxu0 0.0
    %3070 = vmatprep.subr.mxu0 0.0
    %3071 = vmatpush2.msra.mxu0 0.0
    %3072 = vmatprep.subr.mxu0 0.0
    %3073 = vmatpush2.msra.mxu0 0.0
    %3074 = vmatprep.subr.mxu0 0.0
    %3075 = vmatpush2.msra.mxu0 0.0
    %3076 = vmatprep.subr.mxu0 0.0
    %3077 = vmatpush2.msra.mxu0 0.0
    %3078 = vmatprep.subr.mxu0 0.0
    %3079 = vmatpush2.msra.mxu0 0.0
    %3080 = vmatprep.subr.mxu0 0.0
    %3081 = vmatpush2.msra.mxu0 0.0
    %3082 = vmatprep.subr.mxu0 0.0
    %3083 = vmatpush2.msra.mxu0 0.0
    %3084 = vmatprep.subr.mxu0 0.0
    %3085 = vmatpush2.msra.mxu0 0.0
    %3086 = vmatprep.subr.mxu0 0.0
    %3087 = vmatpush2.msra.mxu0 0.0
    %3088 = vmatprep.subr.mxu0 0.0
    %3089 = vmatpush2.msra.mxu0 0.0
    %3090 = vmatprep.subr.mxu0 0.0
    %3091 = vmatpush2.msra.mxu0 0.0
    %3092 = vmatprep.subr.mxu0 0.0
    %3093 = vmatpush2.msra.mxu0 0.0
    %3094 = vmatprep.subr.mxu0 0.0
    %3095 = vmatpush2.msra.mxu0 0.0
    %3096 = vmatprep.mubr.f32.mxu0 0.0
    %3097 = vmatmul.mubr.f32.gmra.mxu0 %v3030
    %v3098 = vpop.f32.mrf.mxu0
    %v3099 = vadd.f32 0.0, %v3098
    %v3100 = vpop.f32.mrf.mxu0
    %3101 = vdwg.mxu0
    %v3102 = vadd.f32 %v2934, %v3099
    %3103 = vrot.lane.b32.xlu0 %v2608, 104
    %v3104 = vpop.permute.xlu0 %3103
    %3105 = vrot.lane.b32.xlu0 %v2609, 104
    %v3106 = vpop.permute.xlu0 %3105
    %v3107 = vsel %vm308, %v3104, 0
    %v3109 = vsel %vm308, %v3106, 0
    %3111 = vmatprep.subr.mxu0 0.0
    %3112 = vmatpush1.xpose.msra.mxu0 0.0
    %3113 = vmatprep.subr.mxu0 0.0
    %3114 = vmatpush1.xpose.msra.mxu0 0.0
    %3115 = vmatprep.subr.mxu0 0.0
    %3116 = vmatpush1.xpose.msra.mxu0 0.0
    %3117 = vmatprep.subr.mxu0 0.0
    %3118 = vmatpush1.xpose.msra.mxu0 0.0
    %3119 = vmatprep.subr.mxu0 0.0
    %3120 = vmatpush1.xpose.msra.mxu0 0.0
    %3121 = vmatprep.subr.mxu0 0.0
    %3122 = vmatpush1.xpose.msra.mxu0 0.0
    %3123 = vmatprep.subr.mxu0 0.0
    %3124 = vmatpush1.xpose.msra.mxu0 0.0
    %3125 = vmatprep.subr.mxu0 0.0
    %3126 = vmatpush1.xpose.msra.mxu0 0.0
    %3127 = vmatprep.subr.mxu0 0.0
    %3128 = vmatpush1.xpose.msra.mxu0 0.0
    %3129 = vmatprep.subr.mxu0 0.0
    %3130 = vmatpush1.xpose.msra.mxu0 0.0
    %3131 = vmatprep.subr.mxu0 0.0
    %3132 = vmatpush1.xpose.msra.mxu0 0.0
    %3133 = vmatprep.subr.mxu0 0.0
    %3134 = vmatpush1.xpose.msra.mxu0 0.0
    %3135 = vmatprep.subr.mxu0 0.0
    %3136 = vmatpush1.xpose.msra.mxu0 0.0
    %3137 = vmatprep.subr.mxu0 0.0
    %3138 = vmatpush1.xpose.msra.mxu0 0.0
    %3139 = vmatprep.subr.mxu0 0.0
    %3140 = vmatpush1.xpose.msra.mxu0 0.0
    %3141 = vmatprep.subr.mxu0 0.0
    %3142 = vmatpush1.xpose.msra.mxu0 %v3109
    %3143 = vmatprep.subr.mxu0 0.0
    %3144 = vmatpush2.xpose.msra.mxu0 0.0
    %3145 = vmatprep.subr.mxu0 0.0
    %3146 = vmatpush2.xpose.msra.mxu0 0.0
    %3147 = vmatprep.subr.mxu0 0.0
    %3148 = vmatpush2.xpose.msra.mxu0 0.0
    %3149 = vmatprep.subr.mxu0 0.0
    %3150 = vmatpush2.xpose.msra.mxu0 0.0
    %3151 = vmatprep.subr.mxu0 0.0
    %3152 = vmatpush2.xpose.msra.mxu0 0.0
    %3153 = vmatprep.subr.mxu0 0.0
    %3154 = vmatpush2.xpose.msra.mxu0 0.0
    %3155 = vmatprep.subr.mxu0 0.0
    %3156 = vmatpush2.xpose.msra.mxu0 0.0
    %3157 = vmatprep.subr.mxu0 0.0
    %3158 = vmatpush2.xpose.msra.mxu0 0.0
    %3159 = vmatprep.subr.mxu0 0.0
    %3160 = vmatpush2.xpose.msra.mxu0 0.0
    %3161 = vmatprep.subr.mxu0 0.0
    %3162 = vmatpush2.xpose.msra.mxu0 0.0
    %3163 = vmatprep.subr.mxu0 0.0
    %3164 = vmatpush2.xpose.msra.mxu0 0.0
    %3165 = vmatprep.subr.mxu0 0.0
    %3166 = vmatpush2.xpose.msra.mxu0 0.0
    %3167 = vmatprep.subr.mxu0 0.0
    %3168 = vmatpush2.xpose.msra.mxu0 0.0
    %3169 = vmatprep.subr.mxu0 0.0
    %3170 = vmatpush2.xpose.msra.mxu0 0.0
    %3171 = vmatprep.subr.mxu0 0.0
    %3172 = vmatpush2.xpose.msra.mxu0 0.0
    %3173 = vmatprep.subr.mxu0 0.0
    %3174 = vmatpush2.xpose.msra.mxu0 0.0
    %3175 = vmatprep.mubr.f32.mxu0 0.0
    %3176 = vmatmul.mubr.f32.gmra.mxu0 %v3107
    %v3177 = vpop.f32.mrf.mxu0
    %v3178 = vadd.f32 0.0, %v3177
    %v3179 = vpop.f32.mrf.mxu0
    %3180 = vdwg.mxu0
    %v3181 = vsel %vm308, %v3178, -inf
    %3182 = vmax.xlane.f32.xlu0 %v3181
    %v3183 = vpop.xlane.xlu0 %3182
    %v3184 = vsub.f32 %v3178, %v3183
    %v3185 = vmul.f32 %v3184, 1.442695
    %v3186 = vpow.pop %v3185
    %v3187 = vsel %vm308, %v3186, 0.0
    %3188 = vadd.xlane.f32.xlu0 %v3187
    %v3189 = vpop.xlane.xlu0 %3188
    %v3190 = vrcp.pop %v3189
    %v3191 = vmul.f32 %v3186, %v3190
    %3192 = vrot.lane.b32.xlu0 %v2697, 32
    %v3193 = vpop.permute.xlu0 %3192
    %v3196 = vsel %vm308, %v3191, 0
    %3198 = vmatprep.subr.mxu0 0.0
    %3199 = vmatpush1.msra.mxu0 0.0
    %3200 = vmatprep.subr.mxu0 0.0
    %3201 = vmatpush1.msra.mxu0 0.0
    %3202 = vmatprep.subr.mxu0 0.0
    %3203 = vmatpush1.msra.mxu0 0.0
    %3204 = vmatprep.subr.mxu0 0.0
    %3205 = vmatpush1.msra.mxu0 0.0
    %3206 = vmatprep.subr.mxu0 0.0
    %3207 = vmatpush1.msra.mxu0 0.0
    %3208 = vmatprep.subr.mxu0 0.0
    %3209 = vmatpush1.msra.mxu0 0.0
    %3210 = vmatprep.subr.mxu0 0.0
    %3211 = vmatpush1.msra.mxu0 0.0
    %3212 = vmatprep.subr.mxu0 0.0
    %3213 = vmatpush1.msra.mxu0 0.0
    %3214 = vmatprep.subr.mxu0 0.0
    %3215 = vmatpush1.msra.mxu0 0.0
    %3216 = vmatprep.subr.mxu0 0.0
    %3217 = vmatpush1.msra.mxu0 0.0
    %3218 = vmatprep.subr.mxu0 0.0
    %3219 = vmatpush1.msra.mxu0 0.0
    %3220 = vmatprep.subr.mxu0 0.0
    %3221 = vmatpush1.msra.mxu0 0.0
    %3222 = vmatprep.subr.mxu0 0.0
    %3223 = vmatpush1.msra.mxu0 0.0
    %3224 = vmatprep.subr.mxu0 0.0
    %3225 = vmatpush1.msra.mxu0 0.0
    %3226 = vmatprep.subr.mxu0 0.0
    %3227 = vmatpush1.msra.mxu0 0.0
    %3228 = vmatprep.subr.mxu0 0.0
    %3229 = vmatpush1.msra.mxu0 %v3193
    %3230 = vmatprep.subr.mxu0 0.0
    %3231 = vmatpush2.msra.mxu0 0.0
    %3232 = vmatprep.subr.mxu0 0.0
    %3233 = vmatpush2.msra.mxu0 0.0
    %3234 = vmatprep.subr.mxu0 0.0
    %3235 = vmatpush2.msra.mxu0 0.0
    %3236 = vmatprep.subr.mxu0 0.0
    %3237 = vmatpush2.msra.mxu0 0.0
    %3238 = vmatprep.subr.mxu0 0.0
    %3239 = vmatpush2.msra.mxu0 0.0
    %3240 = vmatprep.subr.mxu0 0.0
    %3241 = vmatpush2.msra.mxu0 0.0
    %3242 = vmatprep.subr.mxu0 0.0
    %3243 = vmatpush2.msra.mxu0 0.0
    %3244 = vmatprep.subr.mxu0 0.0
    %3245 = vmatpush2.msra.mxu0 0.0
    %3246 = vmatprep.subr.mxu0 0.0
    %3247 = vmatpush2.msra.mxu0 0.0
    %3248 = vmatprep.subr.mxu0 0.0
    %3249 = vmatpush2.msra.mxu0 0.0
    %3250 = vmatprep.subr.mxu0 0.0
    %3251 = vmatpush2.msra.mxu0 0.0
    %3252 = vmatprep.subr.mxu0 0.0
    %3253 = vmatpush2.msra.mxu0 0.0
    %3254 = vmatprep.subr.mxu0 0.0
    %3255 = vmatpush2.msra.mxu0 0.0
    %3256 = vmatprep.subr.mxu0 0.0
    %3257 = vmatpush2.msra.mxu0 0.0
    %3258 = vmatprep.subr.mxu0 0.0
    %3259 = vmatpush2.msra.mxu0 0.0
    %3260 = vmatprep.subr.mxu0 0.0
    %3261 = vmatpush2.msra.mxu0 0.0
    %3262 = vmatprep.mubr.f32.mxu0 0.0
    %3263 = vmatmul.mubr.f32.gmra.mxu0 %v3196
    %v3264 = vpop.f32.mrf.mxu0
    %v3265 = vadd.f32 0.0, %v3264
    %v3266 = vpop.f32.mrf.mxu0
    %3267 = vdwg.mxu0
    %v3268 = vadd.f32 %v3102, %v3265
    %v3269 = vadd.f32 %v3268, %v2605
    %3270 = vst.msk [vmem:[#allocation5 + $0x8] sm:$0xff] %vm64, %v3269
    %v3271 = vld [vmem:[#allocation5] sm:$0xff]
    %v3272 = vld [vmem:[#allocation5 + $0x8] sm:$0xff]
    %v3273 = vadd.f32 %v1678, %v3271
    %v3274 = vadd.f32 %v1679, %v3272
    %v3275 = vsel %vm64, %v3273, 0.0
    %3276 = vadd.xlane.f32.xlu0 %v3275
    %v3277 = vpop.xlane.xlu0 %3276
    %v3278 = vsel %vm64, %v3274, 0.0
    %3279 = vadd.xlane.f32.xlu0 %v3278
    %v3280 = vpop.xlane.xlu0 %3279
    %v3281 = vmul.f32 %v3277, %v1647
    %v3282 = vmul.f32 %v3280, %v1647
    %v3283 = vsub.f32 %v3273, %v3281
    %v3284 = vsub.f32 %v3274, %v3282
    %v3285 = vmul.f32 %v3283, %v3283
    %v3286 = vmul.f32 %v3284, %v3284
    %v3287 = vsel %vm64, %v3285, 0.0
    %3288 = vadd.xlane.f32.xlu0 %v3287
    %v3289 = vpop.xlane.xlu0 %3288
    %v3290 = vsel %vm64, %v3286, 0.0
    %3291 = vadd.xlane.f32.xlu0 %v3290
    %v3292 = vpop.xlane.xlu0 %3291
    %v3293 = vmul.f32 %v3289, %v1647
    %v3294 = vmul.f32 %v3292, %v1647
    %v3295 = vadd.f32 %v3293, 1e-05
    %v3296 = vadd.f32 %v3294, 1e-05
    %v3297 = vrsqrt.pop %v3295
    %v3298 = vrsqrt.pop %v3296
    %v3299 = vmul.f32 %v3283, %v3297
    %v3300 = vmul.f32 %v3284, %v3298
    %v3301 = vlaneseq
    %v3302 = vshrl.u32 %v3301, 7
    %v3303 = vsub.s32 2, %v3302
    %v3304 = vrot.slane %v40, %v3303
    %v3305 = vmul.f32 %v3299, %v3304
    %v3306 = vmul.f32 %v3300, %v3304
    %v3307 = vlaneseq
    %v3308 = vshrl.u32 %v3307, 7
    %v3309 = vsub.s32 3, %v3308
    %v3310 = vrot.slane %v40, %v3309
    %v3311 = vadd.f32 %v3305, %v3310
    %v3312 = vadd.f32 %v3306, %v3310
    %v3313 = vld [vmem:[%s6] sm:$0xff]
    %v3314 = vld [vmem:[%s6 + $0x8] sm:$0xff]
    %v3315 = vld [vmem:[%s6 + $0x10] sm:$0xff]
    %v3316 = vld [vmem:[%s6 + $0x18] sm:$0xff]
    %v3317 = vld [vmem:[%s7] sm:$0x1]
    %v3319 = vlaneseq
    %v3320 = vshrl.u32 %v3319, 7
    %v3321 = vsub.s32 0, %v3320
    %v3322 = vrot.slane %v3317, %v3321
    %v3325 = vsel %vm64, %v3311, 0
    %v3328 = vsel %vm64, %v3312, 0
    %3330 = vmatprep.subr.mxu0 0.0
    %3331 = vmatpush1.msra.mxu0 0.0
    %3332 = vmatprep.subr.mxu0 0.0
    %3333 = vmatpush1.msra.mxu0 0.0
    %3334 = vmatprep.subr.mxu0 0.0
    %3335 = vmatpush1.msra.mxu0 0.0
    %3336 = vmatprep.subr.mxu0 0.0
    %3337 = vmatpush1.msra.mxu0 0.0
    %3338 = vmatprep.subr.mxu0 0.0
    %3339 = vmatpush1.msra.mxu0 0.0
    %3340 = vmatprep.subr.mxu0 0.0
    %3341 = vmatpush1.msra.mxu0 0.0
    %3342 = vmatprep.subr.mxu0 0.0
    %3343 = vmatpush1.msra.mxu0 0.0
    %3344 = vmatprep.subr.mxu0 0.0
    %3345 = vmatpush1.msra.mxu0 0.0
    %3346 = vmatprep.subr.mxu0 0.0
    %3347 = vmatpush1.msra.mxu0 0.0
    %3348 = vmatprep.subr.mxu0 0.0
    %3349 = vmatpush1.msra.mxu0 0.0
    %3350 = vmatprep.subr.mxu0 0.0
    %3351 = vmatpush1.msra.mxu0 0.0
    %3352 = vmatprep.subr.mxu0 0.0
    %3353 = vmatpush1.msra.mxu0 0.0
    %3354 = vmatprep.subr.mxu0 0.0
    %3355 = vmatpush1.msra.mxu0 %v3316
    %3356 = vmatprep.subr.mxu0 0.0
    %3357 = vmatpush1.msra.mxu0 %v3315
    %3358 = vmatprep.subr.mxu0 0.0
    %3359 = vmatpush1.msra.mxu0 %v3314
    %3360 = vmatprep.subr.mxu0 0.0
    %3361 = vmatpush1.msra.mxu0 %v3313
    %3362 = vmatprep.subr.mxu0 0.0
    %3363 = vmatpush2.msra.mxu0 0.0
    %3364 = vmatprep.subr.mxu0 0.0
    %3365 = vmatpush2.msra.mxu0 0.0
    %3366 = vmatprep.subr.mxu0 0.0
    %3367 = vmatpush2.msra.mxu0 0.0
    %3368 = vmatprep.subr.mxu0 0.0
    %3369 = vmatpush2.msra.mxu0 0.0
    %3370 = vmatprep.subr.mxu0 0.0
    %3371 = vmatpush2.msra.mxu0 0.0
    %3372 = vmatprep.subr.mxu0 0.0
    %3373 = vmatpush2.msra.mxu0 0.0
    %3374 = vmatprep.subr.mxu0 0.0
    %3375 = vmatpush2.msra.mxu0 0.0
    %3376 = vmatprep.subr.mxu0 0.0
    %3377 = vmatpush2.msra.mxu0 0.0
    %3378 = vmatprep.subr.mxu0 0.0
    %3379 = vmatpush2.msra.mxu0 0.0
    %3380 = vmatprep.subr.mxu0 0.0
    %3381 = vmatpush2.msra.mxu0 0.0
    %3382 = vmatprep.subr.mxu0 0.0
    %3383 = vmatpush2.msra.mxu0 0.0
    %3384 = vmatprep.subr.mxu0 0.0
    %3385 = vmatpush2.msra.mxu0 0.0
    %3386 = vmatprep.subr.mxu0 0.0
    %3387 = vmatpush2.msra.mxu0 0.0
    %3388 = vmatprep.subr.mxu0 0.0
    %3389 = vmatpush2.msra.mxu0 0.0
    %3390 = vmatprep.subr.mxu0 0.0
    %3391 = vmatpush2.msra.mxu0 0.0
    %3392 = vmatprep.subr.mxu0 0.0
    %3393 = vmatpush2.msra.mxu0 0.0
    %3394 = vmatprep.mubr.f32.mxu0 0.0
    %3395 = vmatmul.mubr.f32.gmra.mxu0 %v3325
    %v3396 = vpop.f32.mrf.mxu0
    %v3397 = vadd.f32 %v3322, %v3396
    %v3398 = vpop.f32.mrf.mxu0
    %3399 = vmatprep.mubr.f32.mxu0 0.0
    %3400 = vmatmul.mubr.f32.gmra.mxu0 %v3328
    %v3401 = vpop.f32.mrf.mxu0
    %v3402 = vadd.f32 %v3322, %v3401
    %v3403 = vpop.f32.mrf.mxu0
    %3404 = vdwg.mxu0
    %v3405 = vmax.f32 %v3397, 0.0
    %v3406 = vmax.f32 %v3402, 0.0
    %v3407 = vld [vmem:[%s8] sm:$0xff]
    %v3408 = vld [vmem:[%s8 + $0x8] sm:$0xff]
    %v3409 = vld [vmem:[%s8 + $0x10] sm:$0xff]
    %v3410 = vld [vmem:[%s8 + $0x18] sm:$0xff]
    %v3411 = vld [vmem:[%s8 + $0x20] sm:$0xff]
    %v3412 = vld [vmem:[%s8 + $0x28] sm:$0xff]
    %v3413 = vld [vmem:[%s8 + $0x30] sm:$0xff]
    %v3414 = vld [vmem:[%s8 + $0x38] sm:$0xff]
    %v3415 = vld [vmem:[%s8 + $0x40] sm:$0xff]
    %v3416 = vld [vmem:[%s8 + $0x48] sm:$0xff]
    %v3417 = vld [vmem:[%s8 + $0x50] sm:$0xff]
    %v3418 = vld [vmem:[%s8 + $0x58] sm:$0xff]
    %v3419 = vld [vmem:[%s8 + $0x60] sm:$0xff]
    %v3420 = vld [vmem:[%s8 + $0x68] sm:$0xff]
    %v3421 = vld [vmem:[%s8 + $0x70] sm:$0xff]
    %v3422 = vld [vmem:[%s8 + $0x78] sm:$0xff]
    %v3423 = vld [vmem:[%s9] sm:$0x1]
    %v3425 = vlaneseq
    %v3426 = vshrl.u32 %v3425, 7
    %v3427 = vsub.s32 0, %v3426
    %v3428 = vrot.slane %v3423, %v3427
    %3430 = vmatprep.subr.mxu0 0.0
    %3431 = vmatpush1.msra.mxu0 %v3422
    %3432 = vmatprep.subr.mxu0 0.0
    %3433 = vmatpush1.msra.mxu0 %v3421
    %3434 = vmatprep.subr.mxu0 0.0
    %3435 = vmatpush1.msra.mxu0 %v3420
    %3436 = vmatprep.subr.mxu0 0.0
    %3437 = vmatpush1.msra.mxu0 %v3419
    %3438 = vmatprep.subr.mxu0 0.0
    %3439 = vmatpush1.msra.mxu0 %v3418
    %3440 = vmatprep.subr.mxu0 0.0
    %3441 = vmatpush1.msra.mxu0 %v3417
    %3442 = vmatprep.subr.mxu0 0.0
    %3443 = vmatpush1.msra.mxu0 %v3416
    %3444 = vmatprep.subr.mxu0 0.0
    %3445 = vmatpush1.msra.mxu0 %v3415
    %3446 = vmatprep.subr.mxu0 0.0
    %3447 = vmatpush1.msra.mxu0 %v3414
    %3448 = vmatprep.subr.mxu0 0.0
    %3449 = vmatpush1.msra.mxu0 %v3413
    %3450 = vmatprep.subr.mxu0 0.0
    %3451 = vmatpush1.msra.mxu0 %v3412
    %3452 = vmatprep.subr.mxu0 0.0
    %3453 = vmatpush1.msra.mxu0 %v3411
    %3454 = vmatprep.subr.mxu0 0.0
    %3455 = vmatpush1.msra.mxu0 %v3410
    %3456 = vmatprep.subr.mxu0 0.0
    %3457 = vmatpush1.msra.mxu0 %v3409
    %3458 = vmatprep.subr.mxu0 0.0
    %3459 = vmatpush1.msra.mxu0 %v3408
    %3460 = vmatprep.subr.mxu0 0.0
    %3461 = vmatpush1.msra.mxu0 %v3407
    %3462 = vmatprep.subr.mxu0 0.0
    %3463 = vmatpush2.msra.mxu0 0.0
    %3464 = vmatprep.subr.mxu0 0.0
    %3465 = vmatpush2.msra.mxu0 0.0
    %3466 = vmatprep.subr.mxu0 0.0
    %3467 = vmatpush2.msra.mxu0 0.0
    %3468 = vmatprep.subr.mxu0 0.0
    %3469 = vmatpush2.msra.mxu0 0.0
    %3470 = vmatprep.subr.mxu0 0.0
    %3471 = vmatpush2.msra.mxu0 0.0
    %3472 = vmatprep.subr.mxu0 0.0
    %3473 = vmatpush2.msra.mxu0 0.0
    %3474 = vmatprep.subr.mxu0 0.0
    %3475 = vmatpush2.msra.mxu0 0.0
    %3476 = vmatprep.subr.mxu0 0.0
    %3477 = vmatpush2.msra.mxu0 0.0
    %3478 = vmatprep.subr.mxu0 0.0
    %3479 = vmatpush2.msra.mxu0 0.0
    %3480 = vmatprep.subr.mxu0 0.0
    %3481 = vmatpush2.msra.mxu0 0.0
    %3482 = vmatprep.subr.mxu0 0.0
    %3483 = vmatpush2.msra.mxu0 0.0
    %3484 = vmatprep.subr.mxu0 0.0
    %3485 = vmatpush2.msra.mxu0 0.0
    %3486 = vmatprep.subr.mxu0 0.0
    %3487 = vmatpush2.msra.mxu0 0.0
    %3488 = vmatprep.subr.mxu0 0.0
    %3489 = vmatpush2.msra.mxu0 0.0
    %3490 = vmatprep.subr.mxu0 0.0
    %3491 = vmatpush2.msra.mxu0 0.0
    %3492 = vmatprep.subr.mxu0 0.0
    %3493 = vmatpush2.msra.mxu0 0.0
    %3494 = vmatprep.mubr.f32.mxu0 0.0
    %3495 = vmatmul.mubr.f32.gmra.mxu0 %v3405
    %v3496 = vpop.f32.mrf.mxu0
    %v3497 = vadd.f32 %v3428, %v3496
    %v3498 = vpop.f32.mrf.mxu0
    %3499 = vmatprep.mubr.f32.mxu0 0.0
    %3500 = vmatmul.mubr.f32.gmra.mxu0 %v3406
    %v3501 = vpop.f32.mrf.mxu0
    %v3502 = vadd.f32 %v3428, %v3501
    %v3503 = vpop.f32.mrf.mxu0
    %3504 = vdwg.mxu0
    %v3505 = vadd.f32 %v3311, %v3497
    %v3506 = vadd.f32 %v3312, %v3502
    %v3507 = vsel %vm64, %v3505, 0.0
    %3508 = vadd.xlane.f32.xlu0 %v3507
    %v3509 = vpop.xlane.xlu0 %3508
    %v3510 = vsel %vm64, %v3506, 0.0
    %3511 = vadd.xlane.f32.xlu0 %v3510
    %v3512 = vpop.xlane.xlu0 %3511
    %v3513 = vmul.f32 %v3509, %v1647
    %v3514 = vmul.f32 %v3512, %v1647
    %v3515 = vsub.f32 %v3505, %v3513
    %v3516 = vsub.f32 %v3506, %v3514
    %v3517 = vmul.f32 %v3515, %v3515
    %v3518 = vmul.f32 %v3516, %v3516
    %v3519 = vsel %vm64, %v3517, 0.0
    %3520 = vadd.xlane.f32.xlu0 %v3519
    %v3521 = vpop.xlane.xlu0 %3520
    %v3522 = vsel %vm64, %v3518, 0.0
    %3523 = vadd.xlane.f32.xlu0 %v3522
    %v3524 = vpop.xlane.xlu0 %3523
    %v3525 = vmul.f32 %v3521, %v1647
    %v3526 = vmul.f32 %v3524, %v1647
    %v3527 = vadd.f32 %v3525, 1e-05
    %v3528 = vadd.f32 %v3526, 1e-05
    %v3529 = vrsqrt.pop %v3527
    %v3530 = vrsqrt.pop %v3528
    %v3531 = vmul.f32 %v3515, %v3529
    %v3532 = vmul.f32 %v3516, %v3530
    %v3533 = vlaneseq
    %v3534 = vshrl.u32 %v3533, 7
    %v3535 = vsub.s32 4, %v3534
    %v3536 = vrot.slane %v40, %v3535
    %v3537 = vmul.f32 %v3531, %v3536
    %v3538 = vmul.f32 %v3532, %v3536
    %v3539 = vlaneseq
    %v3540 = vshrl.u32 %v3539, 7
    %v3541 = vsub.s32 5, %v3540
    %v3542 = vrot.slane %v40, %v3541
    %v3543 = vadd.f32 %v3537, %v3542
    %v3544 = vadd.f32 %v3538, %v3542
    %3545 = vst.msk [vmem:[#allocation6] sm:$0xff] %vm64, %v3543
    %3546 = vst.msk [vmem:[#allocation6 + $0x8] sm:$0xff] %vm64, %v3544
    // Predicated region
    $region42: #{tpu_custom_call.1} parent=1 // pred_check
      _
    $region43: #{tpu_custom_call.1} parent=1 // pred_check_branch
      %3548 = sbr.rel (0) target = $region45
    $region44: #{tpu_custom_call.1} parent=1 // pred_region
      %s3550 = ssub.s32 256, 256
      %3551 = vsyncadd [#allocation7], %s3550
      %s3552 = sshll.u32 [#allocation6], 4
      %s3553 = int_to_ptr.vmem [resolvable:$true] %s3552
      %3558 = dma.vmem_to_hbm [thread:$0]  %s3553, 256, %s10, [#allocation7], 128, 128, 8
    $region45: #{tpu_custom_call.1} parent=1 // pred_fallthru
      _
    // Predicated region
    $region46: #{tpu_custom_call.1} parent=1 // pred_check
      _
    $region47: #{tpu_custom_call.1} parent=1 // pred_check_branch
      %3560 = sbr.rel (0) target = $region49
    $region48: #{tpu_custom_call.1} parent=1 // pred_region
      %3561 = dma.done [#allocation7], 256
    $region49: #{tpu_custom_call.1} parent=1 // pred_fallthru
      _
    %3562 = vsyncpa [#allocation7], 1

</llo_original>
